<compile_context>
chip_gen: v7x
topology: tpu7x:2x2x1
jax: 0.10.0
libtpu: 0.0.40
codegen_flags: <defaults>
</compile_context>

<pallas_src>
import functools
import math

import jax
import jax.numpy as jnp
from jax.experimental import pallas as pl
from jax.experimental.pallas import tpu as pltpu

LN_EPS = 1e-5        # torch.nn.LayerNorm default eps
NORM_EPS = 1e-12     # torch.nn.functional.normalize default eps
NEG_BIG = -1e30      # finite "minus infinity" for masked log-sum-exp


def _cdiv(a, b):
    return -(-a // b)


def _round_up(a, m):
    return _cdiv(a, m) * m


# ----------------------------- fused branch kernel ---------------------------

def _make_branch_kernel(kinds, n_enc, return_emb):
    """kinds: tuple of 'ln_silu' / 'linear' (encoder layers, then projhead).
    Kernel signature: (x_ref, *param_refs, [emb_ref,] lat_ref).
    param_refs per layer: w(bf16), b(f32) [+ gamma, beta for 'ln_silu']."""

    def kernel(*refs):
        x_ref = refs[0]
        if return_emb:
            emb_ref, lat_ref = refs[-2], refs[-1]
            params = refs[1:-2]
        else:
            lat_ref = refs[-1]
            params = refs[1:-1]

        h = x_ref[...]                           # bf16 batch tile
        idx = 0
        for li, kind in enumerate(kinds):
            w = params[idx][...]                 # (Din, Dout) bf16
            b = params[idx + 1][...]             # (1, Dout)   f32
            idx += 2
            # MXU matmul: bf16 operands, f32 accumulation.
            y = jnp.dot(h.astype(jnp.bfloat16), w,
                        preferred_element_type=jnp.float32) + b
            if kind == "ln_silu":
                g = params[idx][...]
                beta = params[idx + 1][...]
                idx += 2
                # one-pass LN statistics; clamp var against f32 cancellation.
                mean = jnp.mean(y, axis=-1, keepdims=True)
                var = jnp.mean(y * y, axis=-1, keepdims=True) - mean * mean
                var = jnp.maximum(var, 0.0)
                y = (y - mean) * jax.lax.rsqrt(var + LN_EPS)
                y = y * g + beta
                y = y * jax.nn.sigmoid(y)        # SiLU; Dropout = identity (inference)
            h = y
            if return_emb and li == n_enc - 1:
                emb_ref[...] = h.astype(emb_ref.dtype)

        # F.normalize(h, dim=1): x * rsqrt(max(sumsq, eps^2)).  Padded zero
        # lanes contribute nothing to sumsq, so the real lanes are unchanged.
        sumsq = jnp.sum(h * h, axis=-1, keepdims=True)
        lat_ref[...] = (h * jax.lax.rsqrt(jnp.maximum(sumsq, NORM_EPS * NORM_EPS))
                        ).astype(lat_ref.dtype)

    return kernel


def fused_branch_forward(branch, x, *, return_embedding=False):
    """One fused branch (encoder + projhead + L2 normalize) in one pallas_call.

    Returns lat_pad of shape (B, out_pad) (columns >= hid are zero) and, when
    return_embedding, also the embedding sliced to its true width."""
    B, Din = x.shape
    out_pad = branch["out_pad"]
    emb_pad = branch["emb_pad"]
    flat = branch["flat"]

    # bf16 input storage halves the dominant input DMA (the first matmul
    # consumes bf16 operands anyway).
    x = x.astype(jnp.bfloat16)

    # Row tile: >= 2 grid steps so v7x's second TensorCore has work, up to
    # 512 rows for large batches (amortizes per-step overhead ~4x vs 128).
    # Multiples of 16 keep bf16 input blocks sublane-native.
    if B <= 16:
        tile = B
    else:
        tile = min(512, _round_up(_cdiv(B, 2), 16))
    Bp = _round_up(B, tile)
    if Bp != B:
        x = jnp.pad(x, ((0, Bp - B), (0, 0)))

    in_specs = [pl.BlockSpec((tile, Din), lambda i: (i, 0))]
    for m in flat:
        # Parameters: whole-array blocks, constant index map (stay in VMEM).
        # TODO(synk): pipeline_mode=pl.Buffered(1) here would drop the 2x
        # weight buffering once weights are production-sized.
        in_specs.append(pl.BlockSpec(m.shape, lambda i: (0, 0)))

    out_specs = [pl.BlockSpec((tile, out_pad), lambda i: (i, 0))]
    out_shape = [jax.ShapeDtypeStruct((Bp, out_pad), jnp.float32)]
    if return_embedding:
        out_specs = [pl.BlockSpec((tile, emb_pad), lambda i: (i, 0))] + out_specs
        out_shape = [jax.ShapeDtypeStruct((Bp, emb_pad), jnp.float32)] + out_shape

    # Shape-based VMEM estimate; only raise the limit when the default would
    # be exceeded (keeps the stock compile path at small scale).
    param_bytes = sum(int(p.size) * p.dtype.itemsize for p in flat)
    max_w = max(int(p.shape[-1]) for p in flat)
    io_bytes = tile * Din * 2 + tile * out_pad * 4
    if return_embedding:
        io_bytes += tile * emb_pad * 4
    est = 2 * param_bytes + 2 * io_bytes + 4 * tile * max_w * 4
    cp = dict(dimension_semantics=("parallel",))
    if est > (24 << 20):
        cp["vmem_limit_bytes"] = min(int(est * 1.25), 64 << 20)

    outs = pl.pallas_call(
        _make_branch_kernel(branch["kinds"], branch["n_enc"], return_embedding),
        grid=(Bp // tile,),
        in_specs=in_specs,
        out_specs=tuple(out_specs),
        out_shape=tuple(out_shape),
        compiler_params=pltpu.CompilerParams(**cp),
    )(x, *flat)

    if return_embedding:
        emb, lat = outs
        return emb[:B, :branch["emb_dim"]], lat[:B]
    (lat,) = outs
    return lat[:B]


# ------------------------------ contrastive loss -----------------------------

def _make_loss_full_kernel(inv_temp):
    """Whole-batch InfoNCE: one BxB bf16 matmul; row LSE -> loss_ges, column
    LSE -> loss_dc (logits_dc == logits.T)."""

    def kernel(g_ref, d_ref, lg_ref, ld_ref):
        g = g_ref[...]                            # (B, H) f32
        d = d_ref[...]
        logits = jax.lax.dot_general(
            g.astype(jnp.bfloat16), d.astype(jnp.bfloat16),
            (((1,), (1,)), ((), ())),
            preferred_element_type=jnp.float32) * inv_temp

        n = logits.shape[0]
        row = jax.lax.broadcasted_iota(jnp.int32, (n, n), 0)
        col = jax.lax.broadcasted_iota(jnp.int32, (n, n), 1)
        on_diag = row == col
        m = jnp.where(on_diag, NEG_BIG, logits)

        # loss_ges[i] = LSE_{j!=i} logits[i,j] - diag[i]   (row reduce).
        diag_col = jnp.sum(g * d, axis=-1, keepdims=True) * inv_temp      # (n,1)
        mx_r = jnp.max(m, axis=1, keepdims=True)
        lse_r = mx_r + jnp.log(jnp.sum(jnp.exp(m - mx_r), axis=1, keepdims=True))
        lg_ref[...] = lse_r - diag_col

        # loss_dc[j] = LSE_{i!=j} logits[i,j] - diag[j]    (column reduce).
        # Row-vector diagonal via a masked column sum (avoids a (n,1)->(1,n)
        # relayout); the select/reduce lands on the otherwise-idle XLU.
        diag_row = jnp.sum(jnp.where(on_diag, logits, 0.0), axis=0, keepdims=True)
        mx_c = jnp.max(m, axis=0, keepdims=True)
        lse_c = mx_c + jnp.log(jnp.sum(jnp.exp(m - mx_c), axis=0, keepdims=True))
        ld_ref[...] = lse_c - diag_row

    return kernel


def _make_loss_tiled_kernel(inv_temp, n_valid, tile):
    """Row-tiled InfoNCE for large B: each grid step handles `tile` query rows
    of both directions against the full set of keys (VMEM-bounded, TC-parallel)."""

    def kernel(gt_ref, dt_ref, g_ref, d_ref, lg_ref, ld_ref):
        gt = gt_ref[...]                          # (T, H) f32
        dt = dt_ref[...]
        g_all = g_ref[...].astype(jnp.bfloat16)   # (Bp, H)
        d_all = d_ref[...].astype(jnp.bfloat16)

        logits_g = jax.lax.dot_general(
            gt.astype(jnp.bfloat16), d_all, (((1,), (1,)), ((), ())),
            preferred_element_type=jnp.float32) * inv_temp
        logits_d = jax.lax.dot_general(
            dt.astype(jnp.bfloat16), g_all, (((1,), (1,)), ((), ())),
            preferred_element_type=jnp.float32) * inv_temp
        diag = jnp.sum(gt * dt, axis=-1, keepdims=True) * inv_temp        # (T,1)

        bp = g_all.shape[0]
        r0 = pl.program_id(0) * tile
        col = jax.lax.broadcasted_iota(jnp.int32, (tile, bp), 1)
        row = r0 + jax.lax.broadcasted_iota(jnp.int32, (tile, bp), 0)
        mask = col == row
        if bp != n_valid:                         # static: padded key columns
            mask = mask | (col >= n_valid)

        def off_diag_lse(mat):
            m = jnp.where(mask, NEG_BIG, mat)
            mx = jnp.max(m, axis=1, keepdims=True)
            return mx + jnp.log(jnp.sum(jnp.exp(m - mx), axis=1, keepdims=True))

        lg_ref[...] = off_diag_lse(logits_g) - diag
        ld_ref[...] = off_diag_lse(logits_d) - diag

    return kernel


def simclr_losses(ges_latent, dc_latent, temperature, *, row_tile=None):
    """Both InfoNCE losses.  Inputs may carry zero-padded lane columns (they do
    not change dot products).  row_tile forces the tiled path (used for large B
    or to exercise it in tests)."""
    B, H = ges_latent.shape
    inv_t = 1.0 / float(temperature)

    if row_tile is None and B <= 1024:
        est = 4 * B * H * 4 + 2 * B * B * 4
        kwargs = {}
        if est > (12 << 20):
            kwargs["compiler_params"] = pltpu.CompilerParams(
                vmem_limit_bytes=min(int(est * 1.5), 64 << 20))
        lg, ld = pl.pallas_call(
            _make_loss_full_kernel(inv_t),
            out_shape=(jax.ShapeDtypeStruct((B, 1), jnp.float32),
                       jax.ShapeDtypeStruct((1, B), jnp.float32)),
            **kwargs,
        )(ges_latent, dc_latent)
        return lg[:, 0], ld[0, :]

    tile = 256 if row_tile is None else int(row_tile)
    tile = _round_up(max(8, min(tile, _round_up(B, 8))), 8)
    Bp = _round_up(B, tile)
    if Bp != B:
        pad = ((0, Bp - B), (0, 0))
        ges_latent = jnp.pad(ges_latent, pad)
        dc_latent = jnp.pad(dc_latent, pad)

    est = 4 * Bp * H * 4 + 4 * tile * Bp * 4
    cp = dict(dimension_semantics=("parallel",))
    if est > (12 << 20):
        cp["vmem_limit_bytes"] = min(int(est * 1.5), 64 << 20)

    lg, ld = pl.pallas_call(
        _make_loss_tiled_kernel(inv_t, B, tile),
        grid=(Bp // tile,),
        in_specs=[pl.BlockSpec((tile, H), lambda i: (i, 0)),
                  pl.BlockSpec((tile, H), lambda i: (i, 0)),
                  pl.BlockSpec((Bp, H), lambda i: (0, 0)),
                  pl.BlockSpec((Bp, H), lambda i: (0, 0))],
        out_specs=(pl.BlockSpec((tile, 1), lambda i: (i, 0)),
                   pl.BlockSpec((tile, 1), lambda i: (i, 0))),
        out_shape=(jax.ShapeDtypeStruct((Bp, 1), jnp.float32),
                   jax.ShapeDtypeStruct((Bp, 1), jnp.float32)),
        compiler_params=pltpu.CompilerParams(**cp),
    )(ges_latent, dc_latent, ges_latent, dc_latent)
    return lg[:B, 0], ld[:B, 0]


# ------------------------------- parameter init ------------------------------

def _init_mlpln_layers(key, sizes):
    """MLPLN([s0..sn]): non-final layers = Linear+LN+SiLU(+Dropout), final layer
    = Linear only (matches the [:-2] trimming in the reference)."""
    kinds, flat = [], []
    n_layers = len(sizes) - 1
    for s in range(n_layers):
        key, kw, kb = jax.random.split(key, 3)
        bound = 1.0 / math.sqrt(sizes[s])
        w = jax.random.uniform(kw, (sizes[s], sizes[s + 1]), jnp.float32,
                               -bound, bound)
        b = jax.random.uniform(kb, (sizes[s + 1],), jnp.float32, -bound, bound)
        flat += [w.astype(jnp.bfloat16), b.reshape(1, -1)]
        if s < n_layers - 1:
            kinds.append("ln_silu")
            flat += [jnp.ones((1, sizes[s + 1]), jnp.float32),
                     jnp.zeros((1, sizes[s + 1]), jnp.float32)]
        else:
            kinds.append("linear")
    return kinds, flat


def _make_branch(enc_kinds, enc_flat, proj_kinds, proj_flat, hid):
    kinds = tuple(enc_kinds + proj_kinds)
    flat = list(enc_flat) + list(proj_flat)
    assert kinds[-1] == "linear"
    # Pad the final linear layer's output columns to a 128-lane multiple so the
    # latent store is lane-dense; zero columns are inert through L2-normalize
    # and the logits matmuls, and get sliced off host-side.
    out_pad = _round_up(hid, 128)
    if out_pad != hid:
        flat[-2] = jnp.pad(flat[-2], ((0, 0), (0, out_pad - hid)))
        flat[-1] = jnp.pad(flat[-1], ((0, 0), (0, out_pad - hid)))
    n_enc = len(enc_kinds)
    emb_dim = hid
    emb_pad = out_pad if n_enc == len(kinds) else emb_dim
    return dict(kinds=kinds, n_enc=n_enc, flat=flat, hid=hid,
                out_pad=out_pad, emb_dim=emb_dim, emb_pad=emb_pad)


def init_contrast_pair(key, *, gene_dim, enc_nlayers, enc_intldim, enc_hiddim,
                       dc_nlayers, dc_intldim, drug_dim, proj="mlp"):
    k0, k1, k2, k3 = jax.random.split(key, 4)
    enc_kinds, enc_flat = _init_mlpln_layers(
        k0, [gene_dim] + (enc_nlayers - 1) * [enc_intldim] + [enc_hiddim])
    if proj == "linear":
        proj_kinds, proj_flat = _init_mlpln_layers(k1, [enc_hiddim] * 2)
    elif proj == "mlp":
        proj_kinds, proj_flat = _init_mlpln_layers(k1, [enc_hiddim] * 3)
    elif proj == "none":
        proj_kinds, proj_flat = [], []        # nn.Identity()
    else:
        raise ValueError(proj)
    dce_kinds, dce_flat = _init_mlpln_layers(
        k2, [drug_dim] + dc_nlayers * [dc_intldim] + [enc_hiddim])
    dcp_kinds, dcp_flat = _init_mlpln_layers(k3, [enc_hiddim] * 2)

    return {"ges": _make_branch(enc_kinds, enc_flat, proj_kinds, proj_flat,
                                enc_hiddim),
            "dc": _make_branch(dce_kinds, dce_flat, dcp_kinds, dcp_flat,
                               enc_hiddim)}


# --------------------------------- forward -----------------------------------

def contrast_pair_forward(params, diff_ges, drug_repr):
    """ContrastPair.forward (drug_repr is the gathered per-sample drug tensor)."""
    hid = params["ges"]["hid"]
    ges_emb, ges_lat = fused_branch_forward(params["ges"], diff_ges,
                                            return_embedding=True)
    dc_emb, dc_lat = fused_branch_forward(params["dc"], drug_repr,
                                          return_embedding=True)
    return ges_lat[:, :hid], dc_lat[:, :hid], ges_emb, dc_emb


def simclr_pair_forward(params, temperature, diff_ges, drug_repr, *,
                        loss_row_tile=None):
    """SimCLRPair.forward, non-infocore path."""
    hid = params["ges"]["hid"]
    # Embeddings are unused in this path -> not computed/stored (perf review #1).
    ges_lat = fused_branch_forward(params["ges"], diff_ges)
    dc_lat = fused_branch_forward(params["dc"], drug_repr)
    loss_ges, loss_dc = simclr_losses(ges_lat, dc_lat, temperature,
                                      row_tile=loss_row_tile)
    return loss_ges, loss_dc, ges_lat[:, :hid], dc_lat[:, :hid]
    # TODO(synk): args.infocore=True path (gesdcClf logits, cross-entropy and
    # reweighted InfoNCE) is not implemented.
    # TODO(synk): for B <= 256 both branches + loss could be fused into one
    # pallas_call to remove the latent HBM round trip entirely.


# --------------------------- pure-JAX reference -------------------------------

def _ref_branch(branch, x):
    h = x.astype(jnp.float32)
    flat = branch["flat"]
    idx, emb = 0, None
    for li, kind in enumerate(branch["kinds"]):
        w, b = flat[idx], flat[idx + 1]
        idx += 2
        y = jnp.dot(h.astype(jnp.bfloat16), w,
                    preferred_element_type=jnp.float32) + b
        if kind == "ln_silu":
            g, beta = flat[idx], flat[idx + 1]
            idx += 2
            mean = jnp.mean(y, axis=-1, keepdims=True)
            var = jnp.mean((y - mean) ** 2, axis=-1, keepdims=True)
            y = (y - mean) / jnp.sqrt(var + LN_EPS) * g + beta
            y = y * jax.nn.sigmoid(y)
        h = y
        if li == branch["n_enc"] - 1:
            emb = h
    nrm = jnp.maximum(jnp.linalg.norm(h, axis=1, keepdims=True), NORM_EPS)
    return emb, h / nrm            # includes padded zero columns


def _ref_forward(params, temperature, diff_ges, drug_repr):
    hid = params["ges"]["hid"]
    _, g = _ref_branch(params["ges"], diff_ges)
    _, d = _ref_branch(params["dc"], drug_repr.astype(jnp.float32))
    lg = jnp.dot(g.astype(jnp.bfloat16), d.astype(jnp.bfloat16).T,
                 preferred_element_type=jnp.float32) / temperature
    ld = lg.T
    n = lg.shape[0]
    mask = 1.0 - jnp.eye(n)
    loss_ges = -jnp.log(jnp.exp(jnp.diagonal(lg)) / (jnp.exp(lg) * mask).sum(1))
    loss_dc = -jnp.log(jnp.exp(jnp.diagonal(ld)) / (jnp.exp(ld) * mask).sum(1))
    return loss_ges, loss_dc, g[:, :hid], d[:, :hid]


# ----------------------------------- main -------------------------------------

if __name__ == "__main__":
    B = 32
    gene_dim, enc_nlayers, enc_intldim, enc_hiddim = 32, 3, 64, 32
    dc_nlayers, dc_intldim, drug_dim = 2, 64, 48
    temperature = 0.5

    key = jax.random.PRNGKey(0)
    kp, kx, kd = jax.random.split(key, 3)

    params = init_contrast_pair(
        kp, gene_dim=gene_dim, enc_nlayers=enc_nlayers,
        enc_intldim=enc_intldim, enc_hiddim=enc_hiddim,
        dc_nlayers=dc_nlayers, dc_intldim=dc_intldim,
        drug_dim=drug_dim, proj="mlp")

    diff_ges = jax.random.normal(kx, (B, gene_dim), jnp.float32)

    # drug_repr_dict lookup + index_tensor permutation: host-side glue,
    # exactly as in the reference forward().
    n_drugs = 6
    drug_repr_dict = {
        f"drug{i}": jax.random.normal(jax.random.fold_in(kd, i),
                                      (drug_dim,), jnp.float32)
        for i in range(n_drugs)}
    drug = [f"drug{i % n_drugs}" for i in range(B)]
    index_tensor = list(reversed(range(B)))
    drug = [drug[i] for i in index_tensor]
    drug_repr = jnp.stack([drug_repr_dict[d] for d in drug], axis=0)

    fwd = jax.jit(functools.partial(simclr_pair_forward, params, temperature))
    outs = jax.block_until_ready(fwd(diff_ges, drug_repr))
    loss_ges, loss_dc, ges_latent, dc_latent = outs

    # shape / sanity checks
    assert loss_ges.shape == (B,) and loss_dc.shape == (B,)
    assert ges_latent.shape == (B, enc_hiddim)
    assert dc_latent.shape == (B, enc_hiddim)
    for o in outs:
        assert bool(jnp.all(jnp.isfinite(o)))
    assert bool(jnp.allclose(jnp.linalg.norm(ges_latent, axis=1), 1.0, atol=1e-3))
    assert bool(jnp.allclose(jnp.linalg.norm(dc_latent, axis=1), 1.0, atol=1e-3))

    # numerical check against a pure-JAX reference (same bf16/f32 regime)
    ref = _ref_forward(params, temperature, diff_ges, drug_repr)
    for got, want in zip(outs, ref):
        assert bool(jnp.allclose(got, want, atol=3e-2, rtol=3e-2))

    # also exercise the row-tiled loss path (used for large B / v7x VMEM safety)
    fwd_tiled = jax.jit(functools.partial(simclr_pair_forward, params,
                                          temperature, loss_row_tile=8))
    outs_t = jax.block_until_ready(fwd_tiled(diff_ges, drug_repr))
    for got, want in zip(outs_t, ref):
        assert bool(jnp.allclose(got, want, atol=3e-2, rtol=3e-2))

    print("KERNEL_OK")
</pallas_src>

<mosaic_0001>
module attributes {stable_mosaic.version = 11 : i64} {
  func.func @kernel(%arg0: i32, %arg1: memref<16x32xbf16, #tpu.memory_space<vmem>>, %arg2: memref<32x64xbf16, #tpu.memory_space<vmem>>, %arg3: memref<1x64xf32, #tpu.memory_space<vmem>>, %arg4: memref<1x64xf32, #tpu.memory_space<vmem>>, %arg5: memref<1x64xf32, #tpu.memory_space<vmem>>, %arg6: memref<64x64xbf16, #tpu.memory_space<vmem>>, %arg7: memref<1x64xf32, #tpu.memory_space<vmem>>, %arg8: memref<1x64xf32, #tpu.memory_space<vmem>>, %arg9: memref<1x64xf32, #tpu.memory_space<vmem>>, %arg10: memref<64x32xbf16, #tpu.memory_space<vmem>>, %arg11: memref<1x32xf32, #tpu.memory_space<vmem>>, %arg12: memref<32x32xbf16, #tpu.memory_space<vmem>>, %arg13: memref<1x32xf32, #tpu.memory_space<vmem>>, %arg14: memref<1x32xf32, #tpu.memory_space<vmem>>, %arg15: memref<1x32xf32, #tpu.memory_space<vmem>>, %arg16: memref<32x128xbf16, #tpu.memory_space<vmem>>, %arg17: memref<1x128xf32, #tpu.memory_space<vmem>>, %arg18: memref<16x128xf32, #tpu.memory_space<vmem>>) attributes {dimension_semantics = [#tpu.dimension_semantics<parallel>], iteration_bounds = array<i64: 2>, scalar_prefetch = 0 : i64, scratch_operands = 0 : i64, tpu.core_type = #tpu.core_type<tc>, window_params = [{transform_indices = @transform_0, window_bounds = array<i64: 16, 32>}, {pipeline_mode = #tpu.pipeline_mode<synchronous>, transform_indices = @transform_1, window_bounds = array<i64: 32, 64>}, {pipeline_mode = #tpu.pipeline_mode<synchronous>, transform_indices = @transform_2, window_bounds = array<i64: 1, 64>}, {pipeline_mode = #tpu.pipeline_mode<synchronous>, transform_indices = @transform_3, window_bounds = array<i64: 1, 64>}, {pipeline_mode = #tpu.pipeline_mode<synchronous>, transform_indices = @transform_4, window_bounds = array<i64: 1, 64>}, {pipeline_mode = #tpu.pipeline_mode<synchronous>, transform_indices = @transform_5, window_bounds = array<i64: 64, 64>}, {pipeline_mode = #tpu.pipeline_mode<synchronous>, transform_indices = @transform_6, window_bounds = array<i64: 1, 64>}, {pipeline_mode = #tpu.pipeline_mode<synchronous>, transform_indices = @transform_7, window_bounds = array<i64: 1, 64>}, {pipeline_mode = #tpu.pipeline_mode<synchronous>, transform_indices = @transform_8, window_bounds = array<i64: 1, 64>}, {pipeline_mode = #tpu.pipeline_mode<synchronous>, transform_indices = @transform_9, window_bounds = array<i64: 64, 32>}, {pipeline_mode = #tpu.pipeline_mode<synchronous>, transform_indices = @transform_10, window_bounds = array<i64: 1, 32>}, {pipeline_mode = #tpu.pipeline_mode<synchronous>, transform_indices = @transform_11, window_bounds = array<i64: 32, 32>}, {pipeline_mode = #tpu.pipeline_mode<synchronous>, transform_indices = @transform_12, window_bounds = array<i64: 1, 32>}, {pipeline_mode = #tpu.pipeline_mode<synchronous>, transform_indices = @transform_13, window_bounds = array<i64: 1, 32>}, {pipeline_mode = #tpu.pipeline_mode<synchronous>, transform_indices = @transform_14, window_bounds = array<i64: 1, 32>}, {pipeline_mode = #tpu.pipeline_mode<synchronous>, transform_indices = @transform_15, window_bounds = array<i64: 32, 128>}, {pipeline_mode = #tpu.pipeline_mode<synchronous>, transform_indices = @transform_16, window_bounds = array<i64: 1, 128>}, {transform_indices = @transform_17, window_bounds = array<i64: 16, 128>}]} {
    %c0 = arith.constant 0 : index
    %c0_0 = arith.constant 0 : index
    %0 = vector.load %arg1[%c0, %c0_0] : memref<16x32xbf16, #tpu.memory_space<vmem>>, vector<16x32xbf16>
    %c0_1 = arith.constant 0 : index
    %c0_2 = arith.constant 0 : index
    %1 = vector.load %arg2[%c0_1, %c0_2] : memref<32x64xbf16, #tpu.memory_space<vmem>>, vector<32x64xbf16>
    %c0_3 = arith.constant 0 : index
    %c0_4 = arith.constant 0 : index
    %2 = vector.load %arg3[%c0_3, %c0_4] : memref<1x64xf32, #tpu.memory_space<vmem>>, vector<1x64xf32>
    %cst = arith.constant dense<0.000000e+00> : vector<16x64xf32>
    %3 = tpu.matmul %0, %1, %cst {dimension_numbers = #tpu.dot_dimension_numbers<[1], [0], [0], [1], [0, 0, 1, 1], [], []>} : vector<16x32xbf16>, vector<32x64xbf16>, vector<16x64xf32> -> vector<16x64xf32>
    %4 = vector.broadcast %2 : vector<1x64xf32> to vector<16x64xf32>
    %5 = arith.addf %3, %4 : vector<16x64xf32>
    %c0_5 = arith.constant 0 : index
    %c0_6 = arith.constant 0 : index
    %6 = vector.load %arg4[%c0_5, %c0_6] : memref<1x64xf32, #tpu.memory_space<vmem>>, vector<1x64xf32>
    %c0_7 = arith.constant 0 : index
    %c0_8 = arith.constant 0 : index
    %7 = vector.load %arg5[%c0_7, %c0_8] : memref<1x64xf32, #tpu.memory_space<vmem>>, vector<1x64xf32>
    %cst_9 = arith.constant dense<0.000000e+00> : vector<16xf32>
    %8 = vector.multi_reduction <add>, %5, %cst_9 [1] : vector<16x64xf32> to vector<16xf32>
    %9 = vector.shape_cast %8 : vector<16xf32> to vector<16x1xf32>
    %cst_10 = arith.constant 6.400000e+01 : f32
    %10 = vector.broadcast %cst_10 : f32 to vector<16x1xf32>
    %11 = arith.divf %9, %10 : vector<16x1xf32>
    %12 = arith.mulf %5, %5 : vector<16x64xf32>
    %cst_11 = arith.constant dense<0.000000e+00> : vector<16xf32>
    %13 = vector.multi_reduction <add>, %12, %cst_11 [1] : vector<16x64xf32> to vector<16xf32>
    %14 = vector.shape_cast %13 : vector<16xf32> to vector<16x1xf32>
    %cst_12 = arith.constant 6.400000e+01 : f32
    %15 = vector.broadcast %cst_12 : f32 to vector<16x1xf32>
    %16 = arith.divf %14, %15 : vector<16x1xf32>
    %17 = arith.mulf %11, %11 : vector<16x1xf32>
    %18 = arith.subf %16, %17 : vector<16x1xf32>
    %cst_13 = arith.constant 0.000000e+00 : f32
    %19 = vector.broadcast %cst_13 : f32 to vector<16x1xf32>
    %20 = arith.maximumf %18, %19 : vector<16x1xf32>
    %21 = vector.broadcast %11 : vector<16x1xf32> to vector<16x64xf32>
    %22 = arith.subf %5, %21 : vector<16x64xf32>
    %cst_14 = arith.constant 9.99999974E-6 : f32
    %23 = vector.broadcast %cst_14 : f32 to vector<16x1xf32>
    %24 = arith.addf %20, %23 : vector<16x1xf32>
    %25 = math.rsqrt %24 : vector<16x1xf32>
    %26 = vector.broadcast %25 : vector<16x1xf32> to vector<16x64xf32>
    %27 = arith.mulf %22, %26 : vector<16x64xf32>
    %28 = vector.broadcast %6 : vector<1x64xf32> to vector<16x64xf32>
    %29 = arith.mulf %27, %28 : vector<16x64xf32>
    %30 = vector.broadcast %7 : vector<1x64xf32> to vector<16x64xf32>
    %31 = arith.addf %29, %30 : vector<16x64xf32>
    %32 = arith.negf %31 : vector<16x64xf32>
    %33 = math.exp %32 : vector<16x64xf32>
    %cst_15 = arith.constant 1.000000e+00 : f32
    %34 = vector.broadcast %cst_15 : f32 to vector<16x64xf32>
    %35 = arith.addf %34, %33 : vector<16x64xf32>
    %36 = arith.divf %34, %35 : vector<16x64xf32>
    %37 = arith.mulf %31, %36 : vector<16x64xf32>
    %c0_16 = arith.constant 0 : index
    %c0_17 = arith.constant 0 : index
    %38 = vector.load %arg6[%c0_16, %c0_17] : memref<64x64xbf16, #tpu.memory_space<vmem>>, vector<64x64xbf16>
    %c0_18 = arith.constant 0 : index
    %c0_19 = arith.constant 0 : index
    %39 = vector.load %arg7[%c0_18, %c0_19] : memref<1x64xf32, #tpu.memory_space<vmem>>, vector<1x64xf32>
    %40 = arith.truncf %37 : vector<16x64xf32> to vector<16x64xbf16>
    %cst_20 = arith.constant dense<0.000000e+00> : vector<16x64xf32>
    %41 = tpu.matmul %40, %38, %cst_20 {dimension_numbers = #tpu.dot_dimension_numbers<[1], [0], [0], [1], [0, 0, 1, 1], [], []>} : vector<16x64xbf16>, vector<64x64xbf16>, vector<16x64xf32> -> vector<16x64xf32>
    %42 = vector.broadcast %39 : vector<1x64xf32> to vector<16x64xf32>
    %43 = arith.addf %41, %42 : vector<16x64xf32>
    %c0_21 = arith.constant 0 : index
    %c0_22 = arith.constant 0 : index
    %44 = vector.load %arg8[%c0_21, %c0_22] : memref<1x64xf32, #tpu.memory_space<vmem>>, vector<1x64xf32>
    %c0_23 = arith.constant 0 : index
    %c0_24 = arith.constant 0 : index
    %45 = vector.load %arg9[%c0_23, %c0_24] : memref<1x64xf32, #tpu.memory_space<vmem>>, vector<1x64xf32>
    %cst_25 = arith.constant dense<0.000000e+00> : vector<16xf32>
    %46 = vector.multi_reduction <add>, %43, %cst_25 [1] : vector<16x64xf32> to vector<16xf32>
    %47 = vector.shape_cast %46 : vector<16xf32> to vector<16x1xf32>
    %cst_26 = arith.constant 6.400000e+01 : f32
    %48 = vector.broadcast %cst_26 : f32 to vector<16x1xf32>
    %49 = arith.divf %47, %48 : vector<16x1xf32>
    %50 = arith.mulf %43, %43 : vector<16x64xf32>
    %cst_27 = arith.constant dense<0.000000e+00> : vector<16xf32>
    %51 = vector.multi_reduction <add>, %50, %cst_27 [1] : vector<16x64xf32> to vector<16xf32>
    %52 = vector.shape_cast %51 : vector<16xf32> to vector<16x1xf32>
    %cst_28 = arith.constant 6.400000e+01 : f32
    %53 = vector.broadcast %cst_28 : f32 to vector<16x1xf32>
    %54 = arith.divf %52, %53 : vector<16x1xf32>
    %55 = arith.mulf %49, %49 : vector<16x1xf32>
    %56 = arith.subf %54, %55 : vector<16x1xf32>
    %cst_29 = arith.constant 0.000000e+00 : f32
    %57 = vector.broadcast %cst_29 : f32 to vector<16x1xf32>
    %58 = arith.maximumf %56, %57 : vector<16x1xf32>
    %59 = vector.broadcast %49 : vector<16x1xf32> to vector<16x64xf32>
    %60 = arith.subf %43, %59 : vector<16x64xf32>
    %cst_30 = arith.constant 9.99999974E-6 : f32
    %61 = vector.broadcast %cst_30 : f32 to vector<16x1xf32>
    %62 = arith.addf %58, %61 : vector<16x1xf32>
    %63 = math.rsqrt %62 : vector<16x1xf32>
    %64 = vector.broadcast %63 : vector<16x1xf32> to vector<16x64xf32>
    %65 = arith.mulf %60, %64 : vector<16x64xf32>
    %66 = vector.broadcast %44 : vector<1x64xf32> to vector<16x64xf32>
    %67 = arith.mulf %65, %66 : vector<16x64xf32>
    %68 = vector.broadcast %45 : vector<1x64xf32> to vector<16x64xf32>
    %69 = arith.addf %67, %68 : vector<16x64xf32>
    %70 = arith.negf %69 : vector<16x64xf32>
    %71 = math.exp %70 : vector<16x64xf32>
    %cst_31 = arith.constant 1.000000e+00 : f32
    %72 = vector.broadcast %cst_31 : f32 to vector<16x64xf32>
    %73 = arith.addf %72, %71 : vector<16x64xf32>
    %74 = arith.divf %72, %73 : vector<16x64xf32>
    %75 = arith.mulf %69, %74 : vector<16x64xf32>
    %c0_32 = arith.constant 0 : index
    %c0_33 = arith.constant 0 : index
    %76 = vector.load %arg10[%c0_32, %c0_33] : memref<64x32xbf16, #tpu.memory_space<vmem>>, vector<64x32xbf16>
    %c0_34 = arith.constant 0 : index
    %c0_35 = arith.constant 0 : index
    %77 = vector.load %arg11[%c0_34, %c0_35] : memref<1x32xf32, #tpu.memory_space<vmem>>, vector<1x32xf32>
    %78 = arith.truncf %75 : vector<16x64xf32> to vector<16x64xbf16>
    %cst_36 = arith.constant dense<0.000000e+00> : vector<16x32xf32>
    %79 = tpu.matmul %78, %76, %cst_36 {dimension_numbers = #tpu.dot_dimension_numbers<[1], [0], [0], [1], [0, 0, 1, 1], [], []>} : vector<16x64xbf16>, vector<64x32xbf16>, vector<16x32xf32> -> vector<16x32xf32>
    %80 = vector.broadcast %77 : vector<1x32xf32> to vector<16x32xf32>
    %81 = arith.addf %79, %80 : vector<16x32xf32>
    %c0_37 = arith.constant 0 : index
    %c0_38 = arith.constant 0 : index
    %82 = vector.load %arg12[%c0_37, %c0_38] : memref<32x32xbf16, #tpu.memory_space<vmem>>, vector<32x32xbf16>
    %c0_39 = arith.constant 0 : index
    %c0_40 = arith.constant 0 : index
    %83 = vector.load %arg13[%c0_39, %c0_40] : memref<1x32xf32, #tpu.memory_space<vmem>>, vector<1x32xf32>
    %84 = arith.truncf %81 : vector<16x32xf32> to vector<16x32xbf16>
    %cst_41 = arith.constant dense<0.000000e+00> : vector<16x32xf32>
    %85 = tpu.matmul %84, %82, %cst_41 {dimension_numbers = #tpu.dot_dimension_numbers<[1], [0], [0], [1], [0, 0, 1, 1], [], []>} : vector<16x32xbf16>, vector<32x32xbf16>, vector<16x32xf32> -> vector<16x32xf32>
    %86 = vector.broadcast %83 : vector<1x32xf32> to vector<16x32xf32>
    %87 = arith.addf %85, %86 : vector<16x32xf32>
    %c0_42 = arith.constant 0 : index
    %c0_43 = arith.constant 0 : index
    %88 = vector.load %arg14[%c0_42, %c0_43] : memref<1x32xf32, #tpu.memory_space<vmem>>, vector<1x32xf32>
    %c0_44 = arith.constant 0 : index
    %c0_45 = arith.constant 0 : index
    %89 = vector.load %arg15[%c0_44, %c0_45] : memref<1x32xf32, #tpu.memory_space<vmem>>, vector<1x32xf32>
    %cst_46 = arith.constant dense<0.000000e+00> : vector<16xf32>
    %90 = vector.multi_reduction <add>, %87, %cst_46 [1] : vector<16x32xf32> to vector<16xf32>
    %91 = vector.shape_cast %90 : vector<16xf32> to vector<16x1xf32>
    %cst_47 = arith.constant 3.200000e+01 : f32
    %92 = vector.broadcast %cst_47 : f32 to vector<16x1xf32>
    %93 = arith.divf %91, %92 : vector<16x1xf32>
    %94 = arith.mulf %87, %87 : vector<16x32xf32>
    %cst_48 = arith.constant dense<0.000000e+00> : vector<16xf32>
    %95 = vector.multi_reduction <add>, %94, %cst_48 [1] : vector<16x32xf32> to vector<16xf32>
    %96 = vector.shape_cast %95 : vector<16xf32> to vector<16x1xf32>
    %cst_49 = arith.constant 3.200000e+01 : f32
    %97 = vector.broadcast %cst_49 : f32 to vector<16x1xf32>
    %98 = arith.divf %96, %97 : vector<16x1xf32>
    %99 = arith.mulf %93, %93 : vector<16x1xf32>
    %100 = arith.subf %98, %99 : vector<16x1xf32>
    %cst_50 = arith.constant 0.000000e+00 : f32
    %101 = vector.broadcast %cst_50 : f32 to vector<16x1xf32>
    %102 = arith.maximumf %100, %101 : vector<16x1xf32>
    %103 = vector.broadcast %93 : vector<16x1xf32> to vector<16x32xf32>
    %104 = arith.subf %87, %103 : vector<16x32xf32>
    %cst_51 = arith.constant 9.99999974E-6 : f32
    %105 = vector.broadcast %cst_51 : f32 to vector<16x1xf32>
    %106 = arith.addf %102, %105 : vector<16x1xf32>
    %107 = math.rsqrt %106 : vector<16x1xf32>
    %108 = vector.broadcast %107 : vector<16x1xf32> to vector<16x32xf32>
    %109 = arith.mulf %104, %108 : vector<16x32xf32>
    %110 = vector.broadcast %88 : vector<1x32xf32> to vector<16x32xf32>
    %111 = arith.mulf %109, %110 : vector<16x32xf32>
    %112 = vector.broadcast %89 : vector<1x32xf32> to vector<16x32xf32>
    %113 = arith.addf %111, %112 : vector<16x32xf32>
    %114 = arith.negf %113 : vector<16x32xf32>
    %115 = math.exp %114 : vector<16x32xf32>
    %cst_52 = arith.constant 1.000000e+00 : f32
    %116 = vector.broadcast %cst_52 : f32 to vector<16x32xf32>
    %117 = arith.addf %116, %115 : vector<16x32xf32>
    %118 = arith.divf %116, %117 : vector<16x32xf32>
    %119 = arith.mulf %113, %118 : vector<16x32xf32>
    %c0_53 = arith.constant 0 : index
    %c0_54 = arith.constant 0 : index
    %120 = vector.load %arg16[%c0_53, %c0_54] : memref<32x128xbf16, #tpu.memory_space<vmem>>, vector<32x128xbf16>
    %c0_55 = arith.constant 0 : index
    %c0_56 = arith.constant 0 : index
    %121 = vector.load %arg17[%c0_55, %c0_56] : memref<1x128xf32, #tpu.memory_space<vmem>>, vector<1x128xf32>
    %122 = arith.truncf %119 : vector<16x32xf32> to vector<16x32xbf16>
    %cst_57 = arith.constant dense<0.000000e+00> : vector<16x128xf32>
    %123 = tpu.matmul %122, %120, %cst_57 {dimension_numbers = #tpu.dot_dimension_numbers<[1], [0], [0], [1], [0, 0, 1, 1], [], []>} : vector<16x32xbf16>, vector<32x128xbf16>, vector<16x128xf32> -> vector<16x128xf32>
    %124 = vector.broadcast %121 : vector<1x128xf32> to vector<16x128xf32>
    %125 = arith.addf %123, %124 : vector<16x128xf32>
    %126 = arith.mulf %125, %125 : vector<16x128xf32>
    %cst_58 = arith.constant dense<0.000000e+00> : vector<16xf32>
    %127 = vector.multi_reduction <add>, %126, %cst_58 [1] : vector<16x128xf32> to vector<16xf32>
    %128 = vector.shape_cast %127 : vector<16xf32> to vector<16x1xf32>
    %cst_59 = arith.constant 1.000000e-24 : f32
    %129 = vector.broadcast %cst_59 : f32 to vector<16x1xf32>
    %130 = arith.maximumf %128, %129 : vector<16x1xf32>
    %131 = math.rsqrt %130 : vector<16x1xf32>
    %132 = vector.broadcast %131 : vector<16x1xf32> to vector<16x128xf32>
    %133 = arith.mulf %125, %132 : vector<16x128xf32>
    %c0_60 = arith.constant 0 : index
    %c0_61 = arith.constant 0 : index
    %134 = vector.load %arg18[%c0_60, %c0_61] : memref<16x128xf32, #tpu.memory_space<vmem>>, vector<16x128xf32>
    tpu.vector_store %arg18[%c0_60, %c0_61], %133 {strides = array<i32>} : memref<16x128xf32, #tpu.memory_space<vmem>>, vector<16x128xf32>,
    return
  }
  func.func @transform_0(%arg0: i32) -> (i32, i32) {
    %c0_i32 = arith.constant 0 : i32
    %c0_i32_0 = arith.constant 0 : i32
    return %arg0, %c0_i32 : i32, i32
  }
  func.func @transform_1(%arg0: i32) -> (i32, i32) {
    %c0_i32 = arith.constant 0 : i32
    %c0_i32_0 = arith.constant 0 : i32
    %c0_i32_1 = arith.constant 0 : i32
    return %c0_i32, %c0_i32_0 : i32, i32
  }
  func.func @transform_2(%arg0: i32) -> (i32, i32) {
    %c0_i32 = arith.constant 0 : i32
    %c0_i32_0 = arith.constant 0 : i32
    %c0_i32_1 = arith.constant 0 : i32
    return %c0_i32, %c0_i32_0 : i32, i32
  }
  func.func @transform_3(%arg0: i32) -> (i32, i32) {
    %c0_i32 = arith.constant 0 : i32
    %c0_i32_0 = arith.constant 0 : i32
    %c0_i32_1 = arith.constant 0 : i32
    return %c0_i32, %c0_i32_0 : i32, i32
  }
  func.func @transform_4(%arg0: i32) -> (i32, i32) {
    %c0_i32 = arith.constant 0 : i32
    %c0_i32_0 = arith.constant 0 : i32
    %c0_i32_1 = arith.constant 0 : i32
    return %c0_i32, %c0_i32_0 : i32, i32
  }
  func.func @transform_5(%arg0: i32) -> (i32, i32) {
    %c0_i32 = arith.constant 0 : i32
    %c0_i32_0 = arith.constant 0 : i32
    %c0_i32_1 = arith.constant 0 : i32
    return %c0_i32, %c0_i32_0 : i32, i32
  }
  func.func @transform_6(%arg0: i32) -> (i32, i32) {
    %c0_i32 = arith.constant 0 : i32
    %c0_i32_0 = arith.constant 0 : i32
    %c0_i32_1 = arith.constant 0 : i32
    return %c0_i32, %c0_i32_0 : i32, i32
  }
  func.func @transform_7(%arg0: i32) -> (i32, i32) {
    %c0_i32 = arith.constant 0 : i32
    %c0_i32_0 = arith.constant 0 : i32
    %c0_i32_1 = arith.constant 0 : i32
    return %c0_i32, %c0_i32_0 : i32, i32
  }
  func.func @transform_8(%arg0: i32) -> (i32, i32) {
    %c0_i32 = arith.constant 0 : i32
    %c0_i32_0 = arith.constant 0 : i32
    %c0_i32_1 = arith.constant 0 : i32
    return %c0_i32, %c0_i32_0 : i32, i32
  }
  func.func @transform_9(%arg0: i32) -> (i32, i32) {
    %c0_i32 = arith.constant 0 : i32
    %c0_i32_0 = arith.constant 0 : i32
    %c0_i32_1 = arith.constant 0 : i32
    return %c0_i32, %c0_i32_0 : i32, i32
  }
  func.func @transform_10(%arg0: i32) -> (i32, i32) {
    %c0_i32 = arith.constant 0 : i32
    %c0_i32_0 = arith.constant 0 : i32
    %c0_i32_1 = arith.constant 0 : i32
    return %c0_i32, %c0_i32_0 : i32, i32
  }
  func.func @transform_11(%arg0: i32) -> (i32, i32) {
    %c0_i32 = arith.constant 0 : i32
    %c0_i32_0 = arith.constant 0 : i32
    %c0_i32_1 = arith.constant 0 : i32
    return %c0_i32, %c0_i32_0 : i32, i32
  }
  func.func @transform_12(%arg0: i32) -> (i32, i32) {
    %c0_i32 = arith.constant 0 : i32
    %c0_i32_0 = arith.constant 0 : i32
    %c0_i32_1 = arith.constant 0 : i32
    return %c0_i32, %c0_i32_0 : i32, i32
  }
  func.func @transform_13(%arg0: i32) -> (i32, i32) {
    %c0_i32 = arith.constant 0 : i32
    %c0_i32_0 = arith.constant 0 : i32
    %c0_i32_1 = arith.constant 0 : i32
    return %c0_i32, %c0_i32_0 : i32, i32
  }
  func.func @transform_14(%arg0: i32) -> (i32, i32) {
    %c0_i32 = arith.constant 0 : i32
    %c0_i32_0 = arith.constant 0 : i32
    %c0_i32_1 = arith.constant 0 : i32
    return %c0_i32, %c0_i32_0 : i32, i32
  }
  func.func @transform_15(%arg0: i32) -> (i32, i32) {
    %c0_i32 = arith.constant 0 : i32
    %c0_i32_0 = arith.constant 0 : i32
    %c0_i32_1 = arith.constant 0 : i32
    return %c0_i32, %c0_i32_0 : i32, i32
  }
  func.func @transform_16(%arg0: i32) -> (i32, i32) {
    %c0_i32 = arith.constant 0 : i32
    %c0_i32_0 = arith.constant 0 : i32
    %c0_i32_1 = arith.constant 0 : i32
    return %c0_i32, %c0_i32_0 : i32, i32
  }
  func.func @transform_17(%arg0: i32) -> (i32, i32) {
    %c0_i32 = arith.constant 0 : i32
    %c0_i32_0 = arith.constant 0 : i32
    return %arg0, %c0_i32 : i32, i32
  }
}

module attributes {stable_mosaic.version = 11 : i64} {
  func.func @kernel(%arg0: memref<32x128xf32, #tpu.memory_space<vmem>>, %arg1: memref<32x128xf32, #tpu.memory_space<vmem>>, %arg2: memref<32x1xf32, #tpu.memory_space<vmem>>, %arg3: memref<1x32xf32, #tpu.memory_space<vmem>>) attributes {dimension_semantics = [], scalar_prefetch = 0 : i64, scratch_operands = 0 : i64, tpu.core_type = #tpu.core_type<tc>} {
    %c0 = arith.constant 0 : index
    %c0_0 = arith.constant 0 : index
    %0 = vector.load %arg0[%c0, %c0_0] : memref<32x128xf32, #tpu.memory_space<vmem>>, vector<32x128xf32>
    %c0_1 = arith.constant 0 : index
    %c0_2 = arith.constant 0 : index
    %1 = vector.load %arg1[%c0_1, %c0_2] : memref<32x128xf32, #tpu.memory_space<vmem>>, vector<32x128xf32>
    %2 = arith.truncf %0 : vector<32x128xf32> to vector<32x128xbf16>
    %3 = arith.truncf %1 : vector<32x128xf32> to vector<32x128xbf16>
    %cst = arith.constant dense<0.000000e+00> : vector<32x32xf32>
    %4 = tpu.matmul %2, %3, %cst {dimension_numbers = #tpu.dot_dimension_numbers<[1], [1], [0], [0], [0, 0, 1, 0], [], []>} : vector<32x128xbf16>, vector<32x128xbf16>, vector<32x32xf32> -> vector<32x32xf32>
    %cst_3 = arith.constant 2.000000e+00 : f32
    %5 = vector.broadcast %cst_3 : f32 to vector<32x32xf32>
    %6 = arith.mulf %4, %5 : vector<32x32xf32>
    %7 = tpu.iota {dimensions = array<i32: 0>} : vector<32x32xi32>
    %8 = tpu.iota {dimensions = array<i32: 1>} : vector<32x32xi32>
    %9 = arith.cmpi eq, %7, %8 : vector<32x32xi32>
    %cst_4 = arith.constant -1.000000e+30 : f32
    %10 = vector.broadcast %cst_4 : f32 to vector<32x32xf32>
    %11 = arith.select %9, %10, %6 : vector<32x32xi1>, vector<32x32xf32>
    %12 = arith.mulf %0, %1 : vector<32x128xf32>
    %cst_5 = arith.constant dense<0.000000e+00> : vector<32xf32>
    %13 = vector.multi_reduction <add>, %12, %cst_5 [1] : vector<32x128xf32> to vector<32xf32>
    %14 = vector.shape_cast %13 : vector<32xf32> to vector<32x1xf32>
    %cst_6 = arith.constant 2.000000e+00 : f32
    %15 = vector.broadcast %cst_6 : f32 to vector<32x1xf32>
    %16 = arith.mulf %14, %15 : vector<32x1xf32>
    %cst_7 = arith.constant dense<0xFF800000> : vector<32xf32>
    %17 = vector.multi_reduction <maximumf>, %11, %cst_7 [1] : vector<32x32xf32> to vector<32xf32>
    %18 = vector.shape_cast %17 : vector<32xf32> to vector<32x1xf32>
    %19 = vector.broadcast %18 : vector<32x1xf32> to vector<32x32xf32>
    %20 = arith.subf %11, %19 : vector<32x32xf32>
    %21 = math.exp %20 : vector<32x32xf32>
    %cst_8 = arith.constant dense<0.000000e+00> : vector<32xf32>
    %22 = vector.multi_reduction <add>, %21, %cst_8 [1] : vector<32x32xf32> to vector<32xf32>
    %23 = vector.shape_cast %22 : vector<32xf32> to vector<32x1xf32>
    %24 = math.log %23 : vector<32x1xf32>
    %25 = arith.addf %18, %24 : vector<32x1xf32>
    %26 = arith.subf %25, %16 : vector<32x1xf32>
    %c0_9 = arith.constant 0 : index
    %c0_10 = arith.constant 0 : index
    %27 = vector.load %arg2[%c0_9, %c0_10] : memref<32x1xf32, #tpu.memory_space<vmem>>, vector<32x1xf32>
    tpu.vector_store %arg2[%c0_9, %c0_10], %26 {strides = array<i32>} : memref<32x1xf32, #tpu.memory_space<vmem>>, vector<32x1xf32>,
    %cst_11 = arith.constant 0.000000e+00 : f32
    %28 = vector.broadcast %cst_11 : f32 to vector<32x32xf32>
    %29 = arith.select %9, %6, %28 : vector<32x32xi1>, vector<32x32xf32>
    %cst_12 = arith.constant dense<0.000000e+00> : vector<32xf32>
    %30 = vector.multi_reduction <add>, %29, %cst_12 [0] : vector<32x32xf32> to vector<32xf32>
    %31 = vector.shape_cast %30 : vector<32xf32> to vector<1x32xf32>
    %cst_13 = arith.constant dense<0xFF800000> : vector<32xf32>
    %32 = vector.multi_reduction <maximumf>, %11, %cst_13 [0] : vector<32x32xf32> to vector<32xf32>
    %33 = vector.shape_cast %32 : vector<32xf32> to vector<1x32xf32>
    %34 = vector.broadcast %33 : vector<1x32xf32> to vector<32x32xf32>
    %35 = arith.subf %11, %34 : vector<32x32xf32>
    %36 = math.exp %35 : vector<32x32xf32>
    %cst_14 = arith.constant dense<0.000000e+00> : vector<32xf32>
    %37 = vector.multi_reduction <add>, %36, %cst_14 [0] : vector<32x32xf32> to vector<32xf32>
    %38 = vector.shape_cast %37 : vector<32xf32> to vector<1x32xf32>
    %39 = math.log %38 : vector<1x32xf32>
    %40 = arith.addf %33, %39 : vector<1x32xf32>
    %41 = arith.subf %40, %31 : vector<1x32xf32>
    %c0_15 = arith.constant 0 : index
    %c0_16 = arith.constant 0 : index
    %42 = vector.load %arg3[%c0_15, %c0_16] : memref<1x32xf32, #tpu.memory_space<vmem>>, vector<1x32xf32>
    tpu.vector_store %arg3[%c0_15, %c0_16], %41 {strides = array<i32>} : memref<1x32xf32, #tpu.memory_space<vmem>>, vector<1x32xf32>,
    return
  }
}

module attributes {stable_mosaic.version = 11 : i64} {
  func.func @kernel(%arg0: i32, %arg1: memref<16x48xbf16, #tpu.memory_space<vmem>>, %arg2: memref<48x64xbf16, #tpu.memory_space<vmem>>, %arg3: memref<1x64xf32, #tpu.memory_space<vmem>>, %arg4: memref<1x64xf32, #tpu.memory_space<vmem>>, %arg5: memref<1x64xf32, #tpu.memory_space<vmem>>, %arg6: memref<64x64xbf16, #tpu.memory_space<vmem>>, %arg7: memref<1x64xf32, #tpu.memory_space<vmem>>, %arg8: memref<1x64xf32, #tpu.memory_space<vmem>>, %arg9: memref<1x64xf32, #tpu.memory_space<vmem>>, %arg10: memref<64x32xbf16, #tpu.memory_space<vmem>>, %arg11: memref<1x32xf32, #tpu.memory_space<vmem>>, %arg12: memref<32x128xbf16, #tpu.memory_space<vmem>>, %arg13: memref<1x128xf32, #tpu.memory_space<vmem>>, %arg14: memref<16x128xf32, #tpu.memory_space<vmem>>) attributes {dimension_semantics = [#tpu.dimension_semantics<parallel>], iteration_bounds = array<i64: 2>, scalar_prefetch = 0 : i64, scratch_operands = 0 : i64, tpu.core_type = #tpu.core_type<tc>, window_params = [{transform_indices = @transform_0, window_bounds = array<i64: 16, 48>}, {pipeline_mode = #tpu.pipeline_mode<synchronous>, transform_indices = @transform_1, window_bounds = array<i64: 48, 64>}, {pipeline_mode = #tpu.pipeline_mode<synchronous>, transform_indices = @transform_2, window_bounds = array<i64: 1, 64>}, {pipeline_mode = #tpu.pipeline_mode<synchronous>, transform_indices = @transform_3, window_bounds = array<i64: 1, 64>}, {pipeline_mode = #tpu.pipeline_mode<synchronous>, transform_indices = @transform_4, window_bounds = array<i64: 1, 64>}, {pipeline_mode = #tpu.pipeline_mode<synchronous>, transform_indices = @transform_5, window_bounds = array<i64: 64, 64>}, {pipeline_mode = #tpu.pipeline_mode<synchronous>, transform_indices = @transform_6, window_bounds = array<i64: 1, 64>}, {pipeline_mode = #tpu.pipeline_mode<synchronous>, transform_indices = @transform_7, window_bounds = array<i64: 1, 64>}, {pipeline_mode = #tpu.pipeline_mode<synchronous>, transform_indices = @transform_8, window_bounds = array<i64: 1, 64>}, {pipeline_mode = #tpu.pipeline_mode<synchronous>, transform_indices = @transform_9, window_bounds = array<i64: 64, 32>}, {pipeline_mode = #tpu.pipeline_mode<synchronous>, transform_indices = @transform_10, window_bounds = array<i64: 1, 32>}, {pipeline_mode = #tpu.pipeline_mode<synchronous>, transform_indices = @transform_11, window_bounds = array<i64: 32, 128>}, {pipeline_mode = #tpu.pipeline_mode<synchronous>, transform_indices = @transform_12, window_bounds = array<i64: 1, 128>}, {transform_indices = @transform_13, window_bounds = array<i64: 16, 128>}]} {
    %c0 = arith.constant 0 : index
    %c0_0 = arith.constant 0 : index
    %0 = vector.load %arg1[%c0, %c0_0] : memref<16x48xbf16, #tpu.memory_space<vmem>>, vector<16x48xbf16>
    %c0_1 = arith.constant 0 : index
    %c0_2 = arith.constant 0 : index
    %1 = vector.load %arg2[%c0_1, %c0_2] : memref<48x64xbf16, #tpu.memory_space<vmem>>, vector<48x64xbf16>
    %c0_3 = arith.constant 0 : index
    %c0_4 = arith.constant 0 : index
    %2 = vector.load %arg3[%c0_3, %c0_4] : memref<1x64xf32, #tpu.memory_space<vmem>>, vector<1x64xf32>
    %cst = arith.constant dense<0.000000e+00> : vector<16x64xf32>
    %3 = tpu.matmul %0, %1, %cst {dimension_numbers = #tpu.dot_dimension_numbers<[1], [0], [0], [1], [0, 0, 1, 1], [], []>} : vector<16x48xbf16>, vector<48x64xbf16>, vector<16x64xf32> -> vector<16x64xf32>
    %4 = vector.broadcast %2 : vector<1x64xf32> to vector<16x64xf32>
    %5 = arith.addf %3, %4 : vector<16x64xf32>
    %c0_5 = arith.constant 0 : index
    %c0_6 = arith.constant 0 : index
    %6 = vector.load %arg4[%c0_5, %c0_6] : memref<1x64xf32, #tpu.memory_space<vmem>>, vector<1x64xf32>
    %c0_7 = arith.constant 0 : index
    %c0_8 = arith.constant 0 : index
    %7 = vector.load %arg5[%c0_7, %c0_8] : memref<1x64xf32, #tpu.memory_space<vmem>>, vector<1x64xf32>
    %cst_9 = arith.constant dense<0.000000e+00> : vector<16xf32>
    %8 = vector.multi_reduction <add>, %5, %cst_9 [1] : vector<16x64xf32> to vector<16xf32>
    %9 = vector.shape_cast %8 : vector<16xf32> to vector<16x1xf32>
    %cst_10 = arith.constant 6.400000e+01 : f32
    %10 = vector.broadcast %cst_10 : f32 to vector<16x1xf32>
    %11 = arith.divf %9, %10 : vector<16x1xf32>
    %12 = arith.mulf %5, %5 : vector<16x64xf32>
    %cst_11 = arith.constant dense<0.000000e+00> : vector<16xf32>
    %13 = vector.multi_reduction <add>, %12, %cst_11 [1] : vector<16x64xf32> to vector<16xf32>
    %14 = vector.shape_cast %13 : vector<16xf32> to vector<16x1xf32>
    %cst_12 = arith.constant 6.400000e+01 : f32
    %15 = vector.broadcast %cst_12 : f32 to vector<16x1xf32>
    %16 = arith.divf %14, %15 : vector<16x1xf32>
    %17 = arith.mulf %11, %11 : vector<16x1xf32>
    %18 = arith.subf %16, %17 : vector<16x1xf32>
    %cst_13 = arith.constant 0.000000e+00 : f32
    %19 = vector.broadcast %cst_13 : f32 to vector<16x1xf32>
    %20 = arith.maximumf %18, %19 : vector<16x1xf32>
    %21 = vector.broadcast %11 : vector<16x1xf32> to vector<16x64xf32>
    %22 = arith.subf %5, %21 : vector<16x64xf32>
    %cst_14 = arith.constant 9.99999974E-6 : f32
    %23 = vector.broadcast %cst_14 : f32 to vector<16x1xf32>
    %24 = arith.addf %20, %23 : vector<16x1xf32>
    %25 = math.rsqrt %24 : vector<16x1xf32>
    %26 = vector.broadcast %25 : vector<16x1xf32> to vector<16x64xf32>
    %27 = arith.mulf %22, %26 : vector<16x64xf32>
    %28 = vector.broadcast %6 : vector<1x64xf32> to vector<16x64xf32>
    %29 = arith.mulf %27, %28 : vector<16x64xf32>
    %30 = vector.broadcast %7 : vector<1x64xf32> to vector<16x64xf32>
    %31 = arith.addf %29, %30 : vector<16x64xf32>
    %32 = arith.negf %31 : vector<16x64xf32>
    %33 = math.exp %32 : vector<16x64xf32>
    %cst_15 = arith.constant 1.000000e+00 : f32
    %34 = vector.broadcast %cst_15 : f32 to vector<16x64xf32>
    %35 = arith.addf %34, %33 : vector<16x64xf32>
    %36 = arith.divf %34, %35 : vector<16x64xf32>
    %37 = arith.mulf %31, %36 : vector<16x64xf32>
    %c0_16 = arith.constant 0 : index
    %c0_17 = arith.constant 0 : index
    %38 = vector.load %arg6[%c0_16, %c0_17] : memref<64x64xbf16, #tpu.memory_space<vmem>>, vector<64x64xbf16>
    %c0_18 = arith.constant 0 : index
    %c0_19 = arith.constant 0 : index
    %39 = vector.load %arg7[%c0_18, %c0_19] : memref<1x64xf32, #tpu.memory_space<vmem>>, vector<1x64xf32>
    %40 = arith.truncf %37 : vector<16x64xf32> to vector<16x64xbf16>
    %cst_20 = arith.constant dense<0.000000e+00> : vector<16x64xf32>
    %41 = tpu.matmul %40, %38, %cst_20 {dimension_numbers = #tpu.dot_dimension_numbers<[1], [0], [0], [1], [0, 0, 1, 1], [], []>} : vector<16x64xbf16>, vector<64x64xbf16>, vector<16x64xf32> -> vector<16x64xf32>
    %42 = vector.broadcast %39 : vector<1x64xf32> to vector<16x64xf32>
    %43 = arith.addf %41, %42 : vector<16x64xf32>
    %c0_21 = arith.constant 0 : index
    %c0_22 = arith.constant 0 : index
    %44 = vector.load %arg8[%c0_21, %c0_22] : memref<1x64xf32, #tpu.memory_space<vmem>>, vector<1x64xf32>
    %c0_23 = arith.constant 0 : index
    %c0_24 = arith.constant 0 : index
    %45 = vector.load %arg9[%c0_23, %c0_24] : memref<1x64xf32, #tpu.memory_space<vmem>>, vector<1x64xf32>
    %cst_25 = arith.constant dense<0.000000e+00> : vector<16xf32>
    %46 = vector.multi_reduction <add>, %43, %cst_25 [1] : vector<16x64xf32> to vector<16xf32>
    %47 = vector.shape_cast %46 : vector<16xf32> to vector<16x1xf32>
    %cst_26 = arith.constant 6.400000e+01 : f32
    %48 = vector.broadcast %cst_26 : f32 to vector<16x1xf32>
    %49 = arith.divf %47, %48 : vector<16x1xf32>
    %50 = arith.mulf %43, %43 : vector<16x64xf32>
    %cst_27 = arith.constant dense<0.000000e+00> : vector<16xf32>
    %51 = vector.multi_reduction <add>, %50, %cst_27 [1] : vector<16x64xf32> to vector<16xf32>
    %52 = vector.shape_cast %51 : vector<16xf32> to vector<16x1xf32>
    %cst_28 = arith.constant 6.400000e+01 : f32
    %53 = vector.broadcast %cst_28 : f32 to vector<16x1xf32>
    %54 = arith.divf %52, %53 : vector<16x1xf32>
    %55 = arith.mulf %49, %49 : vector<16x1xf32>
    %56 = arith.subf %54, %55 : vector<16x1xf32>
    %cst_29 = arith.constant 0.000000e+00 : f32
    %57 = vector.broadcast %cst_29 : f32 to vector<16x1xf32>
    %58 = arith.maximumf %56, %57 : vector<16x1xf32>
    %59 = vector.broadcast %49 : vector<16x1xf32> to vector<16x64xf32>
    %60 = arith.subf %43, %59 : vector<16x64xf32>
    %cst_30 = arith.constant 9.99999974E-6 : f32
    %61 = vector.broadcast %cst_30 : f32 to vector<16x1xf32>
    %62 = arith.addf %58, %61 : vector<16x1xf32>
    %63 = math.rsqrt %62 : vector<16x1xf32>
    %64 = vector.broadcast %63 : vector<16x1xf32> to vector<16x64xf32>
    %65 = arith.mulf %60, %64 : vector<16x64xf32>
    %66 = vector.broadcast %44 : vector<1x64xf32> to vector<16x64xf32>
    %67 = arith.mulf %65, %66 : vector<16x64xf32>
    %68 = vector.broadcast %45 : vector<1x64xf32> to vector<16x64xf32>
    %69 = arith.addf %67, %68 : vector<16x64xf32>
    %70 = arith.negf %69 : vector<16x64xf32>
    %71 = math.exp %70 : vector<16x64xf32>
    %cst_31 = arith.constant 1.000000e+00 : f32
    %72 = vector.broadcast %cst_31 : f32 to vector<16x64xf32>
    %73 = arith.addf %72, %71 : vector<16x64xf32>
    %74 = arith.divf %72, %73 : vector<16x64xf32>
    %75 = arith.mulf %69, %74 : vector<16x64xf32>
    %c0_32 = arith.constant 0 : index
    %c0_33 = arith.constant 0 : index
    %76 = vector.load %arg10[%c0_32, %c0_33] : memref<64x32xbf16, #tpu.memory_space<vmem>>, vector<64x32xbf16>
    %c0_34 = arith.constant 0 : index
    %c0_35 = arith.constant 0 : index
    %77 = vector.load %arg11[%c0_34, %c0_35] : memref<1x32xf32, #tpu.memory_space<vmem>>, vector<1x32xf32>
    %78 = arith.truncf %75 : vector<16x64xf32> to vector<16x64xbf16>
    %cst_36 = arith.constant dense<0.000000e+00> : vector<16x32xf32>
    %79 = tpu.matmul %78, %76, %cst_36 {dimension_numbers = #tpu.dot_dimension_numbers<[1], [0], [0], [1], [0, 0, 1, 1], [], []>} : vector<16x64xbf16>, vector<64x32xbf16>, vector<16x32xf32> -> vector<16x32xf32>
    %80 = vector.broadcast %77 : vector<1x32xf32> to vector<16x32xf32>
    %81 = arith.addf %79, %80 : vector<16x32xf32>
    %c0_37 = arith.constant 0 : index
    %c0_38 = arith.constant 0 : index
    %82 = vector.load %arg12[%c0_37, %c0_38] : memref<32x128xbf16, #tpu.memory_space<vmem>>, vector<32x128xbf16>
    %c0_39 = arith.constant 0 : index
    %c0_40 = arith.constant 0 : index
    %83 = vector.load %arg13[%c0_39, %c0_40] : memref<1x128xf32, #tpu.memory_space<vmem>>, vector<1x128xf32>
    %84 = arith.truncf %81 : vector<16x32xf32> to vector<16x32xbf16>
    %cst_41 = arith.constant dense<0.000000e+00> : vector<16x128xf32>
    %85 = tpu.matmul %84, %82, %cst_41 {dimension_numbers = #tpu.dot_dimension_numbers<[1], [0], [0], [1], [0, 0, 1, 1], [], []>} : vector<16x32xbf16>, vector<32x128xbf16>, vector<16x128xf32> -> vector<16x128xf32>
    %86 = vector.broadcast %83 : vector<1x128xf32> to vector<16x128xf32>
    %87 = arith.addf %85, %86 : vector<16x128xf32>
    %88 = arith.mulf %87, %87 : vector<16x128xf32>
    %cst_42 = arith.constant dense<0.000000e+00> : vector<16xf32>
    %89 = vector.multi_reduction <add>, %88, %cst_42 [1] : vector<16x128xf32> to vector<16xf32>
    %90 = vector.shape_cast %89 : vector<16xf32> to vector<16x1xf32>
    %cst_43 = arith.constant 1.000000e-24 : f32
    %91 = vector.broadcast %cst_43 : f32 to vector<16x1xf32>
    %92 = arith.maximumf %90, %91 : vector<16x1xf32>
    %93 = math.rsqrt %92 : vector<16x1xf32>
    %94 = vector.broadcast %93 : vector<16x1xf32> to vector<16x128xf32>
    %95 = arith.mulf %87, %94 : vector<16x128xf32>
    %c0_44 = arith.constant 0 : index
    %c0_45 = arith.constant 0 : index
    %96 = vector.load %arg14[%c0_44, %c0_45] : memref<16x128xf32, #tpu.memory_space<vmem>>, vector<16x128xf32>
    tpu.vector_store %arg14[%c0_44, %c0_45], %95 {strides = array<i32>} : memref<16x128xf32, #tpu.memory_space<vmem>>, vector<16x128xf32>,
    return
  }
  func.func @transform_0(%arg0: i32) -> (i32, i32) {
    %c0_i32 = arith.constant 0 : i32
    %c0_i32_0 = arith.constant 0 : i32
    return %arg0, %c0_i32 : i32, i32
  }
  func.func @transform_1(%arg0: i32) -> (i32, i32) {
    %c0_i32 = arith.constant 0 : i32
    %c0_i32_0 = arith.constant 0 : i32
    %c0_i32_1 = arith.constant 0 : i32
    return %c0_i32, %c0_i32_0 : i32, i32
  }
  func.func @transform_2(%arg0: i32) -> (i32, i32) {
    %c0_i32 = arith.constant 0 : i32
    %c0_i32_0 = arith.constant 0 : i32
    %c0_i32_1 = arith.constant 0 : i32
    return %c0_i32, %c0_i32_0 : i32, i32
  }
  func.func @transform_3(%arg0: i32) -> (i32, i32) {
    %c0_i32 = arith.constant 0 : i32
    %c0_i32_0 = arith.constant 0 : i32
    %c0_i32_1 = arith.constant 0 : i32
    return %c0_i32, %c0_i32_0 : i32, i32
  }
  func.func @transform_4(%arg0: i32) -> (i32, i32) {
    %c0_i32 = arith.constant 0 : i32
    %c0_i32_0 = arith.constant 0 : i32
    %c0_i32_1 = arith.constant 0 : i32
    return %c0_i32, %c0_i32_0 : i32, i32
  }
  func.func @transform_5(%arg0: i32) -> (i32, i32) {
    %c0_i32 = arith.constant 0 : i32
    %c0_i32_0 = arith.constant 0 : i32
    %c0_i32_1 = arith.constant 0 : i32
    return %c0_i32, %c0_i32_0 : i32, i32
  }
  func.func @transform_6(%arg0: i32) -> (i32, i32) {
    %c0_i32 = arith.constant 0 : i32
    %c0_i32_0 = arith.constant 0 : i32
    %c0_i32_1 = arith.constant 0 : i32
    return %c0_i32, %c0_i32_0 : i32, i32
  }
  func.func @transform_7(%arg0: i32) -> (i32, i32) {
    %c0_i32 = arith.constant 0 : i32
    %c0_i32_0 = arith.constant 0 : i32
    %c0_i32_1 = arith.constant 0 : i32
    return %c0_i32, %c0_i32_0 : i32, i32
  }
  func.func @transform_8(%arg0: i32) -> (i32, i32) {
    %c0_i32 = arith.constant 0 : i32
    %c0_i32_0 = arith.constant 0 : i32
    %c0_i32_1 = arith.constant 0 : i32
    return %c0_i32, %c0_i32_0 : i32, i32
  }
  func.func @transform_9(%arg0: i32) -> (i32, i32) {
    %c0_i32 = arith.constant 0 : i32
    %c0_i32_0 = arith.constant 0 : i32
    %c0_i32_1 = arith.constant 0 : i32
    return %c0_i32, %c0_i32_0 : i32, i32
  }
  func.func @transform_10(%arg0: i32) -> (i32, i32) {
    %c0_i32 = arith.constant 0 : i32
    %c0_i32_0 = arith.constant 0 : i32
    %c0_i32_1 = arith.constant 0 : i32
    return %c0_i32, %c0_i32_0 : i32, i32
  }
  func.func @transform_11(%arg0: i32) -> (i32, i32) {
    %c0_i32 = arith.constant 0 : i32
    %c0_i32_0 = arith.constant 0 : i32
    %c0_i32_1 = arith.constant 0 : i32
    return %c0_i32, %c0_i32_0 : i32, i32
  }
  func.func @transform_12(%arg0: i32) -> (i32, i32) {
    %c0_i32 = arith.constant 0 : i32
    %c0_i32_0 = arith.constant 0 : i32
    %c0_i32_1 = arith.constant 0 : i32
    return %c0_i32, %c0_i32_0 : i32, i32
  }
  func.func @transform_13(%arg0: i32) -> (i32, i32) {
    %c0_i32 = arith.constant 0 : i32
    %c0_i32_0 = arith.constant 0 : i32
    return %arg0, %c0_i32 : i32, i32
  }
}

</mosaic_0001>

<llo_original>
// kernel: simclr_pair_forward.5
$region0: #{simclr_pair_forward.5}
  #allocation0 [shape = 'u32[]', space=smem, size = 0x4, offset = 0x4, fixed_abs, tag = 'smem constant byte address 0x4 - core index']
  #allocation1 [shape = 'u32[144,128]{1,0:T(1,128)}', space=vmem, size = 0x12000, scoped, tag = 'internal scratch']
  %s0 = inlined_call_operand.vmem [shape: f32[32,128], index: 0, kind: input, shape index: {}]
  %s1 = inlined_call_operand.vmem [shape: f32[32,128], index: 1, kind: input, shape index: {}]
  %s2 = inlined_call_operand.vmem [shape: f32[32,1], index: 2, kind: output, shape index: {0}]
  %s3 = inlined_call_operand.hbm [shape: f32[1,32], index: 3, kind: output, shape index: {1}]
  %4 = xla_tuple %s2, %s3
  %s5 = sld [smem:[#allocation0]]
  $region26: #{simclr_pair_forward.5} parent=0
    _
  %s7 = ssub.s32 1, %s5
  %s8 = scalar_select 0, %s7, %s5
  $region1: #{simclr_pair_forward.5} parent=0
    #allocation2 [shape = 'u8[512]{0}', space=vmem, size = 0x400, scoped, tag = 'output window, operand 1, single buffered']
    #allocation3 [shape = 's32[1]{0}', space=sflag, size = 0x4, scoped, tag = 'scoped memory for simclr_pair_forward.5']
    %9 = vsyncpa [#allocation3], 0
    // Predicated region
    $region2: #{simclr_pair_forward.5} parent=1 // pred_check
      _
    $region3: #{simclr_pair_forward.5} parent=1 // pred_check_branch
      %11 = sbr.rel (0) target = $region5
    $region4: #{simclr_pair_forward.5} parent=1 // pred_region
      _
    $region5: #{simclr_pair_forward.5} parent=1 // pred_fallthru
      _
    // Predicated region
    $region6: #{simclr_pair_forward.5} parent=1 // pred_check
      _
    $region7: #{simclr_pair_forward.5} parent=1 // pred_check_branch
      %13 = sbr.rel (0) target = $region9
    $region8: #{simclr_pair_forward.5} parent=1 // pred_region
      _
    $region9: #{simclr_pair_forward.5} parent=1 // pred_fallthru
      _
    %v15 = vld [vmem:[%s0] sm:$0xff]
    %v16 = vld [vmem:[%s0 + $0x8] sm:$0xff]
    %v17 = vld [vmem:[%s0 + $0x10] sm:$0xff]
    %v18 = vld [vmem:[%s0 + $0x18] sm:$0xff]
    %v19 = vld [vmem:[%s1] sm:$0xff]
    %v20 = vld [vmem:[%s1 + $0x8] sm:$0xff]
    %v21 = vld [vmem:[%s1 + $0x10] sm:$0xff]
    %v22 = vld [vmem:[%s1 + $0x18] sm:$0xff]
    %v23 = vpack.c.bf16 %v16, %v15
    %v24 = vpack.c.bf16 %v18, %v17
    %v25 = vpack.c.bf16 %v20, %v19
    %v26 = vpack.c.bf16 %v22, %v21
    %27 = vmatprep.subr.bf16.mxu0 0
    %28 = vmatpush1.bf16.xpose.msra.mxu0 %v25
    %29 = vmatprep.subr.bf16.mxu0 0
    %30 = vmatpush1.bf16.xpose.msra.mxu0 %v26
    %31 = vmatprep.subr.bf16.mxu0 0
    %32 = vmatpush1.bf16.xpose.msra.mxu0 0
    %33 = vmatprep.subr.bf16.mxu0 0
    %34 = vmatpush1.bf16.xpose.msra.mxu0 0
    %35 = vmatprep.subr.bf16.mxu0 0
    %36 = vmatpush1.bf16.xpose.msra.mxu0 0
    %37 = vmatprep.subr.bf16.mxu0 0
    %38 = vmatpush1.bf16.xpose.msra.mxu0 0
    %39 = vmatprep.subr.bf16.mxu0 0
    %40 = vmatpush1.bf16.xpose.msra.mxu0 0
    %41 = vmatprep.subr.bf16.mxu0 0
    %42 = vmatpush1.bf16.xpose.msra.mxu0 0
    %43 = vmatprep.subr.bf16.mxu0 0
    %44 = vmatpush1.bf16.xpose.msra.mxu0 0
    %45 = vmatprep.subr.bf16.mxu0 0
    %46 = vmatpush1.bf16.xpose.msra.mxu0 0
    %47 = vmatprep.subr.bf16.mxu0 0
    %48 = vmatpush1.bf16.xpose.msra.mxu0 0
    %49 = vmatprep.subr.bf16.mxu0 0
    %50 = vmatpush1.bf16.xpose.msra.mxu0 0
    %51 = vmatprep.subr.bf16.mxu0 0
    %52 = vmatpush1.bf16.xpose.msra.mxu0 0
    %53 = vmatprep.subr.bf16.mxu0 0
    %54 = vmatpush1.bf16.xpose.msra.mxu0 0
    %55 = vmatprep.subr.bf16.mxu0 0
    %56 = vmatpush1.bf16.xpose.msra.mxu0 0
    %57 = vmatprep.subr.bf16.mxu0 0
    %58 = vmatpush1.bf16.xpose.msra.mxu0 0
    %59 = vmatprep.mubr.bf16.mxu0 0
    %60 = vmatmul.mubr.bf16.gmra.mrb[0].mxu0 %v23
    %v61 = vpop.f32.mrb[0].mxu0
    %v62 = vadd.f32 0.0, %v61
    %v63 = vpop.f32.mrb[0].mxu0
    %v64 = vpop.f32.mrb[0].mxu0
    %v65 = vadd.f32 0.0, %v64
    %v66 = vpop.f32.mrb[0].mxu0
    %67 = vmatprep.mubr.bf16.mxu0 0
    %68 = vmatmul.mubr.bf16.gmra.mrb[0].mxu0 %v24
    %v69 = vpop.f32.mrb[0].mxu0
    %v70 = vadd.f32 0.0, %v69
    %v71 = vpop.f32.mrb[0].mxu0
    %v72 = vpop.f32.mrb[0].mxu0
    %v73 = vadd.f32 0.0, %v72
    %v74 = vpop.f32.mrb[0].mxu0
    %75 = vdwg.mxu0
    %v76 = vmul.f32 %v62, 2.0
    %v77 = vmul.f32 %v65, 2.0
    %v78 = vmul.f32 %v70, 2.0
    %v79 = vmul.f32 %v73, 2.0
    %v80 = vlaneseq
    %v81 = vshrl.u32 %v80, 7
    %v82 = vadd.s32 %v81, 8
    %v83 = vadd.s32 %v81, 16
    %v84 = vadd.s32 %v81, 24
    %v85 = vlaneseq
    %v86 = vand.u32 %v85, 127
    %vm87 = vcmp.eq.s32.totalorder %v81, %v86
    %vm88 = vcmp.eq.s32.totalorder %v82, %v86
    %vm89 = vcmp.eq.s32.totalorder %v83, %v86
    %vm90 = vcmp.eq.s32.totalorder %v84, %v86
    %v91 = vsel %vm87, -1e+30, %v76
    %v92 = vsel %vm88, -1e+30, %v77
    %v93 = vsel %vm89, -1e+30, %v78
    %v94 = vsel %vm90, -1e+30, %v79
    %v95 = vmul.f32 %v15, %v19
    %v96 = vmul.f32 %v16, %v20
    %v97 = vmul.f32 %v17, %v21
    %v98 = vmul.f32 %v18, %v22
    %99 = vadd.xlane.f32.xlu0 %v95
    %v100 = vpop.xlane.xlu0 %99
    %101 = vadd.xlane.f32.xlu0 %v96
    %v102 = vpop.xlane.xlu0 %101
    %103 = vadd.xlane.f32.xlu0 %v97
    %v104 = vpop.xlane.xlu0 %103
    %105 = vadd.xlane.f32.xlu0 %v98
    %v106 = vpop.xlane.xlu0 %105
    %v107 = vmul.f32 %v100, 2.0
    %v108 = vmul.f32 %v102, 2.0
    %v109 = vmul.f32 %v104, 2.0
    %v110 = vmul.f32 %v106, 2.0
    %vm111 = vcmask 261120
    %v112 = vsel %vm111, %v91, -inf
    %113 = vmax.xlane.f32.xlu0 %v112
    %v114 = vpop.xlane.xlu0 %113
    %v115 = vsel %vm111, %v92, -inf
    %116 = vmax.xlane.f32.xlu0 %v115
    %v117 = vpop.xlane.xlu0 %116
    %v118 = vsel %vm111, %v93, -inf
    %119 = vmax.xlane.f32.xlu0 %v118
    %v120 = vpop.xlane.xlu0 %119
    %v121 = vsel %vm111, %v94, -inf
    %122 = vmax.xlane.f32.xlu0 %v121
    %v123 = vpop.xlane.xlu0 %122
    %v124 = vsub.f32 %v91, %v114
    %v125 = vsub.f32 %v92, %v117
    %v126 = vsub.f32 %v93, %v120
    %v127 = vsub.f32 %v94, %v123
    %v128 = vmul.f32 %v124, 1.442695
    %v129 = vpow.pop %v128
    %v130 = vmul.f32 %v125, 1.442695
    %v131 = vpow.pop %v130
    %v132 = vmul.f32 %v126, 1.442695
    %v133 = vpow.pop %v132
    %v134 = vmul.f32 %v127, 1.442695
    %v135 = vpow.pop %v134
    %v136 = vsel %vm111, %v129, 0.0
    %137 = vadd.xlane.f32.xlu0 %v136
    %v138 = vpop.xlane.xlu0 %137
    %v139 = vsel %vm111, %v131, 0.0
    %140 = vadd.xlane.f32.xlu0 %v139
    %v141 = vpop.xlane.xlu0 %140
    %v142 = vsel %vm111, %v133, 0.0
    %143 = vadd.xlane.f32.xlu0 %v142
    %v144 = vpop.xlane.xlu0 %143
    %v145 = vsel %vm111, %v135, 0.0
    %146 = vadd.xlane.f32.xlu0 %v145
    %v147 = vpop.xlane.xlu0 %146
    %v148 = vlog2.pop %v138
    %v149 = vmul.f32 %v148, 0.6931472
    %v150 = vlog2.pop %v141
    %v151 = vmul.f32 %v150, 0.6931472
    %v152 = vlog2.pop %v144
    %v153 = vmul.f32 %v152, 0.6931472
    %v154 = vlog2.pop %v147
    %v155 = vmul.f32 %v154, 0.6931472
    %v156 = vadd.f32 %v114, %v149
    %v157 = vadd.f32 %v117, %v151
    %v158 = vadd.f32 %v120, %v153
    %v159 = vadd.f32 %v123, %v155
    %v160 = vsub.f32 %v156, %v107
    %v161 = vsub.f32 %v157, %v108
    %v162 = vsub.f32 %v158, %v109
    %v163 = vsub.f32 %v159, %v110
    %vm164 = vcmask 7168
    %165 = vst.msk [vmem:[%s2] sm:$0xff] %vm164, %v160
    %166 = vst.msk [vmem:[%s2 + $0x8] sm:$0xff] %vm164, %v161
    %167 = vst.msk [vmem:[%s2 + $0x10] sm:$0xff] %vm164, %v162
    %168 = vst.msk [vmem:[%s2 + $0x18] sm:$0xff] %vm164, %v163
    %v169 = vsel %vm87, %v76, 0.0
    %v170 = vsel %vm88, %v77, 0.0
    %v171 = vsel %vm89, %v78, 0.0
    %v172 = vsel %vm90, %v79, 0.0
    %v173 = vsel %vm111, %v169, 0.0
    %v174 = vsel %vm111, %v170, 0.0
    %v175 = vadd.f32 %v173, %v174
    %v176 = vsel %vm111, %v171, 0.0
    %v177 = vadd.f32 %v175, %v176
    %v178 = vsel %vm111, %v172, 0.0
    %v179 = vadd.f32 %v177, %v178
    %v180 = vrot.slane %v179, 4
    %v181 = vadd.f32 %v179, %v180
    %v182 = vrot.slane %v181, 2
    %v183 = vadd.f32 %v181, %v182
    %v184 = vrot.slane %v183, 1
    %v185 = vadd.f32 %v183, %v184
    %v186 = vmax.f32 %v112, %v115
    %v187 = vmax.f32 %v118, %v121
    %v188 = vmax.f32 %v186, %v187
    %v189 = vrot.slane %v188, 4
    %v190 = vmax.f32 %v188, %v189
    %v191 = vrot.slane %v190, 2
    %v192 = vmax.f32 %v190, %v191
    %v193 = vrot.slane %v192, 1
    %v194 = vmax.f32 %v192, %v193
    %v195 = vsub.f32 %v91, %v194
    %v196 = vsub.f32 %v92, %v194
    %v197 = vsub.f32 %v93, %v194
    %v198 = vsub.f32 %v94, %v194
    %v199 = vmul.f32 %v195, 1.442695
    %v200 = vpow.pop %v199
    %v201 = vmul.f32 %v196, 1.442695
    %v202 = vpow.pop %v201
    %v203 = vmul.f32 %v197, 1.442695
    %v204 = vpow.pop %v203
    %v205 = vmul.f32 %v198, 1.442695
    %v206 = vpow.pop %v205
    %v207 = vsel %vm111, %v200, 0.0
    %v208 = vsel %vm111, %v202, 0.0
    %v209 = vadd.f32 %v207, %v208
    %v210 = vsel %vm111, %v204, 0.0
    %v211 = vadd.f32 %v209, %v210
    %v212 = vsel %vm111, %v206, 0.0
    %v213 = vadd.f32 %v211, %v212
    %v214 = vrot.slane %v213, 4
    %v215 = vadd.f32 %v213, %v214
    %v216 = vrot.slane %v215, 2
    %v217 = vadd.f32 %v215, %v216
    %v218 = vrot.slane %v217, 1
    %v219 = vadd.f32 %v217, %v218
    %v220 = vlog2.pop %v219
    %v221 = vmul.f32 %v220, 0.6931472
    %v222 = vadd.f32 %v194, %v221
    %v223 = vsub.f32 %v222, %v185
    %vm224 = vcmask 253952
    %225 = vst.msk [vmem:[#allocation2] sm:$0x1] %vm224, %v223
    // Predicated region
    $region10: #{simclr_pair_forward.5} parent=1 // pred_check
      _
    $region11: #{simclr_pair_forward.5} parent=1 // pred_check_branch
      %227 = sbr.rel (0) target = $region13
    $region12: #{simclr_pair_forward.5} parent=1 // pred_region
      _
    $region13: #{simclr_pair_forward.5} parent=1 // pred_fallthru
      _
    // Predicated region
    $region14: #{simclr_pair_forward.5} parent=1 // pred_check
      _
    $region15: #{simclr_pair_forward.5} parent=1 // pred_check_branch
      %229 = sbr.rel (0) target = $region17
    $region16: #{simclr_pair_forward.5} parent=1 // pred_region
      %s231 = ssub.s32 16, 16
      %232 = vsyncadd [#allocation3], %s231
      %s234 = sshll.u32 [#allocation2], 4
      %s235 = int_to_ptr.vmem [resolvable:$true] %s234
      %237 = dma.vmem_to_hbm [thread:$0]  %s235, 16, %s3, [#allocation3]
    $region17: #{simclr_pair_forward.5} parent=1 // pred_fallthru
      _
    // Predicated region
    $region18: #{simclr_pair_forward.5} parent=1 // pred_check
      _
    $region19: #{simclr_pair_forward.5} parent=1 // pred_check_branch
      %239 = sbr.rel (0) target = $region21
    $region20: #{simclr_pair_forward.5} parent=1 // pred_region
      _
    $region21: #{simclr_pair_forward.5} parent=1 // pred_fallthru
      _
    // Predicated region
    $region22: #{simclr_pair_forward.5} parent=1 // pred_check
      _
    $region23: #{simclr_pair_forward.5} parent=1 // pred_check_branch
      %241 = sbr.rel (0) target = $region25
    $region24: #{simclr_pair_forward.5} parent=1 // pred_region
      %242 = dma.done [#allocation3], 16
    $region25: #{simclr_pair_forward.5} parent=1 // pred_fallthru
      _
    %243 = vsyncpa [#allocation3], 1

// kernel: simclr_pair_forward.4
$region0: #{simclr_pair_forward.4}
  #allocation0 [shape = 'u32[]', space=smem, size = 0x4, offset = 0x4, fixed_abs, tag = 'smem constant byte address 0x4 - core index']
  #allocation1 [shape = 'u32[144,128]{1,0:T(1,128)}', space=vmem, size = 0x12000, scoped, tag = 'internal scratch']
  %s0 = inlined_call_operand.vmem [shape: bf16[32,48], index: 0, kind: input, shape index: {}]
  %s1 = inlined_call_operand.vmem [shape: bf16[48,64], index: 1, kind: input, shape index: {}]
  %s2 = inlined_call_operand.vmem [shape: f32[1,64], index: 2, kind: input, shape index: {}]
  %s3 = inlined_call_operand.vmem [shape: f32[1,64], index: 3, kind: input, shape index: {}, may-alias: {3,7}]
  %s4 = inlined_call_operand.vmem [shape: f32[1,64], index: 4, kind: input, shape index: {}, may-alias: {4,8}]
  %s5 = inlined_call_operand.vmem [shape: bf16[64,64], index: 5, kind: input, shape index: {}]
  %s6 = inlined_call_operand.vmem [shape: f32[1,64], index: 6, kind: input, shape index: {}]
  %s7 = inlined_call_operand.vmem [shape: f32[1,64], index: 7, kind: input, shape index: {}, may-alias: {3,7}]
  %s8 = inlined_call_operand.vmem [shape: f32[1,64], index: 8, kind: input, shape index: {}, may-alias: {4,8}]
  %s9 = inlined_call_operand.vmem [shape: bf16[64,32], index: 9, kind: input, shape index: {}]
  %s10 = inlined_call_operand.vmem [shape: f32[1,32], index: 10, kind: input, shape index: {}]
  %s11 = inlined_call_operand.vmem [shape: bf16[32,128], index: 11, kind: input, shape index: {}]
  %s12 = inlined_call_operand.vmem [shape: f32[1,128], index: 12, kind: input, shape index: {}]
  %s13 = inlined_call_operand.vmem [shape: f32[32,128], index: 13, kind: output, shape index: {}]
  %s14 = sld [smem:[#allocation0]]
  $region85: #{simclr_pair_forward.4} parent=0
    _
  %s16 = ssub.s32 1, %s14
  %s17 = scalar_select 0, %s16, %s14
  loop: start=0, step=1, limit=4
  $region2: #{simclr_pair_forward.4} parent=0 // loop_pre_header
    _
  $region3: #{simclr_pair_forward.4} parent=0 // loop_header
    %s19 = sphi 0, %s23
    %p20 = scmp.ge.s32.totalorder %s19, 4
    %s29 = sphi 0, %s31
    %s32 = sphi 0, %s29
    %s33 = sphi 0, %s32
    %s49 = sphi 0, %s33
    %s53 = sphi 0, %s53
    %s55 = sphi 0, %s53
    %s56 = sphi 0, %s55
    %s70 = sphi 0, %s56
    %s74 = sphi 0, %s74
    %s76 = sphi 0, %s74
    %s77 = sphi 0, %s76
    %s91 = sphi 0, %s77
    %s95 = sphi 0, %s95
    %s97 = sphi 0, %s95
    %s98 = sphi 0, %s97
    %s112 = sphi 0, %s98
    %s116 = sphi 0, %s116
    %s118 = sphi 0, %s116
    %s119 = sphi 0, %s118
    %s133 = sphi 0, %s119
    %s137 = sphi 0, %s137
    %s139 = sphi 0, %s137
    %s140 = sphi 0, %s139
    %s154 = sphi 0, %s140
    %s158 = sphi 0, %s158
    %s160 = sphi 0, %s158
    %s161 = sphi 0, %s160
    %s175 = sphi 0, %s161
    %s179 = sphi 0, %s179
    %s181 = sphi 0, %s179
    %s182 = sphi 0, %s181
    %s196 = sphi 0, %s182
    %s200 = sphi 0, %s200
    %s202 = sphi 0, %s200
    %s203 = sphi 0, %s202
    %s217 = sphi 0, %s203
    %s221 = sphi 0, %s221
    %s223 = sphi 0, %s221
    %s224 = sphi 0, %s223
    %s238 = sphi 0, %s224
    %s242 = sphi 0, %s242
    %s244 = sphi 0, %s242
    %s245 = sphi 0, %s244
    %s259 = sphi 0, %s245
    %s263 = sphi 0, %s263
    %s265 = sphi 0, %s263
    %s266 = sphi 0, %s265
    %s280 = sphi 0, %s266
    %s284 = sphi 0, %s284
    %s286 = sphi 0, %s284
    %s287 = sphi 0, %s286
    %s301 = sphi 0, %s287
    %s307 = sphi 0, %s309
    %s310 = sphi 0, %s307
    %s311 = sphi 0, %s310
    %s327 = sphi 0, %s311
  $region4: #{simclr_pair_forward.4} parent=0 // loop_header_branch
    %22 = sbr.rel (%p20) target = $region8
  $region5: #{simclr_pair_forward.4} parent=0 // loop_body
    %s24 = ssub.s32 %s19, 1
    %s25 = ssub.s32 %s19, 2
    %s26 = sadd.s32 %s19, 1
    %s27 = ssub.s32 %s19, %s26
    %p28 = scmp.eq.s32.totalorder %s27, 0
    %s30 = sadd.s32 %s29, 1
    %s31 = scalar_select %p28, %s29, %s30
    %p34 = pneg %p28
    %p35 = scmp.eq.s32.totalorder %s19, 1
    %p36 = por %p34, %p35
    %p37 = scmp.ne.s32.totalorder %s29, %s32
    %p38 = scmp.eq.s32.totalorder %s19, 0
    %p39 = por %p37, %p38
    %p40 = scmp.ne.s32.totalorder %s29, %s32
    %p41 = scmp.eq.s32.totalorder %s24, 1
    %p42 = por %p40, %p41
    %p43 = scmp.ne.s32.totalorder %s32, %s33
    %p44 = scmp.eq.s32.totalorder %s24, 0
    %p45 = por %p43, %p44
    %p46 = scmp.ne.s32.totalorder %s32, %s33
    %p47 = scmp.eq.s32.totalorder %s25, 1
    %p48 = por %p46, %p47
    %p50 = scmp.ne.s32.totalorder %s33, %s49
    %p51 = scmp.eq.s32.totalorder %s25, 0
    %p52 = por %p50, %p51
    %s54 = sadd.s32 %s53, 1
    %p57 = scmp.eq.s32.totalorder %s19, 1
    %p58 = scmp.ne.s32.totalorder %s53, %s55
    %p59 = scmp.eq.s32.totalorder %s19, 0
    %p60 = por %p58, %p59
    %p61 = scmp.ne.s32.totalorder %s53, %s55
    %p62 = scmp.eq.s32.totalorder %s24, 1
    %p63 = por %p61, %p62
    %p64 = scmp.ne.s32.totalorder %s55, %s56
    %p65 = scmp.eq.s32.totalorder %s24, 0
    %p66 = por %p64, %p65
    %p67 = scmp.ne.s32.totalorder %s55, %s56
    %p68 = scmp.eq.s32.totalorder %s25, 1
    %p69 = por %p67, %p68
    %p71 = scmp.ne.s32.totalorder %s56, %s70
    %p72 = scmp.eq.s32.totalorder %s25, 0
    %p73 = por %p71, %p72
    %s75 = sadd.s32 %s74, 1
    %p78 = scmp.eq.s32.totalorder %s19, 1
    %p79 = scmp.ne.s32.totalorder %s74, %s76
    %p80 = scmp.eq.s32.totalorder %s19, 0
    %p81 = por %p79, %p80
    %p82 = scmp.ne.s32.totalorder %s74, %s76
    %p83 = scmp.eq.s32.totalorder %s24, 1
    %p84 = por %p82, %p83
    %p85 = scmp.ne.s32.totalorder %s76, %s77
    %p86 = scmp.eq.s32.totalorder %s24, 0
    %p87 = por %p85, %p86
    %p88 = scmp.ne.s32.totalorder %s76, %s77
    %p89 = scmp.eq.s32.totalorder %s25, 1
    %p90 = por %p88, %p89
    %p92 = scmp.ne.s32.totalorder %s77, %s91
    %p93 = scmp.eq.s32.totalorder %s25, 0
    %p94 = por %p92, %p93
    %s96 = sadd.s32 %s95, 1
    %p99 = scmp.eq.s32.totalorder %s19, 1
    %p100 = scmp.ne.s32.totalorder %s95, %s97
    %p101 = scmp.eq.s32.totalorder %s19, 0
    %p102 = por %p100, %p101
    %p103 = scmp.ne.s32.totalorder %s95, %s97
    %p104 = scmp.eq.s32.totalorder %s24, 1
    %p105 = por %p103, %p104
    %p106 = scmp.ne.s32.totalorder %s97, %s98
    %p107 = scmp.eq.s32.totalorder %s24, 0
    %p108 = por %p106, %p107
    %p109 = scmp.ne.s32.totalorder %s97, %s98
    %p110 = scmp.eq.s32.totalorder %s25, 1
    %p111 = por %p109, %p110
    %p113 = scmp.ne.s32.totalorder %s98, %s112
    %p114 = scmp.eq.s32.totalorder %s25, 0
    %p115 = por %p113, %p114
    %s117 = sadd.s32 %s116, 1
    %p120 = scmp.eq.s32.totalorder %s19, 1
    %p121 = scmp.ne.s32.totalorder %s116, %s118
    %p122 = scmp.eq.s32.totalorder %s19, 0
    %p123 = por %p121, %p122
    %p124 = scmp.ne.s32.totalorder %s116, %s118
    %p125 = scmp.eq.s32.totalorder %s24, 1
    %p126 = por %p124, %p125
    %p127 = scmp.ne.s32.totalorder %s118, %s119
    %p128 = scmp.eq.s32.totalorder %s24, 0
    %p129 = por %p127, %p128
    %p130 = scmp.ne.s32.totalorder %s118, %s119
    %p131 = scmp.eq.s32.totalorder %s25, 1
    %p132 = por %p130, %p131
    %p134 = scmp.ne.s32.totalorder %s119, %s133
    %p135 = scmp.eq.s32.totalorder %s25, 0
    %p136 = por %p134, %p135
    %s138 = sadd.s32 %s137, 1
    %p141 = scmp.eq.s32.totalorder %s19, 1
    %p142 = scmp.ne.s32.totalorder %s137, %s139
    %p143 = scmp.eq.s32.totalorder %s19, 0
    %p144 = por %p142, %p143
    %p145 = scmp.ne.s32.totalorder %s137, %s139
    %p146 = scmp.eq.s32.totalorder %s24, 1
    %p147 = por %p145, %p146
    %p148 = scmp.ne.s32.totalorder %s139, %s140
    %p149 = scmp.eq.s32.totalorder %s24, 0
    %p150 = por %p148, %p149
    %p151 = scmp.ne.s32.totalorder %s139, %s140
    %p152 = scmp.eq.s32.totalorder %s25, 1
    %p153 = por %p151, %p152
    %p155 = scmp.ne.s32.totalorder %s140, %s154
    %p156 = scmp.eq.s32.totalorder %s25, 0
    %p157 = por %p155, %p156
    %s159 = sadd.s32 %s158, 1
    %p162 = scmp.eq.s32.totalorder %s19, 1
    %p163 = scmp.ne.s32.totalorder %s158, %s160
    %p164 = scmp.eq.s32.totalorder %s19, 0
    %p165 = por %p163, %p164
    %p166 = scmp.ne.s32.totalorder %s158, %s160
    %p167 = scmp.eq.s32.totalorder %s24, 1
    %p168 = por %p166, %p167
    %p169 = scmp.ne.s32.totalorder %s160, %s161
    %p170 = scmp.eq.s32.totalorder %s24, 0
    %p171 = por %p169, %p170
    %p172 = scmp.ne.s32.totalorder %s160, %s161
    %p173 = scmp.eq.s32.totalorder %s25, 1
    %p174 = por %p172, %p173
    %p176 = scmp.ne.s32.totalorder %s161, %s175
    %p177 = scmp.eq.s32.totalorder %s25, 0
    %p178 = por %p176, %p177
    %s180 = sadd.s32 %s179, 1
    %p183 = scmp.eq.s32.totalorder %s19, 1
    %p184 = scmp.ne.s32.totalorder %s179, %s181
    %p185 = scmp.eq.s32.totalorder %s19, 0
    %p186 = por %p184, %p185
    %p187 = scmp.ne.s32.totalorder %s179, %s181
    %p188 = scmp.eq.s32.totalorder %s24, 1
    %p189 = por %p187, %p188
    %p190 = scmp.ne.s32.totalorder %s181, %s182
    %p191 = scmp.eq.s32.totalorder %s24, 0
    %p192 = por %p190, %p191
    %p193 = scmp.ne.s32.totalorder %s181, %s182
    %p194 = scmp.eq.s32.totalorder %s25, 1
    %p195 = por %p193, %p194
    %p197 = scmp.ne.s32.totalorder %s182, %s196
    %p198 = scmp.eq.s32.totalorder %s25, 0
    %p199 = por %p197, %p198
    %s201 = sadd.s32 %s200, 1
    %p204 = scmp.eq.s32.totalorder %s19, 1
    %p205 = scmp.ne.s32.totalorder %s200, %s202
    %p206 = scmp.eq.s32.totalorder %s19, 0
    %p207 = por %p205, %p206
    %p208 = scmp.ne.s32.totalorder %s200, %s202
    %p209 = scmp.eq.s32.totalorder %s24, 1
    %p210 = por %p208, %p209
    %p211 = scmp.ne.s32.totalorder %s202, %s203
    %p212 = scmp.eq.s32.totalorder %s24, 0
    %p213 = por %p211, %p212
    %p214 = scmp.ne.s32.totalorder %s202, %s203
    %p215 = scmp.eq.s32.totalorder %s25, 1
    %p216 = por %p214, %p215
    %p218 = scmp.ne.s32.totalorder %s203, %s217
    %p219 = scmp.eq.s32.totalorder %s25, 0
    %p220 = por %p218, %p219
    %s222 = sadd.s32 %s221, 1
    %p225 = scmp.eq.s32.totalorder %s19, 1
    %p226 = scmp.ne.s32.totalorder %s221, %s223
    %p227 = scmp.eq.s32.totalorder %s19, 0
    %p228 = por %p226, %p227
    %p229 = scmp.ne.s32.totalorder %s221, %s223
    %p230 = scmp.eq.s32.totalorder %s24, 1
    %p231 = por %p229, %p230
    %p232 = scmp.ne.s32.totalorder %s223, %s224
    %p233 = scmp.eq.s32.totalorder %s24, 0
    %p234 = por %p232, %p233
    %p235 = scmp.ne.s32.totalorder %s223, %s224
    %p236 = scmp.eq.s32.totalorder %s25, 1
    %p237 = por %p235, %p236
    %p239 = scmp.ne.s32.totalorder %s224, %s238
    %p240 = scmp.eq.s32.totalorder %s25, 0
    %p241 = por %p239, %p240
    %s243 = sadd.s32 %s242, 1
    %p246 = scmp.eq.s32.totalorder %s19, 1
    %p247 = scmp.ne.s32.totalorder %s242, %s244
    %p248 = scmp.eq.s32.totalorder %s19, 0
    %p249 = por %p247, %p248
    %p250 = scmp.ne.s32.totalorder %s242, %s244
    %p251 = scmp.eq.s32.totalorder %s24, 1
    %p252 = por %p250, %p251
    %p253 = scmp.ne.s32.totalorder %s244, %s245
    %p254 = scmp.eq.s32.totalorder %s24, 0
    %p255 = por %p253, %p254
    %p256 = scmp.ne.s32.totalorder %s244, %s245
    %p257 = scmp.eq.s32.totalorder %s25, 1
    %p258 = por %p256, %p257
    %p260 = scmp.ne.s32.totalorder %s245, %s259
    %p261 = scmp.eq.s32.totalorder %s25, 0
    %p262 = por %p260, %p261
    %s264 = sadd.s32 %s263, 1
    %p267 = scmp.eq.s32.totalorder %s19, 1
    %p268 = scmp.ne.s32.totalorder %s263, %s265
    %p269 = scmp.eq.s32.totalorder %s19, 0
    %p270 = por %p268, %p269
    %p271 = scmp.ne.s32.totalorder %s263, %s265
    %p272 = scmp.eq.s32.totalorder %s24, 1
    %p273 = por %p271, %p272
    %p274 = scmp.ne.s32.totalorder %s265, %s266
    %p275 = scmp.eq.s32.totalorder %s24, 0
    %p276 = por %p274, %p275
    %p277 = scmp.ne.s32.totalorder %s265, %s266
    %p278 = scmp.eq.s32.totalorder %s25, 1
    %p279 = por %p277, %p278
    %p281 = scmp.ne.s32.totalorder %s266, %s280
    %p282 = scmp.eq.s32.totalorder %s25, 0
    %p283 = por %p281, %p282
    %s285 = sadd.s32 %s284, 1
    %p288 = scmp.eq.s32.totalorder %s19, 1
    %p289 = scmp.ne.s32.totalorder %s284, %s286
    %p290 = scmp.eq.s32.totalorder %s19, 0
    %p291 = por %p289, %p290
    %p292 = scmp.ne.s32.totalorder %s284, %s286
    %p293 = scmp.eq.s32.totalorder %s24, 1
    %p294 = por %p292, %p293
    %p295 = scmp.ne.s32.totalorder %s286, %s287
    %p296 = scmp.eq.s32.totalorder %s24, 0
    %p297 = por %p295, %p296
    %p298 = scmp.ne.s32.totalorder %s286, %s287
    %p299 = scmp.eq.s32.totalorder %s25, 1
    %p300 = por %p298, %p299
    %p302 = scmp.ne.s32.totalorder %s287, %s301
    %p303 = scmp.eq.s32.totalorder %s25, 0
    %p304 = por %p302, %p303
    %s305 = ssub.s32 %s19, %s26
    %p306 = scmp.eq.s32.totalorder %s305, 0
    %s308 = sadd.s32 %s307, 1
    %s309 = scalar_select %p306, %s307, %s308
    %p312 = pneg %p306
    %p313 = scmp.eq.s32.totalorder %s19, 1
    %p314 = por %p312, %p313
    %p315 = scmp.ne.s32.totalorder %s307, %s310
    %p316 = scmp.eq.s32.totalorder %s19, 0
    %p317 = por %p315, %p316
    %p318 = scmp.ne.s32.totalorder %s307, %s310
    %p319 = scmp.eq.s32.totalorder %s24, 1
    %p320 = por %p318, %p319
    %p321 = scmp.ne.s32.totalorder %s310, %s311
    %p322 = scmp.eq.s32.totalorder %s24, 0
    %p323 = por %p321, %p322
    %p324 = scmp.ne.s32.totalorder %s310, %s311
    %p325 = scmp.eq.s32.totalorder %s25, 1
    %p326 = por %p324, %p325
    %p328 = scmp.ne.s32.totalorder %s311, %s327
    %p329 = scmp.eq.s32.totalorder %s25, 0
    %p330 = por %p328, %p329
    %p331 = scmp.le.s32.totalorder 1, %s19
    %p332 = scmp.lt.s32.totalorder %s19, 3
    %p333 = pnand %p331, %p332
    %p334 = pneg %p333
    // Predicated region
    $region9: #{simclr_pair_forward.4} parent=5 // pred_check
      _
    $region10: #{simclr_pair_forward.4} parent=5 // pred_check_branch
      %336 = sbr.rel (%p333) target = $region12
    $region11: #{simclr_pair_forward.4} parent=5 // pred_region
      %s337 = ssub.s32 %s19, 1
      // Predicated region
      $region13: #{simclr_pair_forward.4} parent=11 // pred_check
        %p338 = pneg %p66
      $region14: #{simclr_pair_forward.4} parent=11 // pred_check_branch
        %340 = sbr.rel (%p338) target = $region16
      $region15: #{simclr_pair_forward.4} parent=11 // pred_region
        _
      $region16: #{simclr_pair_forward.4} parent=11 // pred_fallthru
        _
      // Predicated region
      $region17: #{simclr_pair_forward.4} parent=11 // pred_check
        %p341 = pneg %p87
      $region18: #{simclr_pair_forward.4} parent=11 // pred_check_branch
        %343 = sbr.rel (%p341) target = $region20
      $region19: #{simclr_pair_forward.4} parent=11 // pred_region
        _
      $region20: #{simclr_pair_forward.4} parent=11 // pred_fallthru
        _
      // Predicated region
      $region21: #{simclr_pair_forward.4} parent=11 // pred_check
        %p344 = pneg %p108
      $region22: #{simclr_pair_forward.4} parent=11 // pred_check_branch
        %346 = sbr.rel (%p344) target = $region24
      $region23: #{simclr_pair_forward.4} parent=11 // pred_region
        _
      $region24: #{simclr_pair_forward.4} parent=11 // pred_fallthru
        _
      // Predicated region
      $region25: #{simclr_pair_forward.4} parent=11 // pred_check
        %p347 = pneg %p129
      $region26: #{simclr_pair_forward.4} parent=11 // pred_check_branch
        %349 = sbr.rel (%p347) target = $region28
      $region27: #{simclr_pair_forward.4} parent=11 // pred_region
        _
      $region28: #{simclr_pair_forward.4} parent=11 // pred_fallthru
        _
      // Predicated region
      $region29: #{simclr_pair_forward.4} parent=11 // pred_check
        %p350 = pneg %p150
      $region30: #{simclr_pair_forward.4} parent=11 // pred_check_branch
        %352 = sbr.rel (%p350) target = $region32
      $region31: #{simclr_pair_forward.4} parent=11 // pred_region
        _
      $region32: #{simclr_pair_forward.4} parent=11 // pred_fallthru
        _
      // Predicated region
      $region33: #{simclr_pair_forward.4} parent=11 // pred_check
        %p353 = pneg %p171
      $region34: #{simclr_pair_forward.4} parent=11 // pred_check_branch
        %355 = sbr.rel (%p353) target = $region36
      $region35: #{simclr_pair_forward.4} parent=11 // pred_region
        _
      $region36: #{simclr_pair_forward.4} parent=11 // pred_fallthru
        _
      // Predicated region
      $region37: #{simclr_pair_forward.4} parent=11 // pred_check
        %p356 = pneg %p192
      $region38: #{simclr_pair_forward.4} parent=11 // pred_check_branch
        %358 = sbr.rel (%p356) target = $region40
      $region39: #{simclr_pair_forward.4} parent=11 // pred_region
        _
      $region40: #{simclr_pair_forward.4} parent=11 // pred_fallthru
        _
      // Predicated region
      $region41: #{simclr_pair_forward.4} parent=11 // pred_check
        %p359 = pneg %p213
      $region42: #{simclr_pair_forward.4} parent=11 // pred_check_branch
        %361 = sbr.rel (%p359) target = $region44
      $region43: #{simclr_pair_forward.4} parent=11 // pred_region
        _
      $region44: #{simclr_pair_forward.4} parent=11 // pred_fallthru
        _
      // Predicated region
      $region45: #{simclr_pair_forward.4} parent=11 // pred_check
        %p362 = pneg %p234
      $region46: #{simclr_pair_forward.4} parent=11 // pred_check_branch
        %364 = sbr.rel (%p362) target = $region48
      $region47: #{simclr_pair_forward.4} parent=11 // pred_region
        _
      $region48: #{simclr_pair_forward.4} parent=11 // pred_fallthru
        _
      // Predicated region
      $region49: #{simclr_pair_forward.4} parent=11 // pred_check
        %p365 = pneg %p255
      $region50: #{simclr_pair_forward.4} parent=11 // pred_check_branch
        %367 = sbr.rel (%p365) target = $region52
      $region51: #{simclr_pair_forward.4} parent=11 // pred_region
        _
      $region52: #{simclr_pair_forward.4} parent=11 // pred_fallthru
        _
      // Predicated region
      $region53: #{simclr_pair_forward.4} parent=11 // pred_check
        %p368 = pneg %p276
      $region54: #{simclr_pair_forward.4} parent=11 // pred_check_branch
        %370 = sbr.rel (%p368) target = $region56
      $region55: #{simclr_pair_forward.4} parent=11 // pred_region
        _
      $region56: #{simclr_pair_forward.4} parent=11 // pred_fallthru
        _
      // Predicated region
      $region57: #{simclr_pair_forward.4} parent=11 // pred_check
        %p371 = pneg %p297
      $region58: #{simclr_pair_forward.4} parent=11 // pred_check_branch
        %373 = sbr.rel (%p371) target = $region60
      $region59: #{simclr_pair_forward.4} parent=11 // pred_region
        _
      $region60: #{simclr_pair_forward.4} parent=11 // pred_fallthru
        _
    $region12: #{simclr_pair_forward.4} parent=5 // pred_fallthru
      _
    %p374 = scmp.lt.s32.totalorder %s19, 2
    // Predicated region
    $region61: #{simclr_pair_forward.4} parent=5 // pred_check
      %p375 = pneg %p374
    $region62: #{simclr_pair_forward.4} parent=5 // pred_check_branch
      %377 = sbr.rel (%p375) target = $region64
    $region63: #{simclr_pair_forward.4} parent=5 // pred_region
      // Predicated region
      $region65: #{simclr_pair_forward.4} parent=63 // pred_check
        %p378 = pneg %p39
      $region66: #{simclr_pair_forward.4} parent=63 // pred_check_branch
        %380 = sbr.rel (%p378) target = $region68
      $region67: #{simclr_pair_forward.4} parent=63 // pred_region
        %s381 = smul.u32 2, %s19
        %p382 = scmp.lt.s32.totalorder %s381, 3
        %s383 = scalar_select %p382, %s381, 3
        %s384 = smul.addr %s383, 4
        %s385 = scalar_lea.vmem %s0, %s384
        %s386 = smul.u32 2, %s19
      $region68: #{simclr_pair_forward.4} parent=63 // pred_fallthru
        _
    $region64: #{simclr_pair_forward.4} parent=5 // pred_fallthru
      _
    %p387 = scmp.le.s32.totalorder 1, %s19
    %p388 = scmp.lt.s32.totalorder %s19, 3
    %p389 = pnand %p387, %p388
    %p390 = pneg %p389
    // Predicated region
    $region69: #{simclr_pair_forward.4} parent=5 // pred_check
      _
    $region70: #{simclr_pair_forward.4} parent=5 // pred_check_branch
      %392 = sbr.rel (%p389) target = $region72
    $region71: #{simclr_pair_forward.4} parent=5 // pred_region
      %s393 = ssub.s32 %s19, 1
      %s394 = smul.u32 2, %s24
      %p395 = scmp.lt.s32.totalorder %s394, 3
      %s396 = scalar_select %p395, %s394, 3
      %s397 = smul.addr %s396, 4
      %s398 = scalar_lea.vmem %s0, %s397
      %p399 = pneg %p45
      %p400 = pneg %p42
      %p401 = pneg %p66
      %p402 = pneg %p63
      %p403 = pneg %p87
      %p404 = pneg %p84
      %p405 = pneg %p108
      %p406 = pneg %p105
      %p407 = pneg %p129
      %p408 = pneg %p126
      %p409 = pneg %p150
      %p410 = pneg %p147
      %p411 = pneg %p171
      %p412 = pneg %p168
      %p413 = pneg %p192
      %p414 = pneg %p189
      %p415 = pneg %p213
      %p416 = pneg %p210
      %p417 = pneg %p234
      %p418 = pneg %p231
      %p419 = pneg %p255
      %p420 = pneg %p252
      %p421 = pneg %p276
      %p422 = pneg %p273
      %p423 = pneg %p297
      %p424 = pneg %p294
      %p425 = pneg %p323
      %p426 = pneg %p320
      %s427 = smul.u32 2, %s24
      %p428 = scmp.lt.s32.totalorder %s427, 3
      %s429 = scalar_select %p428, %s427, 3
      %s430 = smul.addr %s429, 8
      %s431 = scalar_lea.vmem %s13, %s430
      %s432 = smul.u32 2, %s24
      %p433 = scmp.lt.s32.totalorder %s432, 3
      %s434 = scalar_select %p433, %s432, 3
      %s435 = smul.addr %s434, 4
      %s436 = scalar_lea.vmem %s0, %s435
      %s437 = smul.u32 2, %s24
      %s438 = smul.u32 2, %s24
      %p439 = scmp.lt.s32.totalorder %s438, 3
      %s440 = scalar_select %p439, %s438, 3
      %s441 = smul.addr %s440, 8
      %s442 = scalar_lea.vmem %s13, %s441
      %s443 = smul.u32 2, %s24
      %v445 = vld [vmem:[%s436] sm:$0xf]
      %v446 = vld [vmem:[%s436 + $0x4] sm:$0xf]
      %v447 = vld [vmem:[%s1] sm:$0xf]
      %v448 = vld [vmem:[%s1 + $0x4] sm:$0xf]
      %v449 = vld [vmem:[%s1 + $0x8] sm:$0xf]
      %v450 = vld [vmem:[%s1 + $0xc] sm:$0xf]
      %v451 = vld [vmem:[%s1 + $0x10] sm:$0xf]
      %v452 = vld [vmem:[%s1 + $0x14] sm:$0xf]
      %v453 = vld [vmem:[%s2] sm:$0x1]
      %v455 = vlaneseq
      %v456 = vshrl.u32 %v455, 7
      %v457 = vsub.s32 0, %v456
      %v458 = vrot.slane %v453, %v457
      %v462 = vunpack.c.l.b16 %v445
      %v463 = vunpack.c.l.b16 %v446
      %v464 = vpack.c.b16 %v463, %v462
      %v471 = vunpack.c.l.b16 %v447
      %v472 = vunpack.c.l.b16 %v448
      %v473 = vunpack.c.l.b16 %v449
      %v474 = vunpack.c.l.b16 %v450
      %v475 = vunpack.c.l.b16 %v451
      %v476 = vunpack.c.l.b16 %v452
      %v477 = vpack.c.b16 %v472, %v471
      %v478 = vpack.c.b16 %v474, %v473
      %v479 = vpack.c.b16 %v476, %v475
      %vm483 = vcmask 392192
      %v485 = vsel %vm483, %v464, 0
      %487 = vmatprep.subr.bf16.mxu0 0
      %488 = vmatpush1.bf16.msra.mxu0 %v477
      %489 = vmatprep.subr.bf16.mxu0 0
      %490 = vmatpush1.bf16.msra.mxu0 %v478
      %491 = vmatprep.subr.bf16.mxu0 0
      %492 = vmatpush1.bf16.msra.mxu0 %v479
      %493 = vmatprep.subr.bf16.mxu0 0
      %494 = vmatpush1.bf16.msra.mxu0 0
      %495 = vmatprep.subr.bf16.mxu0 0
      %496 = vmatpush1.bf16.msra.mxu0 0
      %497 = vmatprep.subr.bf16.mxu0 0
      %498 = vmatpush1.bf16.msra.mxu0 0
      %499 = vmatprep.subr.bf16.mxu0 0
      %500 = vmatpush1.bf16.msra.mxu0 0
      %501 = vmatprep.subr.bf16.mxu0 0
      %502 = vmatpush1.bf16.msra.mxu0 0
      %503 = vmatprep.subr.bf16.mxu0 0
      %504 = vmatpush1.bf16.msra.mxu0 0
      %505 = vmatprep.subr.bf16.mxu0 0
      %506 = vmatpush1.bf16.msra.mxu0 0
      %507 = vmatprep.subr.bf16.mxu0 0
      %508 = vmatpush1.bf16.msra.mxu0 0
      %509 = vmatprep.subr.bf16.mxu0 0
      %510 = vmatpush1.bf16.msra.mxu0 0
      %511 = vmatprep.subr.bf16.mxu0 0
      %512 = vmatpush1.bf16.msra.mxu0 0
      %513 = vmatprep.subr.bf16.mxu0 0
      %514 = vmatpush1.bf16.msra.mxu0 0
      %515 = vmatprep.subr.bf16.mxu0 0
      %516 = vmatpush1.bf16.msra.mxu0 0
      %517 = vmatprep.subr.bf16.mxu0 0
      %518 = vmatpush1.bf16.msra.mxu0 0
      %519 = vmatprep.mubr.bf16.mxu0 0
      %520 = vmatmul.mubr.bf16.gmra.mrb[0].mxu0 %v485
      %v521 = vpop.f32.mrb[0].mxu0
      %v522 = vadd.f32 %v458, %v521
      %v523 = vpop.f32.mrb[0].mxu0
      %v524 = vpop.f32.mrb[0].mxu0
      %v525 = vadd.f32 %v458, %v524
      %v526 = vpop.f32.mrb[0].mxu0
      %527 = vdwg.mxu0
      %v528 = vld [vmem:[%s3] sm:$0x1]
      %v529 = vld [vmem:[%s4] sm:$0x1]
      %vm530 = vcmask 523264
      %v531 = vsel %vm530, %v522, 0.0
      %532 = vadd.xlane.f32.xlu0 %v531
      %v533 = vpop.xlane.xlu0 %532
      %v534 = vsel %vm530, %v525, 0.0
      %535 = vadd.xlane.f32.xlu0 %v534
      %v536 = vpop.xlane.xlu0 %535
      %v537 = vrcp.pop 64.0
      %v538 = vmul.f32 %v533, %v537
      %v539 = vmul.f32 %v536, %v537
      %v540 = vmul.f32 %v522, %v522
      %v541 = vmul.f32 %v525, %v525
      %v542 = vsel %vm530, %v540, 0.0
      %543 = vadd.xlane.f32.xlu0 %v542
      %v544 = vpop.xlane.xlu0 %543
      %v545 = vsel %vm530, %v541, 0.0
      %546 = vadd.xlane.f32.xlu0 %v545
      %v547 = vpop.xlane.xlu0 %546
      %v548 = vmul.f32 %v544, %v537
      %v549 = vmul.f32 %v547, %v537
      %v550 = vmul.f32 %v538, %v538
      %v551 = vmul.f32 %v539, %v539
      %v552 = vsub.f32 %v548, %v550
      %v553 = vsub.f32 %v549, %v551
      %v554 = vmax.f32 %v552, 0.0
      %v555 = vmax.f32 %v553, 0.0
      %v556 = vsub.f32 %v522, %v538
      %v557 = vsub.f32 %v525, %v539
      %v558 = vadd.f32 %v554, 1e-05
      %v559 = vadd.f32 %v555, 1e-05
      %v560 = vrsqrt.pop %v558
      %v561 = vrsqrt.pop %v559
      %v562 = vmul.f32 %v556, %v560
      %v563 = vmul.f32 %v557, %v561
      %v565 = vlaneseq
      %v566 = vshrl.u32 %v565, 7
      %v567 = vsub.s32 0, %v566
      %v568 = vrot.slane %v528, %v567
      %v570 = vmul.f32 %v562, %v568
      %v571 = vmul.f32 %v563, %v568
      %v573 = vlaneseq
      %v574 = vshrl.u32 %v573, 7
      %v575 = vsub.s32 0, %v574
      %v576 = vrot.slane %v529, %v575
      %v578 = vadd.f32 %v570, %v576
      %v579 = vadd.f32 %v571, %v576
      %v580 = vxor.u32 %v578, 2147483648
      %v581 = vxor.u32 %v579, 2147483648
      %v582 = vmul.f32 %v580, 1.442695
      %v583 = vpow.pop %v582
      %v584 = vmul.f32 %v581, 1.442695
      %v585 = vpow.pop %v584
      %v586 = vadd.f32 %v583, 1.0
      %v587 = vadd.f32 %v585, 1.0
      %v588 = vrcp.pop %v586
      %v589 = vmul.f32 1.0, %v588
      %v590 = vrcp.pop %v587
      %v591 = vmul.f32 1.0, %v590
      %v592 = vmul.f32 %v578, %v589
      %v593 = vmul.f32 %v579, %v591
      %v594 = vld [vmem:[%s5] sm:$0xf]
      %v595 = vld [vmem:[%s5 + $0x4] sm:$0xf]
      %v596 = vld [vmem:[%s5 + $0x8] sm:$0xf]
      %v597 = vld [vmem:[%s5 + $0xc] sm:$0xf]
      %v598 = vld [vmem:[%s5 + $0x10] sm:$0xf]
      %v599 = vld [vmem:[%s5 + $0x14] sm:$0xf]
      %v600 = vld [vmem:[%s5 + $0x18] sm:$0xf]
      %v601 = vld [vmem:[%s5 + $0x1c] sm:$0xf]
      %v602 = vld [vmem:[%s6] sm:$0x1]
      %v603 = vpack.c.bf16 %v593, %v592
      %v605 = vlaneseq
      %v606 = vshrl.u32 %v605, 7
      %v607 = vsub.s32 0, %v606
      %v608 = vrot.slane %v602, %v607
      %v618 = vunpack.c.l.b16 %v594
      %v619 = vunpack.c.l.b16 %v595
      %v620 = vunpack.c.l.b16 %v596
      %v621 = vunpack.c.l.b16 %v597
      %v622 = vunpack.c.l.b16 %v598
      %v623 = vunpack.c.l.b16 %v599
      %v624 = vunpack.c.l.b16 %v600
      %v625 = vunpack.c.l.b16 %v601
      %v626 = vpack.c.b16 %v619, %v618
      %v627 = vpack.c.b16 %v621, %v620
      %v628 = vpack.c.b16 %v623, %v622
      %v629 = vpack.c.b16 %v625, %v624
      %v635 = vsel %vm530, %v603, 0
      %637 = vmatprep.subr.bf16.mxu0 0
      %638 = vmatpush1.bf16.msra.mxu0 %v626
      %639 = vmatprep.subr.bf16.mxu0 0
      %640 = vmatpush1.bf16.msra.mxu0 %v627
      %641 = vmatprep.subr.bf16.mxu0 0
      %642 = vmatpush1.bf16.msra.mxu0 %v628
      %643 = vmatprep.subr.bf16.mxu0 0
      %644 = vmatpush1.bf16.msra.mxu0 %v629
      %645 = vmatprep.subr.bf16.mxu0 0
      %646 = vmatpush1.bf16.msra.mxu0 0
      %647 = vmatprep.subr.bf16.mxu0 0
      %648 = vmatpush1.bf16.msra.mxu0 0
      %649 = vmatprep.subr.bf16.mxu0 0
      %650 = vmatpush1.bf16.msra.mxu0 0
      %651 = vmatprep.subr.bf16.mxu0 0
      %652 = vmatpush1.bf16.msra.mxu0 0
      %653 = vmatprep.subr.bf16.mxu0 0
      %654 = vmatpush1.bf16.msra.mxu0 0
      %655 = vmatprep.subr.bf16.mxu0 0
      %656 = vmatpush1.bf16.msra.mxu0 0
      %657 = vmatprep.subr.bf16.mxu0 0
      %658 = vmatpush1.bf16.msra.mxu0 0
      %659 = vmatprep.subr.bf16.mxu0 0
      %660 = vmatpush1.bf16.msra.mxu0 0
      %661 = vmatprep.subr.bf16.mxu0 0
      %662 = vmatpush1.bf16.msra.mxu0 0
      %663 = vmatprep.subr.bf16.mxu0 0
      %664 = vmatpush1.bf16.msra.mxu0 0
      %665 = vmatprep.subr.bf16.mxu0 0
      %666 = vmatpush1.bf16.msra.mxu0 0
      %667 = vmatprep.subr.bf16.mxu0 0
      %668 = vmatpush1.bf16.msra.mxu0 0
      %669 = vmatprep.mubr.bf16.mxu0 0
      %670 = vmatmul.mubr.bf16.gmra.mrb[0].mxu0 %v635
      %v671 = vpop.f32.mrb[0].mxu0
      %v672 = vadd.f32 %v608, %v671
      %v673 = vpop.f32.mrb[0].mxu0
      %v674 = vpop.f32.mrb[0].mxu0
      %v675 = vadd.f32 %v608, %v674
      %v676 = vpop.f32.mrb[0].mxu0
      %677 = vdwg.mxu0
      %v678 = vld [vmem:[%s7] sm:$0x1]
      %v679 = vld [vmem:[%s8] sm:$0x1]
      %v680 = vsel %vm530, %v672, 0.0
      %681 = vadd.xlane.f32.xlu0 %v680
      %v682 = vpop.xlane.xlu0 %681
      %v683 = vsel %vm530, %v675, 0.0
      %684 = vadd.xlane.f32.xlu0 %v683
      %v685 = vpop.xlane.xlu0 %684
      %v686 = vmul.f32 %v682, %v537
      %v687 = vmul.f32 %v685, %v537
      %v688 = vmul.f32 %v672, %v672
      %v689 = vmul.f32 %v675, %v675
      %v690 = vsel %vm530, %v688, 0.0
      %691 = vadd.xlane.f32.xlu0 %v690
      %v692 = vpop.xlane.xlu0 %691
      %v693 = vsel %vm530, %v689, 0.0
      %694 = vadd.xlane.f32.xlu0 %v693
      %v695 = vpop.xlane.xlu0 %694
      %v696 = vmul.f32 %v692, %v537
      %v697 = vmul.f32 %v695, %v537
      %v698 = vmul.f32 %v686, %v686
      %v699 = vmul.f32 %v687, %v687
      %v700 = vsub.f32 %v696, %v698
      %v701 = vsub.f32 %v697, %v699
      %v702 = vmax.f32 %v700, 0.0
      %v703 = vmax.f32 %v701, 0.0
      %v704 = vsub.f32 %v672, %v686
      %v705 = vsub.f32 %v675, %v687
      %v706 = vadd.f32 %v702, 1e-05
      %v707 = vadd.f32 %v703, 1e-05
      %v708 = vrsqrt.pop %v706
      %v709 = vrsqrt.pop %v707
      %v710 = vmul.f32 %v704, %v708
      %v711 = vmul.f32 %v705, %v709
      %v713 = vlaneseq
      %v714 = vshrl.u32 %v713, 7
      %v715 = vsub.s32 0, %v714
      %v716 = vrot.slane %v678, %v715
      %v718 = vmul.f32 %v710, %v716
      %v719 = vmul.f32 %v711, %v716
      %v721 = vlaneseq
      %v722 = vshrl.u32 %v721, 7
      %v723 = vsub.s32 0, %v722
      %v724 = vrot.slane %v679, %v723
      %v726 = vadd.f32 %v718, %v724
      %v727 = vadd.f32 %v719, %v724
      %v728 = vxor.u32 %v726, 2147483648
      %v729 = vxor.u32 %v727, 2147483648
      %v730 = vmul.f32 %v728, 1.442695
      %v731 = vpow.pop %v730
      %v732 = vmul.f32 %v729, 1.442695
      %v733 = vpow.pop %v732
      %v734 = vadd.f32 %v731, 1.0
      %v735 = vadd.f32 %v733, 1.0
      %v736 = vrcp.pop %v734
      %v737 = vmul.f32 1.0, %v736
      %v738 = vrcp.pop %v735
      %v739 = vmul.f32 1.0, %v738
      %v740 = vmul.f32 %v726, %v737
      %v741 = vmul.f32 %v727, %v739
      %v742 = vld [vmem:[%s9] sm:$0xf]
      %v743 = vld [vmem:[%s9 + $0x4] sm:$0xf]
      %v744 = vld [vmem:[%s9 + $0x8] sm:$0xf]
      %v745 = vld [vmem:[%s9 + $0xc] sm:$0xf]
      %v746 = vld [vmem:[%s9 + $0x10] sm:$0xf]
      %v747 = vld [vmem:[%s9 + $0x14] sm:$0xf]
      %v748 = vld [vmem:[%s9 + $0x18] sm:$0xf]
      %v749 = vld [vmem:[%s9 + $0x1c] sm:$0xf]
      %v750 = vld [vmem:[%s10] sm:$0x1]
      %v751 = vpack.c.bf16 %v741, %v740
      %v753 = vlaneseq
      %v754 = vshrl.u32 %v753, 7
      %v755 = vsub.s32 0, %v754
      %v756 = vrot.slane %v750, %v755
      %v766 = vunpack.c.l.b16 %v742
      %v767 = vunpack.c.l.b16 %v743
      %v768 = vunpack.c.l.b16 %v744
      %v769 = vunpack.c.l.b16 %v745
      %v770 = vunpack.c.l.b16 %v746
      %v771 = vunpack.c.l.b16 %v747
      %v772 = vunpack.c.l.b16 %v748
      %v773 = vunpack.c.l.b16 %v749
      %v774 = vpack.c.b16 %v767, %v766
      %v775 = vpack.c.b16 %v769, %v768
      %v776 = vpack.c.b16 %v771, %v770
      %v777 = vpack.c.b16 %v773, %v772
      %v783 = vsel %vm530, %v751, 0
      %785 = vmatprep.subr.bf16.mxu0 0
      %786 = vmatpush1.bf16.msra.mxu0 %v774
      %787 = vmatprep.subr.bf16.mxu0 0
      %788 = vmatpush1.bf16.msra.mxu0 %v775
      %789 = vmatprep.subr.bf16.mxu0 0
      %790 = vmatpush1.bf16.msra.mxu0 %v776
      %791 = vmatprep.subr.bf16.mxu0 0
      %792 = vmatpush1.bf16.msra.mxu0 %v777
      %793 = vmatprep.subr.bf16.mxu0 0
      %794 = vmatpush1.bf16.msra.mxu0 0
      %795 = vmatprep.subr.bf16.mxu0 0
      %796 = vmatpush1.bf16.msra.mxu0 0
      %797 = vmatprep.subr.bf16.mxu0 0
      %798 = vmatpush1.bf16.msra.mxu0 0
      %799 = vmatprep.subr.bf16.mxu0 0
      %800 = vmatpush1.bf16.msra.mxu0 0
      %801 = vmatprep.subr.bf16.mxu0 0
      %802 = vmatpush1.bf16.msra.mxu0 0
      %803 = vmatprep.subr.bf16.mxu0 0
      %804 = vmatpush1.bf16.msra.mxu0 0
      %805 = vmatprep.subr.bf16.mxu0 0
      %806 = vmatpush1.bf16.msra.mxu0 0
      %807 = vmatprep.subr.bf16.mxu0 0
      %808 = vmatpush1.bf16.msra.mxu0 0
      %809 = vmatprep.subr.bf16.mxu0 0
      %810 = vmatpush1.bf16.msra.mxu0 0
      %811 = vmatprep.subr.bf16.mxu0 0
      %812 = vmatpush1.bf16.msra.mxu0 0
      %813 = vmatprep.subr.bf16.mxu0 0
      %814 = vmatpush1.bf16.msra.mxu0 0
      %815 = vmatprep.subr.bf16.mxu0 0
      %816 = vmatpush1.bf16.msra.mxu0 0
      %817 = vmatprep.mubr.bf16.mxu0 0
      %818 = vmatmul.mubr.bf16.gmra.mrb[0].mxu0 %v783
      %v819 = vpop.f32.mrb[0].mxu0
      %v820 = vadd.f32 %v756, %v819
      %v821 = vpop.f32.mrb[0].mxu0
      %v822 = vpop.f32.mrb[0].mxu0
      %v823 = vadd.f32 %v756, %v822
      %v824 = vpop.f32.mrb[0].mxu0
      %825 = vdwg.mxu0
      %v826 = vld [vmem:[%s11] sm:$0xf]
      %v827 = vld [vmem:[%s11 + $0x4] sm:$0xf]
      %v828 = vld [vmem:[%s11 + $0x8] sm:$0xf]
      %v829 = vld [vmem:[%s11 + $0xc] sm:$0xf]
      %v830 = vld [vmem:[%s12] sm:$0x1]
      %v831 = vpack.c.bf16 %v823, %v820
      %v833 = vlaneseq
      %v834 = vshrl.u32 %v833, 7
      %v835 = vsub.s32 0, %v834
      %v836 = vrot.slane %v830, %v835
      %v842 = vunpack.c.l.b16 %v826
      %v843 = vunpack.c.l.b16 %v827
      %v844 = vunpack.c.l.b16 %v828
      %v845 = vunpack.c.l.b16 %v829
      %v846 = vpack.c.b16 %v843, %v842
      %v847 = vpack.c.b16 %v845, %v844
      %vm850 = vcmask 261120
      %v852 = vsel %vm850, %v831, 0
      %854 = vmatprep.subr.bf16.mxu0 0
      %855 = vmatpush1.bf16.msra.mxu0 %v846
      %856 = vmatprep.subr.bf16.mxu0 0
      %857 = vmatpush1.bf16.msra.mxu0 %v847
      %858 = vmatprep.subr.bf16.mxu0 0
      %859 = vmatpush1.bf16.msra.mxu0 0
      %860 = vmatprep.subr.bf16.mxu0 0
      %861 = vmatpush1.bf16.msra.mxu0 0
      %862 = vmatprep.subr.bf16.mxu0 0
      %863 = vmatpush1.bf16.msra.mxu0 0
      %864 = vmatprep.subr.bf16.mxu0 0
      %865 = vmatpush1.bf16.msra.mxu0 0
      %866 = vmatprep.subr.bf16.mxu0 0
      %867 = vmatpush1.bf16.msra.mxu0 0
      %868 = vmatprep.subr.bf16.mxu0 0
      %869 = vmatpush1.bf16.msra.mxu0 0
      %870 = vmatprep.subr.bf16.mxu0 0
      %871 = vmatpush1.bf16.msra.mxu0 0
      %872 = vmatprep.subr.bf16.mxu0 0
      %873 = vmatpush1.bf16.msra.mxu0 0
      %874 = vmatprep.subr.bf16.mxu0 0
      %875 = vmatpush1.bf16.msra.mxu0 0
      %876 = vmatprep.subr.bf16.mxu0 0
      %877 = vmatpush1.bf16.msra.mxu0 0
      %878 = vmatprep.subr.bf16.mxu0 0
      %879 = vmatpush1.bf16.msra.mxu0 0
      %880 = vmatprep.subr.bf16.mxu0 0
      %881 = vmatpush1.bf16.msra.mxu0 0
      %882 = vmatprep.subr.bf16.mxu0 0
      %883 = vmatpush1.bf16.msra.mxu0 0
      %884 = vmatprep.subr.bf16.mxu0 0
      %885 = vmatpush1.bf16.msra.mxu0 0
      %886 = vmatprep.mubr.bf16.mxu0 0
      %887 = vmatmul.mubr.bf16.gmra.mrb[0].mxu0 %v852
      %v888 = vpop.f32.mrb[0].mxu0
      %v889 = vadd.f32 %v836, %v888
      %v890 = vpop.f32.mrb[0].mxu0
      %v891 = vpop.f32.mrb[0].mxu0
      %v892 = vadd.f32 %v836, %v891
      %v893 = vpop.f32.mrb[0].mxu0
      %894 = vdwg.mxu0
      %v895 = vmul.f32 %v889, %v889
      %v896 = vmul.f32 %v892, %v892
      %897 = vadd.xlane.f32.xlu0 %v895
      %v898 = vpop.xlane.xlu0 %897
      %899 = vadd.xlane.f32.xlu0 %v896
      %v900 = vpop.xlane.xlu0 %899
      %v901 = vmax.f32 %v898, 1e-24
      %v902 = vmax.f32 %v900, 1e-24
      %v903 = vrsqrt.pop %v901
      %v904 = vrsqrt.pop %v902
      %v905 = vmul.f32 %v889, %v903
      %v906 = vmul.f32 %v892, %v904
      %907 = vst [vmem:[%s442] sm:$0xff] %v905
      %908 = vst [vmem:[%s442 + $0x8] sm:$0xff] %v906
      %s909 = smul.u32 2, %s24
      %p910 = scmp.lt.s32.totalorder %s909, 3
      %s911 = scalar_select %p910, %s909, 3
      %s912 = smul.addr %s911, 8
      %s913 = scalar_lea.vmem %s13, %s912
      // Predicated region
      $region73: #{simclr_pair_forward.4} parent=71 // pred_check
        %p914 = pneg %p320
      $region74: #{simclr_pair_forward.4} parent=71 // pred_check_branch
        %916 = sbr.rel (%p914) target = $region76
      $region75: #{simclr_pair_forward.4} parent=71 // pred_region
        %s917 = smul.u32 2, %s24
      $region76: #{simclr_pair_forward.4} parent=71 // pred_fallthru
        _
    $region72: #{simclr_pair_forward.4} parent=5 // pred_fallthru
      _
    %p918 = scmp.le.s32.totalorder 2, %s19
    // Predicated region
    $region77: #{simclr_pair_forward.4} parent=5 // pred_check
      %p919 = pneg %p918
    $region78: #{simclr_pair_forward.4} parent=5 // pred_check_branch
      %921 = sbr.rel (%p919) target = $region80
    $region79: #{simclr_pair_forward.4} parent=5 // pred_region
      %s922 = ssub.s32 %s19, 2
      // Predicated region
      $region81: #{simclr_pair_forward.4} parent=79 // pred_check
        %p923 = pneg %p326
      $region82: #{simclr_pair_forward.4} parent=79 // pred_check_branch
        %925 = sbr.rel (%p923) target = $region84
      $region83: #{simclr_pair_forward.4} parent=79 // pred_region
        %s926 = smul.u32 2, %s25
        %p927 = scmp.lt.s32.totalorder %s926, 3
        %s928 = scalar_select %p927, %s926, 3
        %s929 = smul.addr %s928, 8
        %s930 = scalar_lea.vmem %s13, %s929
      $region84: #{simclr_pair_forward.4} parent=79 // pred_fallthru
        _
    $region80: #{simclr_pair_forward.4} parent=5 // pred_fallthru
      _
  $region6: #{simclr_pair_forward.4} parent=0 // loop_footer
    %s23 = sadd.s32 1, %s19
  $region7: #{simclr_pair_forward.4} parent=0 // loop_footer_branch
    %18 = sbr.rel target = $region3
  $region8: #{simclr_pair_forward.4} parent=0 // loop_exit
    _

// kernel: simclr_pair_forward.3
$region0: #{simclr_pair_forward.3}
  #allocation0 [shape = 'u32[]', space=smem, size = 0x4, offset = 0x4, fixed_abs, tag = 'smem constant byte address 0x4 - core index']
  #allocation1 [shape = 'u32[144,128]{1,0:T(1,128)}', space=vmem, size = 0x12000, scoped, tag = 'internal scratch']
  %s0 = inlined_call_operand.vmem [shape: bf16[32,32], index: 0, kind: input, shape index: {}]
  %s1 = inlined_call_operand.vmem [shape: bf16[32,64], index: 1, kind: input, shape index: {}]
  %s2 = inlined_call_operand.hbm [shape: f32[1,64], index: 2, kind: input, shape index: {}]
  %s3 = inlined_call_operand.vmem [shape: f32[1,64], index: 3, kind: input, shape index: {}, may-alias: {3,7}]
  %s4 = inlined_call_operand.vmem [shape: f32[1,64], index: 4, kind: input, shape index: {}, may-alias: {4,8}]
  %s5 = inlined_call_operand.vmem [shape: bf16[64,64], index: 5, kind: input, shape index: {}]
  %s6 = inlined_call_operand.hbm [shape: f32[1,64], index: 6, kind: input, shape index: {}]
  %s7 = inlined_call_operand.vmem [shape: f32[1,64], index: 7, kind: input, shape index: {}, may-alias: {3,7}]
  %s8 = inlined_call_operand.vmem [shape: f32[1,64], index: 8, kind: input, shape index: {}, may-alias: {4,8}]
  %s9 = inlined_call_operand.vmem [shape: bf16[64,32], index: 9, kind: input, shape index: {}]
  %s10 = inlined_call_operand.hbm [shape: f32[1,32], index: 10, kind: input, shape index: {}]
  %s11 = inlined_call_operand.vmem [shape: bf16[32,32], index: 11, kind: input, shape index: {}]
  %s12 = inlined_call_operand.vmem [shape: f32[1,32], index: 12, kind: input, shape index: {}]
  %s13 = inlined_call_operand.vmem [shape: f32[1,32], index: 13, kind: input, shape index: {}]
  %s14 = inlined_call_operand.vmem [shape: f32[1,32], index: 14, kind: input, shape index: {}]
  %s15 = inlined_call_operand.vmem [shape: bf16[32,128], index: 15, kind: input, shape index: {}]
  %s16 = inlined_call_operand.vmem [shape: f32[1,128], index: 16, kind: input, shape index: {}]
  %s17 = inlined_call_operand.vmem [shape: f32[32,128], index: 17, kind: output, shape index: {}]
  %s18 = sld [smem:[#allocation0]]
  $region113: #{simclr_pair_forward.3} parent=0
    _
  %s20 = ssub.s32 1, %s18
  %s21 = scalar_select 0, %s20, %s18
  $region1: #{simclr_pair_forward.3} parent=0
    #allocation2 [shape = 'u8[512]{0}', space=vmem, size = 0x400, scoped, tag = 'input window, operand 2, single buffered']
    #allocation3 [shape = 's32[2]{0}', space=sflag, size = 0x8, scoped, tag = 'scoped memory for simclr_pair_forward.3']
    #allocation4 [shape = 'u8[512]{0}', space=vmem, size = 0x400, scoped, tag = 'input window, operand 6, single buffered']
    #allocation5 [shape = 's32[1]{0}', space=sflag, size = 0x4, scoped, tag = 'scoped memory for simclr_pair_forward.3']
    #allocation6 [shape = 'u8[512]{0}', space=vmem, size = 0x400, scoped, tag = 'input window, operand 10, single buffered']
    %22 = vsyncpa [#allocation3], 0
    %23 = vsyncpa [#allocation5], 0
    loop: start=0, step=1, limit=4
    $region2: #{simclr_pair_forward.3} parent=1 // loop_pre_header
      _
    $region3: #{simclr_pair_forward.3} parent=1 // loop_header
      %s25 = sphi 0, %s29
      %p26 = scmp.ge.s32.totalorder %s25, 4
      %s35 = sphi 0, %s37
      %s38 = sphi 0, %s35
      %s39 = sphi 0, %s38
      %s55 = sphi 0, %s39
      %s59 = sphi 0, %s59
      %s61 = sphi 0, %s59
      %s62 = sphi 0, %s61
      %s76 = sphi 0, %s62
      %s80 = sphi 0, %s80
      %s82 = sphi 0, %s80
      %s83 = sphi 0, %s82
      %s97 = sphi 0, %s83
      %s101 = sphi 0, %s101
      %s103 = sphi 0, %s101
      %s104 = sphi 0, %s103
      %s118 = sphi 0, %s104
      %s122 = sphi 0, %s122
      %s124 = sphi 0, %s122
      %s125 = sphi 0, %s124
      %s139 = sphi 0, %s125
      %s143 = sphi 0, %s143
      %s145 = sphi 0, %s143
      %s146 = sphi 0, %s145
      %s160 = sphi 0, %s146
      %s164 = sphi 0, %s164
      %s166 = sphi 0, %s164
      %s167 = sphi 0, %s166
      %s181 = sphi 0, %s167
      %s185 = sphi 0, %s185
      %s187 = sphi 0, %s185
      %s188 = sphi 0, %s187
      %s202 = sphi 0, %s188
      %s206 = sphi 0, %s206
      %s208 = sphi 0, %s206
      %s209 = sphi 0, %s208
      %s223 = sphi 0, %s209
      %s227 = sphi 0, %s227
      %s229 = sphi 0, %s227
      %s230 = sphi 0, %s229
      %s244 = sphi 0, %s230
      %s248 = sphi 0, %s248
      %s250 = sphi 0, %s248
      %s251 = sphi 0, %s250
      %s265 = sphi 0, %s251
      %s269 = sphi 0, %s269
      %s271 = sphi 0, %s269
      %s272 = sphi 0, %s271
      %s286 = sphi 0, %s272
      %s290 = sphi 0, %s290
      %s292 = sphi 0, %s290
      %s293 = sphi 0, %s292
      %s307 = sphi 0, %s293
      %s311 = sphi 0, %s311
      %s313 = sphi 0, %s311
      %s314 = sphi 0, %s313
      %s328 = sphi 0, %s314
      %s332 = sphi 0, %s332
      %s334 = sphi 0, %s332
      %s335 = sphi 0, %s334
      %s349 = sphi 0, %s335
      %s353 = sphi 0, %s353
      %s355 = sphi 0, %s353
      %s356 = sphi 0, %s355
      %s370 = sphi 0, %s356
      %s374 = sphi 0, %s374
      %s376 = sphi 0, %s374
      %s377 = sphi 0, %s376
      %s391 = sphi 0, %s377
      %s397 = sphi 0, %s399
      %s400 = sphi 0, %s397
      %s401 = sphi 0, %s400
      %s417 = sphi 0, %s401
    $region4: #{simclr_pair_forward.3} parent=1 // loop_header_branch
      %28 = sbr.rel (%p26) target = $region8
    $region5: #{simclr_pair_forward.3} parent=1 // loop_body
      %s30 = ssub.s32 %s25, 1
      %s31 = ssub.s32 %s25, 2
      %s32 = sadd.s32 %s25, 1
      %s33 = ssub.s32 %s25, %s32
      %p34 = scmp.eq.s32.totalorder %s33, 0
      %s36 = sadd.s32 %s35, 1
      %s37 = scalar_select %p34, %s35, %s36
      %p40 = pneg %p34
      %p41 = scmp.eq.s32.totalorder %s25, 1
      %p42 = por %p40, %p41
      %p43 = scmp.ne.s32.totalorder %s35, %s38
      %p44 = scmp.eq.s32.totalorder %s25, 0
      %p45 = por %p43, %p44
      %p46 = scmp.ne.s32.totalorder %s35, %s38
      %p47 = scmp.eq.s32.totalorder %s30, 1
      %p48 = por %p46, %p47
      %p49 = scmp.ne.s32.totalorder %s38, %s39
      %p50 = scmp.eq.s32.totalorder %s30, 0
      %p51 = por %p49, %p50
      %p52 = scmp.ne.s32.totalorder %s38, %s39
      %p53 = scmp.eq.s32.totalorder %s31, 1
      %p54 = por %p52, %p53
      %p56 = scmp.ne.s32.totalorder %s39, %s55
      %p57 = scmp.eq.s32.totalorder %s31, 0
      %p58 = por %p56, %p57
      %s60 = sadd.s32 %s59, 1
      %p63 = scmp.eq.s32.totalorder %s25, 1
      %p64 = scmp.ne.s32.totalorder %s59, %s61
      %p65 = scmp.eq.s32.totalorder %s25, 0
      %p66 = por %p64, %p65
      %p67 = scmp.ne.s32.totalorder %s59, %s61
      %p68 = scmp.eq.s32.totalorder %s30, 1
      %p69 = por %p67, %p68
      %p70 = scmp.ne.s32.totalorder %s61, %s62
      %p71 = scmp.eq.s32.totalorder %s30, 0
      %p72 = por %p70, %p71
      %p73 = scmp.ne.s32.totalorder %s61, %s62
      %p74 = scmp.eq.s32.totalorder %s31, 1
      %p75 = por %p73, %p74
      %p77 = scmp.ne.s32.totalorder %s62, %s76
      %p78 = scmp.eq.s32.totalorder %s31, 0
      %p79 = por %p77, %p78
      %s81 = sadd.s32 %s80, 1
      %p84 = scmp.eq.s32.totalorder %s25, 1
      %p85 = scmp.ne.s32.totalorder %s80, %s82
      %p86 = scmp.eq.s32.totalorder %s25, 0
      %p87 = por %p85, %p86
      %p88 = scmp.ne.s32.totalorder %s80, %s82
      %p89 = scmp.eq.s32.totalorder %s30, 1
      %p90 = por %p88, %p89
      %p91 = scmp.ne.s32.totalorder %s82, %s83
      %p92 = scmp.eq.s32.totalorder %s30, 0
      %p93 = por %p91, %p92
      %p94 = scmp.ne.s32.totalorder %s82, %s83
      %p95 = scmp.eq.s32.totalorder %s31, 1
      %p96 = por %p94, %p95
      %p98 = scmp.ne.s32.totalorder %s83, %s97
      %p99 = scmp.eq.s32.totalorder %s31, 0
      %p100 = por %p98, %p99
      %s102 = sadd.s32 %s101, 1
      %p105 = scmp.eq.s32.totalorder %s25, 1
      %p106 = scmp.ne.s32.totalorder %s101, %s103
      %p107 = scmp.eq.s32.totalorder %s25, 0
      %p108 = por %p106, %p107
      %p109 = scmp.ne.s32.totalorder %s101, %s103
      %p110 = scmp.eq.s32.totalorder %s30, 1
      %p111 = por %p109, %p110
      %p112 = scmp.ne.s32.totalorder %s103, %s104
      %p113 = scmp.eq.s32.totalorder %s30, 0
      %p114 = por %p112, %p113
      %p115 = scmp.ne.s32.totalorder %s103, %s104
      %p116 = scmp.eq.s32.totalorder %s31, 1
      %p117 = por %p115, %p116
      %p119 = scmp.ne.s32.totalorder %s104, %s118
      %p120 = scmp.eq.s32.totalorder %s31, 0
      %p121 = por %p119, %p120
      %s123 = sadd.s32 %s122, 1
      %p126 = scmp.eq.s32.totalorder %s25, 1
      %p127 = scmp.ne.s32.totalorder %s122, %s124
      %p128 = scmp.eq.s32.totalorder %s25, 0
      %p129 = por %p127, %p128
      %p130 = scmp.ne.s32.totalorder %s122, %s124
      %p131 = scmp.eq.s32.totalorder %s30, 1
      %p132 = por %p130, %p131
      %p133 = scmp.ne.s32.totalorder %s124, %s125
      %p134 = scmp.eq.s32.totalorder %s30, 0
      %p135 = por %p133, %p134
      %p136 = scmp.ne.s32.totalorder %s124, %s125
      %p137 = scmp.eq.s32.totalorder %s31, 1
      %p138 = por %p136, %p137
      %p140 = scmp.ne.s32.totalorder %s125, %s139
      %p141 = scmp.eq.s32.totalorder %s31, 0
      %p142 = por %p140, %p141
      %s144 = sadd.s32 %s143, 1
      %p147 = scmp.eq.s32.totalorder %s25, 1
      %p148 = scmp.ne.s32.totalorder %s143, %s145
      %p149 = scmp.eq.s32.totalorder %s25, 0
      %p150 = por %p148, %p149
      %p151 = scmp.ne.s32.totalorder %s143, %s145
      %p152 = scmp.eq.s32.totalorder %s30, 1
      %p153 = por %p151, %p152
      %p154 = scmp.ne.s32.totalorder %s145, %s146
      %p155 = scmp.eq.s32.totalorder %s30, 0
      %p156 = por %p154, %p155
      %p157 = scmp.ne.s32.totalorder %s145, %s146
      %p158 = scmp.eq.s32.totalorder %s31, 1
      %p159 = por %p157, %p158
      %p161 = scmp.ne.s32.totalorder %s146, %s160
      %p162 = scmp.eq.s32.totalorder %s31, 0
      %p163 = por %p161, %p162
      %s165 = sadd.s32 %s164, 1
      %p168 = scmp.eq.s32.totalorder %s25, 1
      %p169 = scmp.ne.s32.totalorder %s164, %s166
      %p170 = scmp.eq.s32.totalorder %s25, 0
      %p171 = por %p169, %p170
      %p172 = scmp.ne.s32.totalorder %s164, %s166
      %p173 = scmp.eq.s32.totalorder %s30, 1
      %p174 = por %p172, %p173
      %p175 = scmp.ne.s32.totalorder %s166, %s167
      %p176 = scmp.eq.s32.totalorder %s30, 0
      %p177 = por %p175, %p176
      %p178 = scmp.ne.s32.totalorder %s166, %s167
      %p179 = scmp.eq.s32.totalorder %s31, 1
      %p180 = por %p178, %p179
      %p182 = scmp.ne.s32.totalorder %s167, %s181
      %p183 = scmp.eq.s32.totalorder %s31, 0
      %p184 = por %p182, %p183
      %s186 = sadd.s32 %s185, 1
      %p189 = scmp.eq.s32.totalorder %s25, 1
      %p190 = scmp.ne.s32.totalorder %s185, %s187
      %p191 = scmp.eq.s32.totalorder %s25, 0
      %p192 = por %p190, %p191
      %p193 = scmp.ne.s32.totalorder %s185, %s187
      %p194 = scmp.eq.s32.totalorder %s30, 1
      %p195 = por %p193, %p194
      %p196 = scmp.ne.s32.totalorder %s187, %s188
      %p197 = scmp.eq.s32.totalorder %s30, 0
      %p198 = por %p196, %p197
      %p199 = scmp.ne.s32.totalorder %s187, %s188
      %p200 = scmp.eq.s32.totalorder %s31, 1
      %p201 = por %p199, %p200
      %p203 = scmp.ne.s32.totalorder %s188, %s202
      %p204 = scmp.eq.s32.totalorder %s31, 0
      %p205 = por %p203, %p204
      %s207 = sadd.s32 %s206, 1
      %p210 = scmp.eq.s32.totalorder %s25, 1
      %p211 = scmp.ne.s32.totalorder %s206, %s208
      %p212 = scmp.eq.s32.totalorder %s25, 0
      %p213 = por %p211, %p212
      %p214 = scmp.ne.s32.totalorder %s206, %s208
      %p215 = scmp.eq.s32.totalorder %s30, 1
      %p216 = por %p214, %p215
      %p217 = scmp.ne.s32.totalorder %s208, %s209
      %p218 = scmp.eq.s32.totalorder %s30, 0
      %p219 = por %p217, %p218
      %p220 = scmp.ne.s32.totalorder %s208, %s209
      %p221 = scmp.eq.s32.totalorder %s31, 1
      %p222 = por %p220, %p221
      %p224 = scmp.ne.s32.totalorder %s209, %s223
      %p225 = scmp.eq.s32.totalorder %s31, 0
      %p226 = por %p224, %p225
      %s228 = sadd.s32 %s227, 1
      %p231 = scmp.eq.s32.totalorder %s25, 1
      %p232 = scmp.ne.s32.totalorder %s227, %s229
      %p233 = scmp.eq.s32.totalorder %s25, 0
      %p234 = por %p232, %p233
      %p235 = scmp.ne.s32.totalorder %s227, %s229
      %p236 = scmp.eq.s32.totalorder %s30, 1
      %p237 = por %p235, %p236
      %p238 = scmp.ne.s32.totalorder %s229, %s230
      %p239 = scmp.eq.s32.totalorder %s30, 0
      %p240 = por %p238, %p239
      %p241 = scmp.ne.s32.totalorder %s229, %s230
      %p242 = scmp.eq.s32.totalorder %s31, 1
      %p243 = por %p241, %p242
      %p245 = scmp.ne.s32.totalorder %s230, %s244
      %p246 = scmp.eq.s32.totalorder %s31, 0
      %p247 = por %p245, %p246
      %s249 = sadd.s32 %s248, 1
      %p252 = scmp.eq.s32.totalorder %s25, 1
      %p253 = scmp.ne.s32.totalorder %s248, %s250
      %p254 = scmp.eq.s32.totalorder %s25, 0
      %p255 = por %p253, %p254
      %p256 = scmp.ne.s32.totalorder %s248, %s250
      %p257 = scmp.eq.s32.totalorder %s30, 1
      %p258 = por %p256, %p257
      %p259 = scmp.ne.s32.totalorder %s250, %s251
      %p260 = scmp.eq.s32.totalorder %s30, 0
      %p261 = por %p259, %p260
      %p262 = scmp.ne.s32.totalorder %s250, %s251
      %p263 = scmp.eq.s32.totalorder %s31, 1
      %p264 = por %p262, %p263
      %p266 = scmp.ne.s32.totalorder %s251, %s265
      %p267 = scmp.eq.s32.totalorder %s31, 0
      %p268 = por %p266, %p267
      %s270 = sadd.s32 %s269, 1
      %p273 = scmp.eq.s32.totalorder %s25, 1
      %p274 = scmp.ne.s32.totalorder %s269, %s271
      %p275 = scmp.eq.s32.totalorder %s25, 0
      %p276 = por %p274, %p275
      %p277 = scmp.ne.s32.totalorder %s269, %s271
      %p278 = scmp.eq.s32.totalorder %s30, 1
      %p279 = por %p277, %p278
      %p280 = scmp.ne.s32.totalorder %s271, %s272
      %p281 = scmp.eq.s32.totalorder %s30, 0
      %p282 = por %p280, %p281
      %p283 = scmp.ne.s32.totalorder %s271, %s272
      %p284 = scmp.eq.s32.totalorder %s31, 1
      %p285 = por %p283, %p284
      %p287 = scmp.ne.s32.totalorder %s272, %s286
      %p288 = scmp.eq.s32.totalorder %s31, 0
      %p289 = por %p287, %p288
      %s291 = sadd.s32 %s290, 1
      %p294 = scmp.eq.s32.totalorder %s25, 1
      %p295 = scmp.ne.s32.totalorder %s290, %s292
      %p296 = scmp.eq.s32.totalorder %s25, 0
      %p297 = por %p295, %p296
      %p298 = scmp.ne.s32.totalorder %s290, %s292
      %p299 = scmp.eq.s32.totalorder %s30, 1
      %p300 = por %p298, %p299
      %p301 = scmp.ne.s32.totalorder %s292, %s293
      %p302 = scmp.eq.s32.totalorder %s30, 0
      %p303 = por %p301, %p302
      %p304 = scmp.ne.s32.totalorder %s292, %s293
      %p305 = scmp.eq.s32.totalorder %s31, 1
      %p306 = por %p304, %p305
      %p308 = scmp.ne.s32.totalorder %s293, %s307
      %p309 = scmp.eq.s32.totalorder %s31, 0
      %p310 = por %p308, %p309
      %s312 = sadd.s32 %s311, 1
      %p315 = scmp.eq.s32.totalorder %s25, 1
      %p316 = scmp.ne.s32.totalorder %s311, %s313
      %p317 = scmp.eq.s32.totalorder %s25, 0
      %p318 = por %p316, %p317
      %p319 = scmp.ne.s32.totalorder %s311, %s313
      %p320 = scmp.eq.s32.totalorder %s30, 1
      %p321 = por %p319, %p320
      %p322 = scmp.ne.s32.totalorder %s313, %s314
      %p323 = scmp.eq.s32.totalorder %s30, 0
      %p324 = por %p322, %p323
      %p325 = scmp.ne.s32.totalorder %s313, %s314
      %p326 = scmp.eq.s32.totalorder %s31, 1
      %p327 = por %p325, %p326
      %p329 = scmp.ne.s32.totalorder %s314, %s328
      %p330 = scmp.eq.s32.totalorder %s31, 0
      %p331 = por %p329, %p330
      %s333 = sadd.s32 %s332, 1
      %p336 = scmp.eq.s32.totalorder %s25, 1
      %p337 = scmp.ne.s32.totalorder %s332, %s334
      %p338 = scmp.eq.s32.totalorder %s25, 0
      %p339 = por %p337, %p338
      %p340 = scmp.ne.s32.totalorder %s332, %s334
      %p341 = scmp.eq.s32.totalorder %s30, 1
      %p342 = por %p340, %p341
      %p343 = scmp.ne.s32.totalorder %s334, %s335
      %p344 = scmp.eq.s32.totalorder %s30, 0
      %p345 = por %p343, %p344
      %p346 = scmp.ne.s32.totalorder %s334, %s335
      %p347 = scmp.eq.s32.totalorder %s31, 1
      %p348 = por %p346, %p347
      %p350 = scmp.ne.s32.totalorder %s335, %s349
      %p351 = scmp.eq.s32.totalorder %s31, 0
      %p352 = por %p350, %p351
      %s354 = sadd.s32 %s353, 1
      %p357 = scmp.eq.s32.totalorder %s25, 1
      %p358 = scmp.ne.s32.totalorder %s353, %s355
      %p359 = scmp.eq.s32.totalorder %s25, 0
      %p360 = por %p358, %p359
      %p361 = scmp.ne.s32.totalorder %s353, %s355
      %p362 = scmp.eq.s32.totalorder %s30, 1
      %p363 = por %p361, %p362
      %p364 = scmp.ne.s32.totalorder %s355, %s356
      %p365 = scmp.eq.s32.totalorder %s30, 0
      %p366 = por %p364, %p365
      %p367 = scmp.ne.s32.totalorder %s355, %s356
      %p368 = scmp.eq.s32.totalorder %s31, 1
      %p369 = por %p367, %p368
      %p371 = scmp.ne.s32.totalorder %s356, %s370
      %p372 = scmp.eq.s32.totalorder %s31, 0
      %p373 = por %p371, %p372
      %s375 = sadd.s32 %s374, 1
      %p378 = scmp.eq.s32.totalorder %s25, 1
      %p379 = scmp.ne.s32.totalorder %s374, %s376
      %p380 = scmp.eq.s32.totalorder %s25, 0
      %p381 = por %p379, %p380
      %p382 = scmp.ne.s32.totalorder %s374, %s376
      %p383 = scmp.eq.s32.totalorder %s30, 1
      %p384 = por %p382, %p383
      %p385 = scmp.ne.s32.totalorder %s376, %s377
      %p386 = scmp.eq.s32.totalorder %s30, 0
      %p387 = por %p385, %p386
      %p388 = scmp.ne.s32.totalorder %s376, %s377
      %p389 = scmp.eq.s32.totalorder %s31, 1
      %p390 = por %p388, %p389
      %p392 = scmp.ne.s32.totalorder %s377, %s391
      %p393 = scmp.eq.s32.totalorder %s31, 0
      %p394 = por %p392, %p393
      %s395 = ssub.s32 %s25, %s32
      %p396 = scmp.eq.s32.totalorder %s395, 0
      %s398 = sadd.s32 %s397, 1
      %s399 = scalar_select %p396, %s397, %s398
      %p402 = pneg %p396
      %p403 = scmp.eq.s32.totalorder %s25, 1
      %p404 = por %p402, %p403
      %p405 = scmp.ne.s32.totalorder %s397, %s400
      %p406 = scmp.eq.s32.totalorder %s25, 0
      %p407 = por %p405, %p406
      %p408 = scmp.ne.s32.totalorder %s397, %s400
      %p409 = scmp.eq.s32.totalorder %s30, 1
      %p410 = por %p408, %p409
      %p411 = scmp.ne.s32.totalorder %s400, %s401
      %p412 = scmp.eq.s32.totalorder %s30, 0
      %p413 = por %p411, %p412
      %p414 = scmp.ne.s32.totalorder %s400, %s401
      %p415 = scmp.eq.s32.totalorder %s31, 1
      %p416 = por %p414, %p415
      %p418 = scmp.ne.s32.totalorder %s401, %s417
      %p419 = scmp.eq.s32.totalorder %s31, 0
      %p420 = por %p418, %p419
      %p421 = scmp.le.s32.totalorder 1, %s25
      %p422 = scmp.lt.s32.totalorder %s25, 3
      %p423 = pnand %p421, %p422
      %p424 = pneg %p423
      // Predicated region
      $region9: #{simclr_pair_forward.3} parent=5 // pred_check
        _
      $region10: #{simclr_pair_forward.3} parent=5 // pred_check_branch
        %426 = sbr.rel (%p423) target = $region12
      $region11: #{simclr_pair_forward.3} parent=5 // pred_region
        %s427 = ssub.s32 %s25, 1
        // Predicated region
        $region13: #{simclr_pair_forward.3} parent=11 // pred_check
          %p428 = pneg %p72
        $region14: #{simclr_pair_forward.3} parent=11 // pred_check_branch
          %430 = sbr.rel (%p428) target = $region16
        $region15: #{simclr_pair_forward.3} parent=11 // pred_region
          _
        $region16: #{simclr_pair_forward.3} parent=11 // pred_fallthru
          _
        // Predicated region
        $region17: #{simclr_pair_forward.3} parent=11 // pred_check
          %p431 = pneg %p93
        $region18: #{simclr_pair_forward.3} parent=11 // pred_check_branch
          %433 = sbr.rel (%p431) target = $region20
        $region19: #{simclr_pair_forward.3} parent=11 // pred_region
          %s435 = ssub.s32 16, 16
          %436 = vsyncadd [#allocation3], %s435
          %s438 = sshll.u32 [#allocation2], 4
          %s439 = int_to_ptr.vmem [resolvable:$true] %s438
          %441 = dma.hbm_to_vmem [thread:$0]  %s2, 16, %s439, [#allocation3]
        $region20: #{simclr_pair_forward.3} parent=11 // pred_fallthru
          _
        // Predicated region
        $region21: #{simclr_pair_forward.3} parent=11 // pred_check
          %p442 = pneg %p114
        $region22: #{simclr_pair_forward.3} parent=11 // pred_check_branch
          %444 = sbr.rel (%p442) target = $region24
        $region23: #{simclr_pair_forward.3} parent=11 // pred_region
          _
        $region24: #{simclr_pair_forward.3} parent=11 // pred_fallthru
          _
        // Predicated region
        $region25: #{simclr_pair_forward.3} parent=11 // pred_check
          %p445 = pneg %p135
        $region26: #{simclr_pair_forward.3} parent=11 // pred_check_branch
          %447 = sbr.rel (%p445) target = $region28
        $region27: #{simclr_pair_forward.3} parent=11 // pred_region
          _
        $region28: #{simclr_pair_forward.3} parent=11 // pred_fallthru
          _
        // Predicated region
        $region29: #{simclr_pair_forward.3} parent=11 // pred_check
          %p448 = pneg %p156
        $region30: #{simclr_pair_forward.3} parent=11 // pred_check_branch
          %450 = sbr.rel (%p448) target = $region32
        $region31: #{simclr_pair_forward.3} parent=11 // pred_region
          _
        $region32: #{simclr_pair_forward.3} parent=11 // pred_fallthru
          _
        // Predicated region
        $region33: #{simclr_pair_forward.3} parent=11 // pred_check
          %p451 = pneg %p177
        $region34: #{simclr_pair_forward.3} parent=11 // pred_check_branch
          %453 = sbr.rel (%p451) target = $region36
        $region35: #{simclr_pair_forward.3} parent=11 // pred_region
          %s455 = ssub.s32 16, 16
          %456 = vsyncadd [#allocation5], %s455
          %s458 = sshll.u32 [#allocation4], 4
          %s459 = int_to_ptr.vmem [resolvable:$true] %s458
          %461 = dma.hbm_to_vmem [thread:$0]  %s6, 16, %s459, [#allocation5]
        $region36: #{simclr_pair_forward.3} parent=11 // pred_fallthru
          _
        // Predicated region
        $region37: #{simclr_pair_forward.3} parent=11 // pred_check
          %p462 = pneg %p198
        $region38: #{simclr_pair_forward.3} parent=11 // pred_check_branch
          %464 = sbr.rel (%p462) target = $region40
        $region39: #{simclr_pair_forward.3} parent=11 // pred_region
          _
        $region40: #{simclr_pair_forward.3} parent=11 // pred_fallthru
          _
        // Predicated region
        $region41: #{simclr_pair_forward.3} parent=11 // pred_check
          %p465 = pneg %p219
        $region42: #{simclr_pair_forward.3} parent=11 // pred_check_branch
          %467 = sbr.rel (%p465) target = $region44
        $region43: #{simclr_pair_forward.3} parent=11 // pred_region
          _
        $region44: #{simclr_pair_forward.3} parent=11 // pred_fallthru
          _
        // Predicated region
        $region45: #{simclr_pair_forward.3} parent=11 // pred_check
          %p468 = pneg %p240
        $region46: #{simclr_pair_forward.3} parent=11 // pred_check_branch
          %470 = sbr.rel (%p468) target = $region48
        $region47: #{simclr_pair_forward.3} parent=11 // pred_region
          _
        $region48: #{simclr_pair_forward.3} parent=11 // pred_fallthru
          _
        // Predicated region
        $region49: #{simclr_pair_forward.3} parent=11 // pred_check
          %p471 = pneg %p261
        $region50: #{simclr_pair_forward.3} parent=11 // pred_check_branch
          %473 = sbr.rel (%p471) target = $region52
        $region51: #{simclr_pair_forward.3} parent=11 // pred_region
          %s475 = ssub.s32 16, 16
          %476 = vsyncadd [#allocation5], %s475
          %s478 = sshll.u32 [#allocation6], 4
          %s479 = int_to_ptr.vmem [resolvable:$true] %s478
          %481 = dma.hbm_to_vmem [thread:$0]  %s10, 16, %s479, [#allocation5]
        $region52: #{simclr_pair_forward.3} parent=11 // pred_fallthru
          _
        // Predicated region
        $region53: #{simclr_pair_forward.3} parent=11 // pred_check
          %p482 = pneg %p282
        $region54: #{simclr_pair_forward.3} parent=11 // pred_check_branch
          %484 = sbr.rel (%p482) target = $region56
        $region55: #{simclr_pair_forward.3} parent=11 // pred_region
          _
        $region56: #{simclr_pair_forward.3} parent=11 // pred_fallthru
          _
        // Predicated region
        $region57: #{simclr_pair_forward.3} parent=11 // pred_check
          %p485 = pneg %p303
        $region58: #{simclr_pair_forward.3} parent=11 // pred_check_branch
          %487 = sbr.rel (%p485) target = $region60
        $region59: #{simclr_pair_forward.3} parent=11 // pred_region
          _
        $region60: #{simclr_pair_forward.3} parent=11 // pred_fallthru
          _
        // Predicated region
        $region61: #{simclr_pair_forward.3} parent=11 // pred_check
          %p488 = pneg %p324
        $region62: #{simclr_pair_forward.3} parent=11 // pred_check_branch
          %490 = sbr.rel (%p488) target = $region64
        $region63: #{simclr_pair_forward.3} parent=11 // pred_region
          _
        $region64: #{simclr_pair_forward.3} parent=11 // pred_fallthru
          _
        // Predicated region
        $region65: #{simclr_pair_forward.3} parent=11 // pred_check
          %p491 = pneg %p345
        $region66: #{simclr_pair_forward.3} parent=11 // pred_check_branch
          %493 = sbr.rel (%p491) target = $region68
        $region67: #{simclr_pair_forward.3} parent=11 // pred_region
          _
        $region68: #{simclr_pair_forward.3} parent=11 // pred_fallthru
          _
        // Predicated region
        $region69: #{simclr_pair_forward.3} parent=11 // pred_check
          %p494 = pneg %p366
        $region70: #{simclr_pair_forward.3} parent=11 // pred_check_branch
          %496 = sbr.rel (%p494) target = $region72
        $region71: #{simclr_pair_forward.3} parent=11 // pred_region
          _
        $region72: #{simclr_pair_forward.3} parent=11 // pred_fallthru
          _
        // Predicated region
        $region73: #{simclr_pair_forward.3} parent=11 // pred_check
          %p497 = pneg %p387
        $region74: #{simclr_pair_forward.3} parent=11 // pred_check_branch
          %499 = sbr.rel (%p497) target = $region76
        $region75: #{simclr_pair_forward.3} parent=11 // pred_region
          _
        $region76: #{simclr_pair_forward.3} parent=11 // pred_fallthru
          _
      $region12: #{simclr_pair_forward.3} parent=5 // pred_fallthru
        _
      %p500 = scmp.lt.s32.totalorder %s25, 2
      // Predicated region
      $region77: #{simclr_pair_forward.3} parent=5 // pred_check
        %p501 = pneg %p500
      $region78: #{simclr_pair_forward.3} parent=5 // pred_check_branch
        %503 = sbr.rel (%p501) target = $region80
      $region79: #{simclr_pair_forward.3} parent=5 // pred_region
        // Predicated region
        $region81: #{simclr_pair_forward.3} parent=79 // pred_check
          %p504 = pneg %p45
        $region82: #{simclr_pair_forward.3} parent=79 // pred_check_branch
          %506 = sbr.rel (%p504) target = $region84
        $region83: #{simclr_pair_forward.3} parent=79 // pred_region
          %s507 = smul.u32 2, %s25
          %p508 = scmp.lt.s32.totalorder %s507, 3
          %s509 = scalar_select %p508, %s507, 3
          %s510 = smul.addr %s509, 4
          %s511 = scalar_lea.vmem %s0, %s510
          %s512 = smul.u32 2, %s25
        $region84: #{simclr_pair_forward.3} parent=79 // pred_fallthru
          _
      $region80: #{simclr_pair_forward.3} parent=5 // pred_fallthru
        _
      %p513 = scmp.le.s32.totalorder 1, %s25
      %p514 = scmp.lt.s32.totalorder %s25, 3
      %p515 = pnand %p513, %p514
      %p516 = pneg %p515
      // Predicated region
      $region85: #{simclr_pair_forward.3} parent=5 // pred_check
        _
      $region86: #{simclr_pair_forward.3} parent=5 // pred_check_branch
        %518 = sbr.rel (%p515) target = $region88
      $region87: #{simclr_pair_forward.3} parent=5 // pred_region
        %s519 = ssub.s32 %s25, 1
        // Predicated region
        $region89: #{simclr_pair_forward.3} parent=87 // pred_check
          %p520 = pneg %p93
        $region90: #{simclr_pair_forward.3} parent=87 // pred_check_branch
          %522 = sbr.rel (%p520) target = $region92
        $region91: #{simclr_pair_forward.3} parent=87 // pred_region
          %523 = dma.done [#allocation3], 16
        $region92: #{simclr_pair_forward.3} parent=87 // pred_fallthru
          _
        // Predicated region
        $region93: #{simclr_pair_forward.3} parent=87 // pred_check
          %p524 = pneg %p177
        $region94: #{simclr_pair_forward.3} parent=87 // pred_check_branch
          %526 = sbr.rel (%p524) target = $region96
        $region95: #{simclr_pair_forward.3} parent=87 // pred_region
          %527 = dma.done [#allocation5], 16
        $region96: #{simclr_pair_forward.3} parent=87 // pred_fallthru
          _
        // Predicated region
        $region97: #{simclr_pair_forward.3} parent=87 // pred_check
          %p528 = pneg %p261
        $region98: #{simclr_pair_forward.3} parent=87 // pred_check_branch
          %530 = sbr.rel (%p528) target = $region100
        $region99: #{simclr_pair_forward.3} parent=87 // pred_region
          %531 = dma.done [#allocation5], 16
        $region100: #{simclr_pair_forward.3} parent=87 // pred_fallthru
          _
        %s532 = smul.u32 2, %s30
        %p533 = scmp.lt.s32.totalorder %s532, 3
        %s534 = scalar_select %p533, %s532, 3
        %s535 = smul.addr %s534, 4
        %s536 = scalar_lea.vmem %s0, %s535
        %p537 = pneg %p51
        %p538 = pneg %p48
        %p539 = pneg %p72
        %p540 = pneg %p69
        %p541 = pneg %p93
        %p542 = pneg %p90
        %p543 = pneg %p114
        %p544 = pneg %p111
        %p545 = pneg %p135
        %p546 = pneg %p132
        %p547 = pneg %p156
        %p548 = pneg %p153
        %p549 = pneg %p177
        %p550 = pneg %p174
        %p551 = pneg %p198
        %p552 = pneg %p195
        %p553 = pneg %p219
        %p554 = pneg %p216
        %p555 = pneg %p240
        %p556 = pneg %p237
        %p557 = pneg %p261
        %p558 = pneg %p258
        %p559 = pneg %p282
        %p560 = pneg %p279
        %p561 = pneg %p303
        %p562 = pneg %p300
        %p563 = pneg %p324
        %p564 = pneg %p321
        %p565 = pneg %p345
        %p566 = pneg %p342
        %p567 = pneg %p366
        %p568 = pneg %p363
        %p569 = pneg %p387
        %p570 = pneg %p384
        %p571 = pneg %p413
        %p572 = pneg %p410
        %s573 = smul.u32 2, %s30
        %p574 = scmp.lt.s32.totalorder %s573, 3
        %s575 = scalar_select %p574, %s573, 3
        %s576 = smul.addr %s575, 8
        %s577 = scalar_lea.vmem %s17, %s576
        %s578 = smul.u32 2, %s30
        %p579 = scmp.lt.s32.totalorder %s578, 3
        %s580 = scalar_select %p579, %s578, 3
        %s581 = smul.addr %s580, 4
        %s582 = scalar_lea.vmem %s0, %s581
        %s583 = smul.u32 2, %s30
        %s584 = smul.u32 2, %s30
        %p585 = scmp.lt.s32.totalorder %s584, 3
        %s586 = scalar_select %p585, %s584, 3
        %s587 = smul.addr %s586, 8
        %s588 = scalar_lea.vmem %s17, %s587
        %s589 = smul.u32 2, %s30
        %v591 = vld [vmem:[%s582] sm:$0xf]
        %v592 = vld [vmem:[%s582 + $0x4] sm:$0xf]
        %v593 = vld [vmem:[%s1] sm:$0xf]
        %v594 = vld [vmem:[%s1 + $0x4] sm:$0xf]
        %v595 = vld [vmem:[%s1 + $0x8] sm:$0xf]
        %v596 = vld [vmem:[%s1 + $0xc] sm:$0xf]
        %v597 = vld [vmem:[#allocation2] sm:$0x1]
        %v599 = vlaneseq
        %v600 = vshrl.u32 %v599, 7
        %v601 = vsub.s32 0, %v600
        %v602 = vrot.slane %v597, %v601
        %v606 = vunpack.c.l.b16 %v591
        %v607 = vunpack.c.l.b16 %v592
        %v608 = vpack.c.b16 %v607, %v606
        %v613 = vunpack.c.l.b16 %v593
        %v614 = vunpack.c.l.b16 %v594
        %v615 = vunpack.c.l.b16 %v595
        %v616 = vunpack.c.l.b16 %v596
        %v617 = vpack.c.b16 %v614, %v613
        %v618 = vpack.c.b16 %v616, %v615
        %vm621 = vcmask 261120
        %v623 = vsel %vm621, %v608, 0
        %625 = vmatprep.subr.bf16.mxu0 0
        %626 = vmatpush1.bf16.msra.mxu0 %v617
        %627 = vmatprep.subr.bf16.mxu0 0
        %628 = vmatpush1.bf16.msra.mxu0 %v618
        %629 = vmatprep.subr.bf16.mxu0 0
        %630 = vmatpush1.bf16.msra.mxu0 0
        %631 = vmatprep.subr.bf16.mxu0 0
        %632 = vmatpush1.bf16.msra.mxu0 0
        %633 = vmatprep.subr.bf16.mxu0 0
        %634 = vmatpush1.bf16.msra.mxu0 0
        %635 = vmatprep.subr.bf16.mxu0 0
        %636 = vmatpush1.bf16.msra.mxu0 0
        %637 = vmatprep.subr.bf16.mxu0 0
        %638 = vmatpush1.bf16.msra.mxu0 0
        %639 = vmatprep.subr.bf16.mxu0 0
        %640 = vmatpush1.bf16.msra.mxu0 0
        %641 = vmatprep.subr.bf16.mxu0 0
        %642 = vmatpush1.bf16.msra.mxu0 0
        %643 = vmatprep.subr.bf16.mxu0 0
        %644 = vmatpush1.bf16.msra.mxu0 0
        %645 = vmatprep.subr.bf16.mxu0 0
        %646 = vmatpush1.bf16.msra.mxu0 0
        %647 = vmatprep.subr.bf16.mxu0 0
        %648 = vmatpush1.bf16.msra.mxu0 0
        %649 = vmatprep.subr.bf16.mxu0 0
        %650 = vmatpush1.bf16.msra.mxu0 0
        %651 = vmatprep.subr.bf16.mxu0 0
        %652 = vmatpush1.bf16.msra.mxu0 0
        %653 = vmatprep.subr.bf16.mxu0 0
        %654 = vmatpush1.bf16.msra.mxu0 0
        %655 = vmatprep.subr.bf16.mxu0 0
        %656 = vmatpush1.bf16.msra.mxu0 0
        %657 = vmatprep.mubr.bf16.mxu0 0
        %658 = vmatmul.mubr.bf16.gmra.mrb[0].mxu0 %v623
        %v659 = vpop.f32.mrb[0].mxu0
        %v660 = vadd.f32 %v602, %v659
        %v661 = vpop.f32.mrb[0].mxu0
        %v662 = vpop.f32.mrb[0].mxu0
        %v663 = vadd.f32 %v602, %v662
        %v664 = vpop.f32.mrb[0].mxu0
        %665 = vdwg.mxu0
        %v666 = vld [vmem:[%s3] sm:$0x1]
        %v667 = vld [vmem:[%s4] sm:$0x1]
        %vm668 = vcmask 523264
        %v669 = vsel %vm668, %v660, 0.0
        %670 = vadd.xlane.f32.xlu0 %v669
        %v671 = vpop.xlane.xlu0 %670
        %v672 = vsel %vm668, %v663, 0.0
        %673 = vadd.xlane.f32.xlu0 %v672
        %v674 = vpop.xlane.xlu0 %673
        %v675 = vrcp.pop 64.0
        %v676 = vmul.f32 %v671, %v675
        %v677 = vmul.f32 %v674, %v675
        %v678 = vmul.f32 %v660, %v660
        %v679 = vmul.f32 %v663, %v663
        %v680 = vsel %vm668, %v678, 0.0
        %681 = vadd.xlane.f32.xlu0 %v680
        %v682 = vpop.xlane.xlu0 %681
        %v683 = vsel %vm668, %v679, 0.0
        %684 = vadd.xlane.f32.xlu0 %v683
        %v685 = vpop.xlane.xlu0 %684
        %v686 = vmul.f32 %v682, %v675
        %v687 = vmul.f32 %v685, %v675
        %v688 = vmul.f32 %v676, %v676
        %v689 = vmul.f32 %v677, %v677
        %v690 = vsub.f32 %v686, %v688
        %v691 = vsub.f32 %v687, %v689
        %v692 = vmax.f32 %v690, 0.0
        %v693 = vmax.f32 %v691, 0.0
        %v694 = vsub.f32 %v660, %v676
        %v695 = vsub.f32 %v663, %v677
        %v696 = vadd.f32 %v692, 1e-05
        %v697 = vadd.f32 %v693, 1e-05
        %v698 = vrsqrt.pop %v696
        %v699 = vrsqrt.pop %v697
        %v700 = vmul.f32 %v694, %v698
        %v701 = vmul.f32 %v695, %v699
        %v703 = vlaneseq
        %v704 = vshrl.u32 %v703, 7
        %v705 = vsub.s32 0, %v704
        %v706 = vrot.slane %v666, %v705
        %v708 = vmul.f32 %v700, %v706
        %v709 = vmul.f32 %v701, %v706
        %v711 = vlaneseq
        %v712 = vshrl.u32 %v711, 7
        %v713 = vsub.s32 0, %v712
        %v714 = vrot.slane %v667, %v713
        %v716 = vadd.f32 %v708, %v714
        %v717 = vadd.f32 %v709, %v714
        %v718 = vxor.u32 %v716, 2147483648
        %v719 = vxor.u32 %v717, 2147483648
        %v720 = vmul.f32 %v718, 1.442695
        %v721 = vpow.pop %v720
        %v722 = vmul.f32 %v719, 1.442695
        %v723 = vpow.pop %v722
        %v724 = vadd.f32 %v721, 1.0
        %v725 = vadd.f32 %v723, 1.0
        %v726 = vrcp.pop %v724
        %v727 = vmul.f32 1.0, %v726
        %v728 = vrcp.pop %v725
        %v729 = vmul.f32 1.0, %v728
        %v730 = vmul.f32 %v716, %v727
        %v731 = vmul.f32 %v717, %v729
        %v732 = vld [vmem:[%s5] sm:$0xf]
        %v733 = vld [vmem:[%s5 + $0x4] sm:$0xf]
        %v734 = vld [vmem:[%s5 + $0x8] sm:$0xf]
        %v735 = vld [vmem:[%s5 + $0xc] sm:$0xf]
        %v736 = vld [vmem:[%s5 + $0x10] sm:$0xf]
        %v737 = vld [vmem:[%s5 + $0x14] sm:$0xf]
        %v738 = vld [vmem:[%s5 + $0x18] sm:$0xf]
        %v739 = vld [vmem:[%s5 + $0x1c] sm:$0xf]
        %v740 = vld [vmem:[#allocation4] sm:$0x1]
        %v741 = vpack.c.bf16 %v731, %v730
        %v743 = vlaneseq
        %v744 = vshrl.u32 %v743, 7
        %v745 = vsub.s32 0, %v744
        %v746 = vrot.slane %v740, %v745
        %v756 = vunpack.c.l.b16 %v732
        %v757 = vunpack.c.l.b16 %v733
        %v758 = vunpack.c.l.b16 %v734
        %v759 = vunpack.c.l.b16 %v735
        %v760 = vunpack.c.l.b16 %v736
        %v761 = vunpack.c.l.b16 %v737
        %v762 = vunpack.c.l.b16 %v738
        %v763 = vunpack.c.l.b16 %v739
        %v764 = vpack.c.b16 %v757, %v756
        %v765 = vpack.c.b16 %v759, %v758
        %v766 = vpack.c.b16 %v761, %v760
        %v767 = vpack.c.b16 %v763, %v762
        %v773 = vsel %vm668, %v741, 0
        %775 = vmatprep.subr.bf16.mxu0 0
        %776 = vmatpush1.bf16.msra.mxu0 %v764
        %777 = vmatprep.subr.bf16.mxu0 0
        %778 = vmatpush1.bf16.msra.mxu0 %v765
        %779 = vmatprep.subr.bf16.mxu0 0
        %780 = vmatpush1.bf16.msra.mxu0 %v766
        %781 = vmatprep.subr.bf16.mxu0 0
        %782 = vmatpush1.bf16.msra.mxu0 %v767
        %783 = vmatprep.subr.bf16.mxu0 0
        %784 = vmatpush1.bf16.msra.mxu0 0
        %785 = vmatprep.subr.bf16.mxu0 0
        %786 = vmatpush1.bf16.msra.mxu0 0
        %787 = vmatprep.subr.bf16.mxu0 0
        %788 = vmatpush1.bf16.msra.mxu0 0
        %789 = vmatprep.subr.bf16.mxu0 0
        %790 = vmatpush1.bf16.msra.mxu0 0
        %791 = vmatprep.subr.bf16.mxu0 0
        %792 = vmatpush1.bf16.msra.mxu0 0
        %793 = vmatprep.subr.bf16.mxu0 0
        %794 = vmatpush1.bf16.msra.mxu0 0
        %795 = vmatprep.subr.bf16.mxu0 0
        %796 = vmatpush1.bf16.msra.mxu0 0
        %797 = vmatprep.subr.bf16.mxu0 0
        %798 = vmatpush1.bf16.msra.mxu0 0
        %799 = vmatprep.subr.bf16.mxu0 0
        %800 = vmatpush1.bf16.msra.mxu0 0
        %801 = vmatprep.subr.bf16.mxu0 0
        %802 = vmatpush1.bf16.msra.mxu0 0
        %803 = vmatprep.subr.bf16.mxu0 0
        %804 = vmatpush1.bf16.msra.mxu0 0
        %805 = vmatprep.subr.bf16.mxu0 0
        %806 = vmatpush1.bf16.msra.mxu0 0
        %807 = vmatprep.mubr.bf16.mxu0 0
        %808 = vmatmul.mubr.bf16.gmra.mrb[0].mxu0 %v773
        %v809 = vpop.f32.mrb[0].mxu0
        %v810 = vadd.f32 %v746, %v809
        %v811 = vpop.f32.mrb[0].mxu0
        %v812 = vpop.f32.mrb[0].mxu0
        %v813 = vadd.f32 %v746, %v812
        %v814 = vpop.f32.mrb[0].mxu0
        %815 = vdwg.mxu0
        %v816 = vld [vmem:[%s7] sm:$0x1]
        %v817 = vld [vmem:[%s8] sm:$0x1]
        %v818 = vsel %vm668, %v810, 0.0
        %819 = vadd.xlane.f32.xlu0 %v818
        %v820 = vpop.xlane.xlu0 %819
        %v821 = vsel %vm668, %v813, 0.0
        %822 = vadd.xlane.f32.xlu0 %v821
        %v823 = vpop.xlane.xlu0 %822
        %v824 = vmul.f32 %v820, %v675
        %v825 = vmul.f32 %v823, %v675
        %v826 = vmul.f32 %v810, %v810
        %v827 = vmul.f32 %v813, %v813
        %v828 = vsel %vm668, %v826, 0.0
        %829 = vadd.xlane.f32.xlu0 %v828
        %v830 = vpop.xlane.xlu0 %829
        %v831 = vsel %vm668, %v827, 0.0
        %832 = vadd.xlane.f32.xlu0 %v831
        %v833 = vpop.xlane.xlu0 %832
        %v834 = vmul.f32 %v830, %v675
        %v835 = vmul.f32 %v833, %v675
        %v836 = vmul.f32 %v824, %v824
        %v837 = vmul.f32 %v825, %v825
        %v838 = vsub.f32 %v834, %v836
        %v839 = vsub.f32 %v835, %v837
        %v840 = vmax.f32 %v838, 0.0
        %v841 = vmax.f32 %v839, 0.0
        %v842 = vsub.f32 %v810, %v824
        %v843 = vsub.f32 %v813, %v825
        %v844 = vadd.f32 %v840, 1e-05
        %v845 = vadd.f32 %v841, 1e-05
        %v846 = vrsqrt.pop %v844
        %v847 = vrsqrt.pop %v845
        %v848 = vmul.f32 %v842, %v846
        %v849 = vmul.f32 %v843, %v847
        %v851 = vlaneseq
        %v852 = vshrl.u32 %v851, 7
        %v853 = vsub.s32 0, %v852
        %v854 = vrot.slane %v816, %v853
        %v856 = vmul.f32 %v848, %v854
        %v857 = vmul.f32 %v849, %v854
        %v859 = vlaneseq
        %v860 = vshrl.u32 %v859, 7
        %v861 = vsub.s32 0, %v860
        %v862 = vrot.slane %v817, %v861
        %v864 = vadd.f32 %v856, %v862
        %v865 = vadd.f32 %v857, %v862
        %v866 = vxor.u32 %v864, 2147483648
        %v867 = vxor.u32 %v865, 2147483648
        %v868 = vmul.f32 %v866, 1.442695
        %v869 = vpow.pop %v868
        %v870 = vmul.f32 %v867, 1.442695
        %v871 = vpow.pop %v870
        %v872 = vadd.f32 %v869, 1.0
        %v873 = vadd.f32 %v871, 1.0
        %v874 = vrcp.pop %v872
        %v875 = vmul.f32 1.0, %v874
        %v876 = vrcp.pop %v873
        %v877 = vmul.f32 1.0, %v876
        %v878 = vmul.f32 %v864, %v875
        %v879 = vmul.f32 %v865, %v877
        %v880 = vld [vmem:[%s9] sm:$0xf]
        %v881 = vld [vmem:[%s9 + $0x4] sm:$0xf]
        %v882 = vld [vmem:[%s9 + $0x8] sm:$0xf]
        %v883 = vld [vmem:[%s9 + $0xc] sm:$0xf]
        %v884 = vld [vmem:[%s9 + $0x10] sm:$0xf]
        %v885 = vld [vmem:[%s9 + $0x14] sm:$0xf]
        %v886 = vld [vmem:[%s9 + $0x18] sm:$0xf]
        %v887 = vld [vmem:[%s9 + $0x1c] sm:$0xf]
        %v888 = vld [vmem:[#allocation6] sm:$0x1]
        %v889 = vpack.c.bf16 %v879, %v878
        %v891 = vlaneseq
        %v892 = vshrl.u32 %v891, 7
        %v893 = vsub.s32 0, %v892
        %v894 = vrot.slane %v888, %v893
        %v904 = vunpack.c.l.b16 %v880
        %v905 = vunpack.c.l.b16 %v881
        %v906 = vunpack.c.l.b16 %v882
        %v907 = vunpack.c.l.b16 %v883
        %v908 = vunpack.c.l.b16 %v884
        %v909 = vunpack.c.l.b16 %v885
        %v910 = vunpack.c.l.b16 %v886
        %v911 = vunpack.c.l.b16 %v887
        %v912 = vpack.c.b16 %v905, %v904
        %v913 = vpack.c.b16 %v907, %v906
        %v914 = vpack.c.b16 %v909, %v908
        %v915 = vpack.c.b16 %v911, %v910
        %v921 = vsel %vm668, %v889, 0
        %923 = vmatprep.subr.bf16.mxu0 0
        %924 = vmatpush1.bf16.msra.mxu0 %v912
        %925 = vmatprep.subr.bf16.mxu0 0
        %926 = vmatpush1.bf16.msra.mxu0 %v913
        %927 = vmatprep.subr.bf16.mxu0 0
        %928 = vmatpush1.bf16.msra.mxu0 %v914
        %929 = vmatprep.subr.bf16.mxu0 0
        %930 = vmatpush1.bf16.msra.mxu0 %v915
        %931 = vmatprep.subr.bf16.mxu0 0
        %932 = vmatpush1.bf16.msra.mxu0 0
        %933 = vmatprep.subr.bf16.mxu0 0
        %934 = vmatpush1.bf16.msra.mxu0 0
        %935 = vmatprep.subr.bf16.mxu0 0
        %936 = vmatpush1.bf16.msra.mxu0 0
        %937 = vmatprep.subr.bf16.mxu0 0
        %938 = vmatpush1.bf16.msra.mxu0 0
        %939 = vmatprep.subr.bf16.mxu0 0
        %940 = vmatpush1.bf16.msra.mxu0 0
        %941 = vmatprep.subr.bf16.mxu0 0
        %942 = vmatpush1.bf16.msra.mxu0 0
        %943 = vmatprep.subr.bf16.mxu0 0
        %944 = vmatpush1.bf16.msra.mxu0 0
        %945 = vmatprep.subr.bf16.mxu0 0
        %946 = vmatpush1.bf16.msra.mxu0 0
        %947 = vmatprep.subr.bf16.mxu0 0
        %948 = vmatpush1.bf16.msra.mxu0 0
        %949 = vmatprep.subr.bf16.mxu0 0
        %950 = vmatpush1.bf16.msra.mxu0 0
        %951 = vmatprep.subr.bf16.mxu0 0
        %952 = vmatpush1.bf16.msra.mxu0 0
        %953 = vmatprep.subr.bf16.mxu0 0
        %954 = vmatpush1.bf16.msra.mxu0 0
        %955 = vmatprep.mubr.bf16.mxu0 0
        %956 = vmatmul.mubr.bf16.gmra.mrb[0].mxu0 %v921
        %v957 = vpop.f32.mrb[0].mxu0
        %v958 = vadd.f32 %v894, %v957
        %v959 = vpop.f32.mrb[0].mxu0
        %v960 = vpop.f32.mrb[0].mxu0
        %v961 = vadd.f32 %v894, %v960
        %v962 = vpop.f32.mrb[0].mxu0
        %963 = vdwg.mxu0
        %v964 = vld [vmem:[%s11] sm:$0xf]
        %v965 = vld [vmem:[%s11 + $0x4] sm:$0xf]
        %v966 = vld [vmem:[%s11 + $0x8] sm:$0xf]
        %v967 = vld [vmem:[%s11 + $0xc] sm:$0xf]
        %v968 = vld [vmem:[%s12] sm:$0x1]
        %v969 = vpack.c.bf16 %v961, %v958
        %v971 = vlaneseq
        %v972 = vshrl.u32 %v971, 7
        %v973 = vsub.s32 0, %v972
        %v974 = vrot.slane %v968, %v973
        %v980 = vunpack.c.l.b16 %v964
        %v981 = vunpack.c.l.b16 %v965
        %v982 = vunpack.c.l.b16 %v966
        %v983 = vunpack.c.l.b16 %v967
        %v984 = vpack.c.b16 %v981, %v980
        %v985 = vpack.c.b16 %v983, %v982
        %v989 = vsel %vm621, %v969, 0
        %991 = vmatprep.subr.bf16.mxu0 0
        %992 = vmatpush1.bf16.msra.mxu0 %v984
        %993 = vmatprep.subr.bf16.mxu0 0
        %994 = vmatpush1.bf16.msra.mxu0 %v985
        %995 = vmatprep.subr.bf16.mxu0 0
        %996 = vmatpush1.bf16.msra.mxu0 0
        %997 = vmatprep.subr.bf16.mxu0 0
        %998 = vmatpush1.bf16.msra.mxu0 0
        %999 = vmatprep.subr.bf16.mxu0 0
        %1000 = vmatpush1.bf16.msra.mxu0 0
        %1001 = vmatprep.subr.bf16.mxu0 0
        %1002 = vmatpush1.bf16.msra.mxu0 0
        %1003 = vmatprep.subr.bf16.mxu0 0
        %1004 = vmatpush1.bf16.msra.mxu0 0
        %1005 = vmatprep.subr.bf16.mxu0 0
        %1006 = vmatpush1.bf16.msra.mxu0 0
        %1007 = vmatprep.subr.bf16.mxu0 0
        %1008 = vmatpush1.bf16.msra.mxu0 0
        %1009 = vmatprep.subr.bf16.mxu0 0
        %1010 = vmatpush1.bf16.msra.mxu0 0
        %1011 = vmatprep.subr.bf16.mxu0 0
        %1012 = vmatpush1.bf16.msra.mxu0 0
        %1013 = vmatprep.subr.bf16.mxu0 0
        %1014 = vmatpush1.bf16.msra.mxu0 0
        %1015 = vmatprep.subr.bf16.mxu0 0
        %1016 = vmatpush1.bf16.msra.mxu0 0
        %1017 = vmatprep.subr.bf16.mxu0 0
        %1018 = vmatpush1.bf16.msra.mxu0 0
        %1019 = vmatprep.subr.bf16.mxu0 0
        %1020 = vmatpush1.bf16.msra.mxu0 0
        %1021 = vmatprep.subr.bf16.mxu0 0
        %1022 = vmatpush1.bf16.msra.mxu0 0
        %1023 = vmatprep.mubr.bf16.mxu0 0
        %1024 = vmatmul.mubr.bf16.gmra.mrb[0].mxu0 %v989
        %v1025 = vpop.f32.mrb[0].mxu0
        %v1026 = vadd.f32 %v974, %v1025
        %v1027 = vpop.f32.mrb[0].mxu0
        %v1028 = vpop.f32.mrb[0].mxu0
        %v1029 = vadd.f32 %v974, %v1028
        %v1030 = vpop.f32.mrb[0].mxu0
        %1031 = vdwg.mxu0
        %v1032 = vld [vmem:[%s13] sm:$0x1]
        %v1033 = vld [vmem:[%s14] sm:$0x1]
        %v1034 = vsel %vm621, %v1026, 0.0
        %1035 = vadd.xlane.f32.xlu0 %v1034
        %v1036 = vpop.xlane.xlu0 %1035
        %v1037 = vsel %vm621, %v1029, 0.0
        %1038 = vadd.xlane.f32.xlu0 %v1037
        %v1039 = vpop.xlane.xlu0 %1038
        %v1040 = vrcp.pop 32.0
        %v1041 = vmul.f32 %v1036, %v1040
        %v1042 = vmul.f32 %v1039, %v1040
        %v1043 = vmul.f32 %v1026, %v1026
        %v1044 = vmul.f32 %v1029, %v1029
        %v1045 = vsel %vm621, %v1043, 0.0
        %1046 = vadd.xlane.f32.xlu0 %v1045
        %v1047 = vpop.xlane.xlu0 %1046
        %v1048 = vsel %vm621, %v1044, 0.0
        %1049 = vadd.xlane.f32.xlu0 %v1048
        %v1050 = vpop.xlane.xlu0 %1049
        %v1051 = vmul.f32 %v1047, %v1040
        %v1052 = vmul.f32 %v1050, %v1040
        %v1053 = vmul.f32 %v1041, %v1041
        %v1054 = vmul.f32 %v1042, %v1042
        %v1055 = vsub.f32 %v1051, %v1053
        %v1056 = vsub.f32 %v1052, %v1054
        %v1057 = vmax.f32 %v1055, 0.0
        %v1058 = vmax.f32 %v1056, 0.0
        %v1059 = vsub.f32 %v1026, %v1041
        %v1060 = vsub.f32 %v1029, %v1042
        %v1061 = vadd.f32 %v1057, 1e-05
        %v1062 = vadd.f32 %v1058, 1e-05
        %v1063 = vrsqrt.pop %v1061
        %v1064 = vrsqrt.pop %v1062
        %v1065 = vmul.f32 %v1059, %v1063
        %v1066 = vmul.f32 %v1060, %v1064
        %v1068 = vlaneseq
        %v1069 = vshrl.u32 %v1068, 7
        %v1070 = vsub.s32 0, %v1069
        %v1071 = vrot.slane %v1032, %v1070
        %v1073 = vmul.f32 %v1065, %v1071
        %v1074 = vmul.f32 %v1066, %v1071
        %v1076 = vlaneseq
        %v1077 = vshrl.u32 %v1076, 7
        %v1078 = vsub.s32 0, %v1077
        %v1079 = vrot.slane %v1033, %v1078
        %v1081 = vadd.f32 %v1073, %v1079
        %v1082 = vadd.f32 %v1074, %v1079
        %v1083 = vxor.u32 %v1081, 2147483648
        %v1084 = vxor.u32 %v1082, 2147483648
        %v1085 = vmul.f32 %v1083, 1.442695
        %v1086 = vpow.pop %v1085
        %v1087 = vmul.f32 %v1084, 1.442695
        %v1088 = vpow.pop %v1087
        %v1089 = vadd.f32 %v1086, 1.0
        %v1090 = vadd.f32 %v1088, 1.0
        %v1091 = vrcp.pop %v1089
        %v1092 = vmul.f32 1.0, %v1091
        %v1093 = vrcp.pop %v1090
        %v1094 = vmul.f32 1.0, %v1093
        %v1095 = vmul.f32 %v1081, %v1092
        %v1096 = vmul.f32 %v1082, %v1094
        %v1097 = vld [vmem:[%s15] sm:$0xf]
        %v1098 = vld [vmem:[%s15 + $0x4] sm:$0xf]
        %v1099 = vld [vmem:[%s15 + $0x8] sm:$0xf]
        %v1100 = vld [vmem:[%s15 + $0xc] sm:$0xf]
        %v1101 = vld [vmem:[%s16] sm:$0x1]
        %v1102 = vpack.c.bf16 %v1096, %v1095
        %v1104 = vlaneseq
        %v1105 = vshrl.u32 %v1104, 7
        %v1106 = vsub.s32 0, %v1105
        %v1107 = vrot.slane %v1101, %v1106
        %v1113 = vunpack.c.l.b16 %v1097
        %v1114 = vunpack.c.l.b16 %v1098
        %v1115 = vunpack.c.l.b16 %v1099
        %v1116 = vunpack.c.l.b16 %v1100
        %v1117 = vpack.c.b16 %v1114, %v1113
        %v1118 = vpack.c.b16 %v1116, %v1115
        %v1122 = vsel %vm621, %v1102, 0
        %1124 = vmatprep.subr.bf16.mxu0 0
        %1125 = vmatpush1.bf16.msra.mxu0 %v1117
        %1126 = vmatprep.subr.bf16.mxu0 0
        %1127 = vmatpush1.bf16.msra.mxu0 %v1118
        %1128 = vmatprep.subr.bf16.mxu0 0
        %1129 = vmatpush1.bf16.msra.mxu0 0
        %1130 = vmatprep.subr.bf16.mxu0 0
        %1131 = vmatpush1.bf16.msra.mxu0 0
        %1132 = vmatprep.subr.bf16.mxu0 0
        %1133 = vmatpush1.bf16.msra.mxu0 0
        %1134 = vmatprep.subr.bf16.mxu0 0
        %1135 = vmatpush1.bf16.msra.mxu0 0
        %1136 = vmatprep.subr.bf16.mxu0 0
        %1137 = vmatpush1.bf16.msra.mxu0 0
        %1138 = vmatprep.subr.bf16.mxu0 0
        %1139 = vmatpush1.bf16.msra.mxu0 0
        %1140 = vmatprep.subr.bf16.mxu0 0
        %1141 = vmatpush1.bf16.msra.mxu0 0
        %1142 = vmatprep.subr.bf16.mxu0 0
        %1143 = vmatpush1.bf16.msra.mxu0 0
        %1144 = vmatprep.subr.bf16.mxu0 0
        %1145 = vmatpush1.bf16.msra.mxu0 0
        %1146 = vmatprep.subr.bf16.mxu0 0
        %1147 = vmatpush1.bf16.msra.mxu0 0
        %1148 = vmatprep.subr.bf16.mxu0 0
        %1149 = vmatpush1.bf16.msra.mxu0 0
        %1150 = vmatprep.subr.bf16.mxu0 0
        %1151 = vmatpush1.bf16.msra.mxu0 0
        %1152 = vmatprep.subr.bf16.mxu0 0
        %1153 = vmatpush1.bf16.msra.mxu0 0
        %1154 = vmatprep.subr.bf16.mxu0 0
        %1155 = vmatpush1.bf16.msra.mxu0 0
        %1156 = vmatprep.mubr.bf16.mxu0 0
        %1157 = vmatmul.mubr.bf16.gmra.mrb[0].mxu0 %v1122
        %v1158 = vpop.f32.mrb[0].mxu0
        %v1159 = vadd.f32 %v1107, %v1158
        %v1160 = vpop.f32.mrb[0].mxu0
        %v1161 = vpop.f32.mrb[0].mxu0
        %v1162 = vadd.f32 %v1107, %v1161
        %v1163 = vpop.f32.mrb[0].mxu0
        %1164 = vdwg.mxu0
        %v1165 = vmul.f32 %v1159, %v1159
        %v1166 = vmul.f32 %v1162, %v1162
        %1167 = vadd.xlane.f32.xlu0 %v1165
        %v1168 = vpop.xlane.xlu0 %1167
        %1169 = vadd.xlane.f32.xlu0 %v1166
        %v1170 = vpop.xlane.xlu0 %1169
        %v1171 = vmax.f32 %v1168, 1e-24
        %v1172 = vmax.f32 %v1170, 1e-24
        %v1173 = vrsqrt.pop %v1171
        %v1174 = vrsqrt.pop %v1172
        %v1175 = vmul.f32 %v1159, %v1173
        %v1176 = vmul.f32 %v1162, %v1174
        %1177 = vst [vmem:[%s588] sm:$0xff] %v1175
        %1178 = vst [vmem:[%s588 + $0x8] sm:$0xff] %v1176
        %s1179 = smul.u32 2, %s30
        %p1180 = scmp.lt.s32.totalorder %s1179, 3
        %s1181 = scalar_select %p1180, %s1179, 3
        %s1182 = smul.addr %s1181, 8
        %s1183 = scalar_lea.vmem %s17, %s1182
        // Predicated region
        $region101: #{simclr_pair_forward.3} parent=87 // pred_check
          %p1184 = pneg %p410
        $region102: #{simclr_pair_forward.3} parent=87 // pred_check_branch
          %1186 = sbr.rel (%p1184) target = $region104
        $region103: #{simclr_pair_forward.3} parent=87 // pred_region
          %s1187 = smul.u32 2, %s30
        $region104: #{simclr_pair_forward.3} parent=87 // pred_fallthru
          _
      $region88: #{simclr_pair_forward.3} parent=5 // pred_fallthru
        _
      %p1188 = scmp.le.s32.totalorder 2, %s25
      // Predicated region
      $region105: #{simclr_pair_forward.3} parent=5 // pred_check
        %p1189 = pneg %p1188
      $region106: #{simclr_pair_forward.3} parent=5 // pred_check_branch
        %1191 = sbr.rel (%p1189) target = $region108
      $region107: #{simclr_pair_forward.3} parent=5 // pred_region
        %s1192 = ssub.s32 %s25, 2
        // Predicated region
        $region109: #{simclr_pair_forward.3} parent=107 // pred_check
          %p1193 = pneg %p416
        $region110: #{simclr_pair_forward.3} parent=107 // pred_check_branch
          %1195 = sbr.rel (%p1193) target = $region112
        $region111: #{simclr_pair_forward.3} parent=107 // pred_region
          %s1196 = smul.u32 2, %s31
          %p1197 = scmp.lt.s32.totalorder %s1196, 3
          %s1198 = scalar_select %p1197, %s1196, 3
          %s1199 = smul.addr %s1198, 8
          %s1200 = scalar_lea.vmem %s17, %s1199
        $region112: #{simclr_pair_forward.3} parent=107 // pred_fallthru
          _
      $region108: #{simclr_pair_forward.3} parent=5 // pred_fallthru
        _
    $region6: #{simclr_pair_forward.3} parent=1 // loop_footer
      %s29 = sadd.s32 1, %s25
    $region7: #{simclr_pair_forward.3} parent=1 // loop_footer_branch
      %24 = sbr.rel target = $region3
    $region8: #{simclr_pair_forward.3} parent=1 // loop_exit
      _
    %1201 = vsyncpa [#allocation3], 1
    %s1202 = scalar_lea.sflag [#allocation3], 1
    %1203 = vsyncpa %s1202, 1
    %1204 = vsyncpa [#allocation5], 1

</llo_original>
